<compile_context>
chip_gen: v7x
topology: tpu7x:2x2x1
jax: 0.10.0
libtpu: 0.0.40
codegen_flags: <defaults>
</compile_context>

<pallas_src>
import functools
import numpy as np

import jax
import jax.numpy as jnp
from jax.experimental import pallas as pl
from jax.experimental.pallas import tpu as pltpu

HIGHEST = jax.lax.Precision.HIGHEST


def _coupling_kernel(x_ref, mask_ref, bias_ref,
                     pre_w_ref, pre_b_ref,
                     wf_ref, rs_w_ref, rs_b_ref,
                     post_w_ref, post_b_ref,
                     out_ref,
                     *, half, hidden, n_layers, kernel_size, dilation_rate, time):
    f32, bf16 = jnp.float32, jnp.bfloat16
    H, K, T = hidden, kernel_size, time
    # bf16 operands + f32 accumulation: native MXU fast path (no HIGHEST emulation).
    dot = functools.partial(jnp.dot, preferred_element_type=f32)

    x = x_ref[0]                       # (C, T)  f32
    mask = mask_ref[0]                 # (1, T)  f32
    x0 = x[:half, :]
    x1 = x[half:, :]

    # pre: 1x1 conv == channel matmul.
    h = (dot(pre_w_ref[...], x0.astype(bf16)) + pre_b_ref[...]) * mask   # (H, T) f32

    lane = jax.lax.broadcasted_iota(jnp.int32, (H, T), 1)

    cur = h
    skip = jnp.zeros((H, T), f32)
    # TODO(synk): for production depths (n_layers up to 16) switch this static
    # Python loop to lax.fori_loop with dynamically-indexed weight refs to keep
    # instruction count / vreg live ranges bounded.
    for i in range(n_layers):
        d = dilation_rate ** i
        p = d * (K - 1) // 2
        # Dilated conv: build the K shifted taps with XLU rolls + a boundary
        # mask (== zero padding), then contract them in a single MXU matmul.
        taps = []
        for k in range(K):
            o = k * d - p                          # static tap offset in time
            if o == 0:
                taps.append(cur)
            else:
                shifted = pltpu.roll(cur, (-o) % T, 1)
                valid = jnp.logical_and(lane >= max(0, -o), lane < min(T, T - o))
                taps.append(jnp.where(valid, shifted, 0.0))
        taps = jnp.concatenate(taps, axis=0).astype(bf16)        # (K*H, T)
        # fused (conv bias + time-constant global conditioning) column,
        # precomputed in the wrapper.
        acc = dot(wf_ref[i], taps) + bias_ref[0, i]              # (2H, T) f32
        # fused_add_tanh_sigmoid_multiply; sigmoid via tanh stays on the EUP slot.
        t_act = jnp.tanh(acc[:H, :])
        s_act = 0.5 * (jnp.tanh(0.5 * acc[H:, :]) + 1.0)
        acts = (t_act * s_act).astype(bf16)                      # (H, T)
        # res/skip 1x1 conv (last layer's residual rows are zeroed in the weights).
        rs = dot(rs_w_ref[i], acts) + rs_b_ref[i]                # (2H, T) f32
        cur = (cur + rs[:H, :]) * mask
        skip = skip + rs[H:, :]
    h_enc = (skip * mask).astype(bf16)

    # post: 1x1 conv (mean_only -> half channels), logs == 0.
    m = (dot(post_w_ref[...], h_enc) + post_b_ref[...]) * mask
    # TODO(synk): with input_output_aliases + a half-channel output block the x0
    # pass-through store could be dropped; kept explicit because half < 8
    # sublanes makes a partial out-block layout fragile at this toy size.
    out_ref[0, :half, :] = x0
    out_ref[0, half:, :] = m + x1 * mask


def make_coupling_call(B, C, T, H, gin, n_layers, K, dilation_rate):
    half = C // 2
    L = n_layers
    kernel = functools.partial(
        _coupling_kernel, half=half, hidden=H, n_layers=n_layers,
        kernel_size=K, dilation_rate=dilation_rate, time=T)
    # TODO(synk): for realistic RVC sizes (H~192, T in the thousands) add a
    # second parallel time-tile grid axis with a max_dilation*(K-1)//2 halo so
    # the working set stays under v7x's 64 MiB VMEM.
    in_specs = [
        pl.BlockSpec((1, C, T), lambda b: (b, 0, 0)),              # x           f32
        pl.BlockSpec((1, 1, T), lambda b: (b, 0, 0)),              # x_mask      f32
        pl.BlockSpec((1, L, 2 * H, 1), lambda b: (b, 0, 0, 0)),    # bias cols   f32
        pl.BlockSpec((H, half), lambda b: (0, 0)),                 # pre_w       bf16
        pl.BlockSpec((H, 1), lambda b: (0, 0)),                    # pre_b       f32
        pl.BlockSpec((L, 2 * H, K * H), lambda b: (0, 0, 0)),      # fused in_w  bf16
        pl.BlockSpec((L, 2 * H, H), lambda b: (0, 0, 0)),          # rs_w        bf16
        pl.BlockSpec((L, 2 * H, 1), lambda b: (0, 0, 0)),          # rs_b        f32
        pl.BlockSpec((half, H), lambda b: (0, 0)),                 # post_w      bf16
        pl.BlockSpec((half, 1), lambda b: (0, 0)),                 # post_b      f32
    ]
    out_spec = pl.BlockSpec((1, C, T), lambda b: (b, 0, 0))
    return pl.pallas_call(
        kernel,
        out_shape=jax.ShapeDtypeStruct((B, C, T), jnp.float32),
        grid_spec=pltpu.PrefetchScalarGridSpec(
            num_scalar_prefetch=0, grid=(B,),
            in_specs=in_specs, out_specs=out_spec),
        compiler_params=pltpu.CompilerParams(
            # B parallel programs keeps both v7x TensorCores busy (B >= 2 here).
            dimension_semantics=("parallel",),
            vmem_limit_bytes=32 * 1024 * 1024),
    )


def init_flow_params(key, C, H, gin, n_layers, K):
    """Raw f32 parameters in the torch module's layout."""
    half = C // 2
    L = n_layers
    ks = jax.random.split(key, 8)
    rnd = lambda k, s, sc: sc * jax.random.normal(k, s, jnp.float32)
    pre_w = rnd(ks[0], (H, half), 0.3)
    pre_b = rnd(ks[1], (H, 1), 0.1)
    # weight_norm at init is value-identity, so plain random weights match.
    in_w = rnd(ks[2], (L, K, 2 * H, H), 0.08)
    in_b = rnd(ks[3], (L, 2 * H, 1), 0.05)
    cond_w = rnd(ks[4], (L, 2 * H, gin), 0.08)
    cond_b = jnp.zeros((L, 2 * H, 1), jnp.float32)
    rs_w = rnd(ks[5], (L, 2 * H, H), 0.08)
    rs_b = rnd(ks[6], (L, 2 * H, 1), 0.05)
    # Last WN layer only produces skip outputs; zero the (nonexistent) residual
    # rows so the kernel's layer loop stays uniform.
    rs_w = rs_w.at[L - 1, :H].set(0.0)
    rs_b = rs_b.at[L - 1, :H].set(0.0)
    # NOTE: ResidualCouplingLayer.__init__ zero-inits `post`; we use a small
    # nonzero init so the WaveNet hot path affects the output and can be
    # verified numerically against the references.
    post_w = rnd(ks[7], (half, H), 0.05)
    post_b = jnp.zeros((half, 1), jnp.float32)
    return dict(pre_w=pre_w, pre_b=pre_b, in_w=in_w, in_b=in_b,
                cond_w=cond_w, cond_b=cond_b, rs_w=rs_w, rs_b=rs_b,
                post_w=post_w, post_b=post_b)


def pack_flow_params(p, g, L, H, K):
    """Pre-fuse / pre-cast parameters into the kernel's operand layout."""
    bf16 = jnp.bfloat16
    # Fuse the K conv taps: (L, K, 2H, H) -> (L, 2H, K*H); tap k -> cols [k*H,(k+1)*H).
    wf = jnp.transpose(p['in_w'], (0, 2, 1, 3)).reshape(L, 2 * H, K * H)
    # Hoist the time-constant global conditioning (g is (B, gin, 1)) and fold
    # it with the conv + cond biases into a single per-layer (2H, 1) column.
    # NOTE: only valid while g is broadcast over time (as in RVC).
    cond_col = jnp.einsum('loc,bc->blo', p['cond_w'], g[:, :, 0], precision=HIGHEST)
    bias_cols = (cond_col + (p['in_b'] + p['cond_b'])[None, :, :, 0])[..., None]
    return dict(
        bias_cols=bias_cols.astype(jnp.float32),            # (B, L, 2H, 1)
        pre_w=p['pre_w'].astype(bf16), pre_b=p['pre_b'],
        wf=wf.astype(bf16),
        rs_w=p['rs_w'].astype(bf16), rs_b=p['rs_b'],
        post_w=p['post_w'].astype(bf16), post_b=p['post_b'])


def ref_coupling_bf16(x, mask, q, *, half, H, L, K, dil):
    """Pure-JAX mirror of the kernel math (identical bf16 casts and fusion)."""
    bf16 = jnp.bfloat16
    em = lambda w, v: jnp.einsum('oc,bct->bot', w, v,
                                 preferred_element_type=jnp.float32)
    B, _, T = x.shape
    t_idx = jnp.arange(T)
    x0, x1 = x[:, :half], x[:, half:]
    h = (em(q['pre_w'], x0.astype(bf16)) + q['pre_b'][None]) * mask
    cur, skip = h, jnp.zeros_like(h)
    for i in range(L):
        d = dil ** i
        p = d * (K - 1) // 2
        taps = []
        for k in range(K):
            o = k * d - p
            if o == 0:
                taps.append(cur)
            else:
                shifted = jnp.roll(cur, (-o) % T, axis=2)
                valid = (t_idx >= max(0, -o)) & (t_idx < min(T, T - o))
                taps.append(jnp.where(valid[None, None, :], shifted, 0.0))
        taps = jnp.concatenate(taps, axis=1).astype(bf16)
        acc = em(q['wf'][i], taps) + q['bias_cols'][:, i]
        t_act = jnp.tanh(acc[:, :H])
        s_act = 0.5 * (jnp.tanh(0.5 * acc[:, H:]) + 1.0)
        acts = (t_act * s_act).astype(bf16)
        rs = em(q['rs_w'][i], acts) + q['rs_b'][i][None]
        cur = (cur + rs[:, :H]) * mask
        skip = skip + rs[:, H:]
    h_enc = (skip * mask).astype(bf16)
    m = (em(q['post_w'], h_enc) + q['post_b'][None]) * mask
    return jnp.concatenate([x0, m + x1 * mask], axis=1)


def ref_coupling_f32(x, mask, g, p, *, half, H, n_layers, K, dilation_rate):
    """Full-f32 reference with the original (unfused) torch formulation."""
    em = lambda w, v: jnp.einsum('oc,bct->bot', w, v, precision=HIGHEST)
    B, _, T = x.shape
    x0, x1 = x[:, :half], x[:, half:]
    h = (em(p['pre_w'], x0) + p['pre_b'][None]) * mask
    cur, skip = h, jnp.zeros_like(h)
    for i in range(n_layers):
        d = dilation_rate ** i
        pad = d * (K - 1) // 2
        xp = jnp.pad(cur, ((0, 0), (0, 0), (pad, pad)))
        acc = jnp.zeros((B, 2 * H, T), jnp.float32)
        for k in range(K):
            acc = acc + em(p['in_w'][i, k], xp[:, :, k * d:k * d + T])
        acc = acc + p['in_b'][i][None]
        acc = acc + em(p['cond_w'][i], g) + p['cond_b'][i][None]
        acts = jnp.tanh(acc[:, :H]) * jax.nn.sigmoid(acc[:, H:])
        rs = em(p['rs_w'][i], acts) + p['rs_b'][i][None]
        cur = (cur + rs[:, :H]) * mask
        skip = skip + rs[:, H:]
    h_enc = skip * mask
    m = (em(p['post_w'], h_enc) + p['post_b'][None]) * mask
    return jnp.concatenate([x0, m + x1 * mask], axis=1)


if __name__ == "__main__":
    # Small but representative config; T is a multiple of 128 so the lane
    # (time) axis is dense and output stores are unmasked.
    B, C, T = 2, 4, 128
    H, gin = 32, 8
    K, dilation_rate, n_layers, n_flows = 3, 2, 3, 4
    half = C // 2

    key = jax.random.PRNGKey(0)
    kx, kg, *kflows = jax.random.split(key, 2 + n_flows)
    x = jax.random.normal(kx, (B, C, T), jnp.float32)
    # global conditioning, time-constant as in RVC: (B, gin, 1)
    g = jax.random.normal(kg, (B, gin, 1), jnp.float32)
    lengths = jnp.array([T, 3 * T // 4])
    x_mask = (jnp.arange(T)[None, None, :] < lengths[:, None, None]).astype(jnp.float32)

    raw_flows = [init_flow_params(k, C, H, gin, n_layers, K) for k in kflows]
    packed_flows = [pack_flow_params(p, g, n_layers, H, K) for p in raw_flows]

    coupling = make_coupling_call(B, C, T, H, gin, n_layers, K, dilation_rate)

    @jax.jit
    def block_forward(x_in):
        out = x_in
        for q in packed_flows:
            out = coupling(out, x_mask, q['bias_cols'], q['pre_w'], q['pre_b'],
                           q['wf'], q['rs_w'], q['rs_b'], q['post_w'], q['post_b'])
            # Flip module: torch.flip(x, [1]); logdet (== 0) discarded.
            # TODO(synk): fold this fixed channel permutation into the adjacent
            # flows' weights to save one HBM pass per flow.
            out = jnp.flip(out, axis=1)
        return out

    y = jax.block_until_ready(block_forward(x))
    assert y.shape == (B, C, T) and y.dtype == jnp.float32

    # Tight check: pure-JAX mirror of the kernel math (identical bf16 casts).
    ref_b = x
    for q in packed_flows:
        ref_b = ref_coupling_bf16(ref_b, x_mask, q, half=half, H=H,
                                  L=n_layers, K=K, dil=dilation_rate)
        ref_b = jnp.flip(ref_b, axis=1)
    ref_b = jax.block_until_ready(ref_b)
    np.testing.assert_allclose(np.asarray(y), np.asarray(ref_b), rtol=2e-3, atol=2e-3)

    # Loose check: full-f32 reference of the original torch formulation
    # (unfused conv taps, separate conditioning matmul, true sigmoid).
    ref_f = x
    for p in raw_flows:
        ref_f = ref_coupling_f32(ref_f, x_mask, g, p, half=half, H=H,
                                 n_layers=n_layers, K=K, dilation_rate=dilation_rate)
        ref_f = jnp.flip(ref_f, axis=1)
    ref_f = jax.block_until_ready(ref_f)
    np.testing.assert_allclose(np.asarray(y), np.asarray(ref_f), rtol=5e-2, atol=5e-2)

    print("KERNEL_OK")
</pallas_src>

<mosaic_0001>
module attributes {stable_mosaic.version = 11 : i64} {
  func.func @_coupling_kernel(%arg0: i32, %arg1: memref<1x4x128xf32, #tpu.memory_space<vmem>>, %arg2: memref<1x1x128xf32, #tpu.memory_space<vmem>>, %arg3: memref<1x3x64x1xf32, #tpu.memory_space<vmem>>, %arg4: memref<32x2xbf16, #tpu.memory_space<vmem>>, %arg5: memref<32x1xf32, #tpu.memory_space<vmem>>, %arg6: memref<3x64x96xbf16, #tpu.memory_space<vmem>>, %arg7: memref<3x64x32xbf16, #tpu.memory_space<vmem>>, %arg8: memref<3x64x1xf32, #tpu.memory_space<vmem>>, %arg9: memref<2x32xbf16, #tpu.memory_space<vmem>>, %arg10: memref<2x1xf32, #tpu.memory_space<vmem>>, %arg11: memref<1x4x128xf32, #tpu.memory_space<vmem>>) attributes {dimension_semantics = [#tpu.dimension_semantics<parallel>], iteration_bounds = array<i64: 2>, scalar_prefetch = 0 : i64, scratch_operands = 0 : i64, tpu.core_type = #tpu.core_type<tc>, window_params = [{transform_indices = @transform_0, window_bounds = array<i64: 1, 4, 128>}, {transform_indices = @transform_1, window_bounds = array<i64: 1, 1, 128>}, {transform_indices = @transform_2, window_bounds = array<i64: 1, 3, 64, 1>}, {pipeline_mode = #tpu.pipeline_mode<synchronous>, transform_indices = @transform_3, window_bounds = array<i64: 32, 2>}, {pipeline_mode = #tpu.pipeline_mode<synchronous>, transform_indices = @transform_4, window_bounds = array<i64: 32, 1>}, {pipeline_mode = #tpu.pipeline_mode<synchronous>, transform_indices = @transform_5, window_bounds = array<i64: 3, 64, 96>}, {pipeline_mode = #tpu.pipeline_mode<synchronous>, transform_indices = @transform_6, window_bounds = array<i64: 3, 64, 32>}, {pipeline_mode = #tpu.pipeline_mode<synchronous>, transform_indices = @transform_7, window_bounds = array<i64: 3, 64, 1>}, {pipeline_mode = #tpu.pipeline_mode<synchronous>, transform_indices = @transform_8, window_bounds = array<i64: 2, 32>}, {pipeline_mode = #tpu.pipeline_mode<synchronous>, transform_indices = @transform_9, window_bounds = array<i64: 2, 1>}, {transform_indices = @transform_10, window_bounds = array<i64: 1, 4, 128>}]} {
    %c0 = arith.constant 0 : index
    %c0_0 = arith.constant 0 : index
    %c0_1 = arith.constant 0 : index
    %0 = vector.load %arg1[%c0, %c0_0, %c0_1] : memref<1x4x128xf32, #tpu.memory_space<vmem>>, vector<1x4x128xf32>
    %1 = vector.shape_cast %0 : vector<1x4x128xf32> to vector<4x128xf32>
    %c0_2 = arith.constant 0 : index
    %c0_3 = arith.constant 0 : index
    %c0_4 = arith.constant 0 : index
    %2 = vector.load %arg2[%c0_2, %c0_3, %c0_4] : memref<1x1x128xf32, #tpu.memory_space<vmem>>, vector<1x1x128xf32>
    %3 = vector.shape_cast %2 : vector<1x1x128xf32> to vector<1x128xf32>
    %4 = vector.extract_strided_slice %1 {offsets = [0, 0], sizes = [2, 128], strides = [1, 1]} : vector<4x128xf32> to vector<2x128xf32>
    %5 = vector.extract_strided_slice %1 {offsets = [2, 0], sizes = [2, 128], strides = [1, 1]} : vector<4x128xf32> to vector<2x128xf32>
    %c0_5 = arith.constant 0 : index
    %c0_6 = arith.constant 0 : index
    %6 = vector.load %arg4[%c0_5, %c0_6] : memref<32x2xbf16, #tpu.memory_space<vmem>>, vector<32x2xbf16>
    %7 = arith.truncf %4 : vector<2x128xf32> to vector<2x128xbf16>
    %cst = arith.constant dense<0.000000e+00> : vector<32x128xf32>
    %8 = tpu.matmul %6, %7, %cst {dimension_numbers = #tpu.dot_dimension_numbers<[1], [0], [0], [1], [0, 0, 1, 1], [], []>} : vector<32x2xbf16>, vector<2x128xbf16>, vector<32x128xf32> -> vector<32x128xf32>
    %c0_7 = arith.constant 0 : index
    %c0_8 = arith.constant 0 : index
    %9 = vector.load %arg5[%c0_7, %c0_8] : memref<32x1xf32, #tpu.memory_space<vmem>>, vector<32x1xf32>
    %10 = vector.broadcast %9 : vector<32x1xf32> to vector<32x128xf32>
    %11 = arith.addf %8, %10 : vector<32x128xf32>
    %12 = vector.broadcast %3 : vector<1x128xf32> to vector<32x128xf32>
    %13 = arith.mulf %11, %12 : vector<32x128xf32>
    %14 = tpu.iota {dimensions = array<i32: 1>} : vector<32x128xi32>
    %cst_9 = arith.constant 0.000000e+00 : f32
    %15 = vector.broadcast %cst_9 : f32 to vector<32x128xf32>
    %c1_i32 = arith.constant 1 : i32
    %16 = tpu.dynamic_rotate %13 by %c1_i32 dim 1 : vector<32x128xf32>, i32 -> vector<32x128xf32>
    %c1_i32_10 = arith.constant 1 : i32
    %17 = vector.broadcast %c1_i32_10 : i32 to vector<32x128xi32>
    %18 = arith.cmpi sge, %14, %17 : vector<32x128xi32>
    %c128_i32 = arith.constant 128 : i32
    %19 = vector.broadcast %c128_i32 : i32 to vector<32x128xi32>
    %20 = arith.cmpi slt, %14, %19 : vector<32x128xi32>
    %21 = arith.andi %18, %20 : vector<32x128xi1>
    %cst_11 = arith.constant 0.000000e+00 : f32
    %22 = vector.broadcast %cst_11 : f32 to vector<32x128xf32>
    %23 = arith.select %21, %16, %22 : vector<32x128xi1>, vector<32x128xf32>
    %c127_i32 = arith.constant 127 : i32
    %24 = tpu.dynamic_rotate %13 by %c127_i32 dim 1 : vector<32x128xf32>, i32 -> vector<32x128xf32>
    %c0_i32 = arith.constant 0 : i32
    %25 = vector.broadcast %c0_i32 : i32 to vector<32x128xi32>
    %26 = arith.cmpi sge, %14, %25 : vector<32x128xi32>
    %c127_i32_12 = arith.constant 127 : i32
    %27 = vector.broadcast %c127_i32_12 : i32 to vector<32x128xi32>
    %28 = arith.cmpi slt, %14, %27 : vector<32x128xi32>
    %29 = arith.andi %26, %28 : vector<32x128xi1>
    %cst_13 = arith.constant 0.000000e+00 : f32
    %30 = vector.broadcast %cst_13 : f32 to vector<32x128xf32>
    %31 = arith.select %29, %24, %30 : vector<32x128xi1>, vector<32x128xf32>
    %32 = tpu.concatenate %23, %13, %31 in 0 : vector<32x128xf32>, vector<32x128xf32>, vector<32x128xf32> -> vector<96x128xf32>
    %33 = arith.truncf %32 : vector<96x128xf32> to vector<96x128xbf16>
    %c0_14 = arith.constant 0 : index
    %c0_15 = arith.constant 0 : index
    %c0_16 = arith.constant 0 : index
    %34 = vector.load %arg6[%c0_14, %c0_15, %c0_16] : memref<3x64x96xbf16, #tpu.memory_space<vmem>>, vector<1x64x96xbf16>
    %35 = vector.shape_cast %34 : vector<1x64x96xbf16> to vector<64x96xbf16>
    %cst_17 = arith.constant dense<0.000000e+00> : vector<64x128xf32>
    %36 = tpu.matmul %35, %33, %cst_17 {dimension_numbers = #tpu.dot_dimension_numbers<[1], [0], [0], [1], [0, 0, 1, 1], [], []>} : vector<64x96xbf16>, vector<96x128xbf16>, vector<64x128xf32> -> vector<64x128xf32>
    %c0_18 = arith.constant 0 : index
    %c0_19 = arith.constant 0 : index
    %c0_20 = arith.constant 0 : index
    %c0_21 = arith.constant 0 : index
    %37 = vector.load %arg3[%c0_18, %c0_19, %c0_20, %c0_21] : memref<1x3x64x1xf32, #tpu.memory_space<vmem>>, vector<1x1x64x1xf32>
    %38 = vector.shape_cast %37 : vector<1x1x64x1xf32> to vector<64x1xf32>
    %39 = vector.broadcast %38 : vector<64x1xf32> to vector<64x128xf32>
    %40 = arith.addf %36, %39 : vector<64x128xf32>
    %41 = vector.extract_strided_slice %40 {offsets = [0, 0], sizes = [32, 128], strides = [1, 1]} : vector<64x128xf32> to vector<32x128xf32>
    %42 = math.tanh %41 : vector<32x128xf32>
    %43 = vector.extract_strided_slice %40 {offsets = [32, 0], sizes = [32, 128], strides = [1, 1]} : vector<64x128xf32> to vector<32x128xf32>
    %cst_22 = arith.constant 5.000000e-01 : f32
    %44 = vector.broadcast %cst_22 : f32 to vector<32x128xf32>
    %45 = arith.mulf %44, %43 : vector<32x128xf32>
    %46 = math.tanh %45 : vector<32x128xf32>
    %cst_23 = arith.constant 1.000000e+00 : f32
    %47 = vector.broadcast %cst_23 : f32 to vector<32x128xf32>
    %48 = arith.addf %46, %47 : vector<32x128xf32>
    %cst_24 = arith.constant 5.000000e-01 : f32
    %49 = vector.broadcast %cst_24 : f32 to vector<32x128xf32>
    %50 = arith.mulf %49, %48 : vector<32x128xf32>
    %51 = arith.mulf %42, %50 : vector<32x128xf32>
    %52 = arith.truncf %51 : vector<32x128xf32> to vector<32x128xbf16>
    %c0_25 = arith.constant 0 : index
    %c0_26 = arith.constant 0 : index
    %c0_27 = arith.constant 0 : index
    %53 = vector.load %arg7[%c0_25, %c0_26, %c0_27] : memref<3x64x32xbf16, #tpu.memory_space<vmem>>, vector<1x64x32xbf16>
    %54 = vector.shape_cast %53 : vector<1x64x32xbf16> to vector<64x32xbf16>
    %cst_28 = arith.constant dense<0.000000e+00> : vector<64x128xf32>
    %55 = tpu.matmul %54, %52, %cst_28 {dimension_numbers = #tpu.dot_dimension_numbers<[1], [0], [0], [1], [0, 0, 1, 1], [], []>} : vector<64x32xbf16>, vector<32x128xbf16>, vector<64x128xf32> -> vector<64x128xf32>
    %c0_29 = arith.constant 0 : index
    %c0_30 = arith.constant 0 : index
    %c0_31 = arith.constant 0 : index
    %56 = vector.load %arg8[%c0_29, %c0_30, %c0_31] : memref<3x64x1xf32, #tpu.memory_space<vmem>>, vector<1x64x1xf32>
    %57 = vector.shape_cast %56 : vector<1x64x1xf32> to vector<64x1xf32>
    %58 = vector.broadcast %57 : vector<64x1xf32> to vector<64x128xf32>
    %59 = arith.addf %55, %58 : vector<64x128xf32>
    %60 = vector.extract_strided_slice %59 {offsets = [0, 0], sizes = [32, 128], strides = [1, 1]} : vector<64x128xf32> to vector<32x128xf32>
    %61 = arith.addf %13, %60 : vector<32x128xf32>
    %62 = vector.broadcast %3 : vector<1x128xf32> to vector<32x128xf32>
    %63 = arith.mulf %61, %62 : vector<32x128xf32>
    %64 = vector.extract_strided_slice %59 {offsets = [32, 0], sizes = [32, 128], strides = [1, 1]} : vector<64x128xf32> to vector<32x128xf32>
    %65 = arith.addf %15, %64 : vector<32x128xf32>
    %c2_i32 = arith.constant 2 : i32
    %66 = tpu.dynamic_rotate %63 by %c2_i32 dim 1 : vector<32x128xf32>, i32 -> vector<32x128xf32>
    %c2_i32_32 = arith.constant 2 : i32
    %67 = vector.broadcast %c2_i32_32 : i32 to vector<32x128xi32>
    %68 = arith.cmpi sge, %14, %67 : vector<32x128xi32>
    %c128_i32_33 = arith.constant 128 : i32
    %69 = vector.broadcast %c128_i32_33 : i32 to vector<32x128xi32>
    %70 = arith.cmpi slt, %14, %69 : vector<32x128xi32>
    %71 = arith.andi %68, %70 : vector<32x128xi1>
    %cst_34 = arith.constant 0.000000e+00 : f32
    %72 = vector.broadcast %cst_34 : f32 to vector<32x128xf32>
    %73 = arith.select %71, %66, %72 : vector<32x128xi1>, vector<32x128xf32>
    %c126_i32 = arith.constant 126 : i32
    %74 = tpu.dynamic_rotate %63 by %c126_i32 dim 1 : vector<32x128xf32>, i32 -> vector<32x128xf32>
    %c0_i32_35 = arith.constant 0 : i32
    %75 = vector.broadcast %c0_i32_35 : i32 to vector<32x128xi32>
    %76 = arith.cmpi sge, %14, %75 : vector<32x128xi32>
    %c126_i32_36 = arith.constant 126 : i32
    %77 = vector.broadcast %c126_i32_36 : i32 to vector<32x128xi32>
    %78 = arith.cmpi slt, %14, %77 : vector<32x128xi32>
    %79 = arith.andi %76, %78 : vector<32x128xi1>
    %cst_37 = arith.constant 0.000000e+00 : f32
    %80 = vector.broadcast %cst_37 : f32 to vector<32x128xf32>
    %81 = arith.select %79, %74, %80 : vector<32x128xi1>, vector<32x128xf32>
    %82 = tpu.concatenate %73, %63, %81 in 0 : vector<32x128xf32>, vector<32x128xf32>, vector<32x128xf32> -> vector<96x128xf32>
    %83 = arith.truncf %82 : vector<96x128xf32> to vector<96x128xbf16>
    %c1 = arith.constant 1 : index
    %c0_38 = arith.constant 0 : index
    %c0_39 = arith.constant 0 : index
    %84 = vector.load %arg6[%c1, %c0_38, %c0_39] : memref<3x64x96xbf16, #tpu.memory_space<vmem>>, vector<1x64x96xbf16>
    %85 = vector.shape_cast %84 : vector<1x64x96xbf16> to vector<64x96xbf16>
    %cst_40 = arith.constant dense<0.000000e+00> : vector<64x128xf32>
    %86 = tpu.matmul %85, %83, %cst_40 {dimension_numbers = #tpu.dot_dimension_numbers<[1], [0], [0], [1], [0, 0, 1, 1], [], []>} : vector<64x96xbf16>, vector<96x128xbf16>, vector<64x128xf32> -> vector<64x128xf32>
    %c0_41 = arith.constant 0 : index
    %c1_42 = arith.constant 1 : index
    %c0_43 = arith.constant 0 : index
    %c0_44 = arith.constant 0 : index
    %87 = vector.load %arg3[%c0_41, %c1_42, %c0_43, %c0_44] : memref<1x3x64x1xf32, #tpu.memory_space<vmem>>, vector<1x1x64x1xf32>
    %88 = vector.shape_cast %87 : vector<1x1x64x1xf32> to vector<64x1xf32>
    %89 = vector.broadcast %88 : vector<64x1xf32> to vector<64x128xf32>
    %90 = arith.addf %86, %89 : vector<64x128xf32>
    %91 = vector.extract_strided_slice %90 {offsets = [0, 0], sizes = [32, 128], strides = [1, 1]} : vector<64x128xf32> to vector<32x128xf32>
    %92 = math.tanh %91 : vector<32x128xf32>
    %93 = vector.extract_strided_slice %90 {offsets = [32, 0], sizes = [32, 128], strides = [1, 1]} : vector<64x128xf32> to vector<32x128xf32>
    %cst_45 = arith.constant 5.000000e-01 : f32
    %94 = vector.broadcast %cst_45 : f32 to vector<32x128xf32>
    %95 = arith.mulf %94, %93 : vector<32x128xf32>
    %96 = math.tanh %95 : vector<32x128xf32>
    %cst_46 = arith.constant 1.000000e+00 : f32
    %97 = vector.broadcast %cst_46 : f32 to vector<32x128xf32>
    %98 = arith.addf %96, %97 : vector<32x128xf32>
    %cst_47 = arith.constant 5.000000e-01 : f32
    %99 = vector.broadcast %cst_47 : f32 to vector<32x128xf32>
    %100 = arith.mulf %99, %98 : vector<32x128xf32>
    %101 = arith.mulf %92, %100 : vector<32x128xf32>
    %102 = arith.truncf %101 : vector<32x128xf32> to vector<32x128xbf16>
    %c1_48 = arith.constant 1 : index
    %c0_49 = arith.constant 0 : index
    %c0_50 = arith.constant 0 : index
    %103 = vector.load %arg7[%c1_48, %c0_49, %c0_50] : memref<3x64x32xbf16, #tpu.memory_space<vmem>>, vector<1x64x32xbf16>
    %104 = vector.shape_cast %103 : vector<1x64x32xbf16> to vector<64x32xbf16>
    %cst_51 = arith.constant dense<0.000000e+00> : vector<64x128xf32>
    %105 = tpu.matmul %104, %102, %cst_51 {dimension_numbers = #tpu.dot_dimension_numbers<[1], [0], [0], [1], [0, 0, 1, 1], [], []>} : vector<64x32xbf16>, vector<32x128xbf16>, vector<64x128xf32> -> vector<64x128xf32>
    %c1_52 = arith.constant 1 : index
    %c0_53 = arith.constant 0 : index
    %c0_54 = arith.constant 0 : index
    %106 = vector.load %arg8[%c1_52, %c0_53, %c0_54] : memref<3x64x1xf32, #tpu.memory_space<vmem>>, vector<1x64x1xf32>
    %107 = vector.shape_cast %106 : vector<1x64x1xf32> to vector<64x1xf32>
    %108 = vector.broadcast %107 : vector<64x1xf32> to vector<64x128xf32>
    %109 = arith.addf %105, %108 : vector<64x128xf32>
    %110 = vector.extract_strided_slice %109 {offsets = [0, 0], sizes = [32, 128], strides = [1, 1]} : vector<64x128xf32> to vector<32x128xf32>
    %111 = arith.addf %63, %110 : vector<32x128xf32>
    %112 = vector.broadcast %3 : vector<1x128xf32> to vector<32x128xf32>
    %113 = arith.mulf %111, %112 : vector<32x128xf32>
    %114 = vector.extract_strided_slice %109 {offsets = [32, 0], sizes = [32, 128], strides = [1, 1]} : vector<64x128xf32> to vector<32x128xf32>
    %115 = arith.addf %65, %114 : vector<32x128xf32>
    %c4_i32 = arith.constant 4 : i32
    %116 = tpu.dynamic_rotate %113 by %c4_i32 dim 1 : vector<32x128xf32>, i32 -> vector<32x128xf32>
    %c4_i32_55 = arith.constant 4 : i32
    %117 = vector.broadcast %c4_i32_55 : i32 to vector<32x128xi32>
    %118 = arith.cmpi sge, %14, %117 : vector<32x128xi32>
    %c128_i32_56 = arith.constant 128 : i32
    %119 = vector.broadcast %c128_i32_56 : i32 to vector<32x128xi32>
    %120 = arith.cmpi slt, %14, %119 : vector<32x128xi32>
    %121 = arith.andi %118, %120 : vector<32x128xi1>
    %cst_57 = arith.constant 0.000000e+00 : f32
    %122 = vector.broadcast %cst_57 : f32 to vector<32x128xf32>
    %123 = arith.select %121, %116, %122 : vector<32x128xi1>, vector<32x128xf32>
    %c124_i32 = arith.constant 124 : i32
    %124 = tpu.dynamic_rotate %113 by %c124_i32 dim 1 : vector<32x128xf32>, i32 -> vector<32x128xf32>
    %c0_i32_58 = arith.constant 0 : i32
    %125 = vector.broadcast %c0_i32_58 : i32 to vector<32x128xi32>
    %126 = arith.cmpi sge, %14, %125 : vector<32x128xi32>
    %c124_i32_59 = arith.constant 124 : i32
    %127 = vector.broadcast %c124_i32_59 : i32 to vector<32x128xi32>
    %128 = arith.cmpi slt, %14, %127 : vector<32x128xi32>
    %129 = arith.andi %126, %128 : vector<32x128xi1>
    %cst_60 = arith.constant 0.000000e+00 : f32
    %130 = vector.broadcast %cst_60 : f32 to vector<32x128xf32>
    %131 = arith.select %129, %124, %130 : vector<32x128xi1>, vector<32x128xf32>
    %132 = tpu.concatenate %123, %113, %131 in 0 : vector<32x128xf32>, vector<32x128xf32>, vector<32x128xf32> -> vector<96x128xf32>
    %133 = arith.truncf %132 : vector<96x128xf32> to vector<96x128xbf16>
    %c2 = arith.constant 2 : index
    %c0_61 = arith.constant 0 : index
    %c0_62 = arith.constant 0 : index
    %134 = vector.load %arg6[%c2, %c0_61, %c0_62] : memref<3x64x96xbf16, #tpu.memory_space<vmem>>, vector<1x64x96xbf16>
    %135 = vector.shape_cast %134 : vector<1x64x96xbf16> to vector<64x96xbf16>
    %cst_63 = arith.constant dense<0.000000e+00> : vector<64x128xf32>
    %136 = tpu.matmul %135, %133, %cst_63 {dimension_numbers = #tpu.dot_dimension_numbers<[1], [0], [0], [1], [0, 0, 1, 1], [], []>} : vector<64x96xbf16>, vector<96x128xbf16>, vector<64x128xf32> -> vector<64x128xf32>
    %c0_64 = arith.constant 0 : index
    %c2_65 = arith.constant 2 : index
    %c0_66 = arith.constant 0 : index
    %c0_67 = arith.constant 0 : index
    %137 = vector.load %arg3[%c0_64, %c2_65, %c0_66, %c0_67] : memref<1x3x64x1xf32, #tpu.memory_space<vmem>>, vector<1x1x64x1xf32>
    %138 = vector.shape_cast %137 : vector<1x1x64x1xf32> to vector<64x1xf32>
    %139 = vector.broadcast %138 : vector<64x1xf32> to vector<64x128xf32>
    %140 = arith.addf %136, %139 : vector<64x128xf32>
    %141 = vector.extract_strided_slice %140 {offsets = [0, 0], sizes = [32, 128], strides = [1, 1]} : vector<64x128xf32> to vector<32x128xf32>
    %142 = math.tanh %141 : vector<32x128xf32>
    %143 = vector.extract_strided_slice %140 {offsets = [32, 0], sizes = [32, 128], strides = [1, 1]} : vector<64x128xf32> to vector<32x128xf32>
    %cst_68 = arith.constant 5.000000e-01 : f32
    %144 = vector.broadcast %cst_68 : f32 to vector<32x128xf32>
    %145 = arith.mulf %144, %143 : vector<32x128xf32>
    %146 = math.tanh %145 : vector<32x128xf32>
    %cst_69 = arith.constant 1.000000e+00 : f32
    %147 = vector.broadcast %cst_69 : f32 to vector<32x128xf32>
    %148 = arith.addf %146, %147 : vector<32x128xf32>
    %cst_70 = arith.constant 5.000000e-01 : f32
    %149 = vector.broadcast %cst_70 : f32 to vector<32x128xf32>
    %150 = arith.mulf %149, %148 : vector<32x128xf32>
    %151 = arith.mulf %142, %150 : vector<32x128xf32>
    %152 = arith.truncf %151 : vector<32x128xf32> to vector<32x128xbf16>
    %c2_71 = arith.constant 2 : index
    %c0_72 = arith.constant 0 : index
    %c0_73 = arith.constant 0 : index
    %153 = vector.load %arg7[%c2_71, %c0_72, %c0_73] : memref<3x64x32xbf16, #tpu.memory_space<vmem>>, vector<1x64x32xbf16>
    %154 = vector.shape_cast %153 : vector<1x64x32xbf16> to vector<64x32xbf16>
    %cst_74 = arith.constant dense<0.000000e+00> : vector<64x128xf32>
    %155 = tpu.matmul %154, %152, %cst_74 {dimension_numbers = #tpu.dot_dimension_numbers<[1], [0], [0], [1], [0, 0, 1, 1], [], []>} : vector<64x32xbf16>, vector<32x128xbf16>, vector<64x128xf32> -> vector<64x128xf32>
    %c2_75 = arith.constant 2 : index
    %c0_76 = arith.constant 0 : index
    %c0_77 = arith.constant 0 : index
    %156 = vector.load %arg8[%c2_75, %c0_76, %c0_77] : memref<3x64x1xf32, #tpu.memory_space<vmem>>, vector<1x64x1xf32>
    %157 = vector.shape_cast %156 : vector<1x64x1xf32> to vector<64x1xf32>
    %158 = vector.broadcast %157 : vector<64x1xf32> to vector<64x128xf32>
    %159 = arith.addf %155, %158 : vector<64x128xf32>
    %160 = vector.extract_strided_slice %159 {offsets = [32, 0], sizes = [32, 128], strides = [1, 1]} : vector<64x128xf32> to vector<32x128xf32>
    %161 = arith.addf %115, %160 : vector<32x128xf32>
    %162 = vector.broadcast %3 : vector<1x128xf32> to vector<32x128xf32>
    %163 = arith.mulf %161, %162 : vector<32x128xf32>
    %164 = arith.truncf %163 : vector<32x128xf32> to vector<32x128xbf16>
    %c0_78 = arith.constant 0 : index
    %c0_79 = arith.constant 0 : index
    %165 = vector.load %arg9[%c0_78, %c0_79] : memref<2x32xbf16, #tpu.memory_space<vmem>>, vector<2x32xbf16>
    %cst_80 = arith.constant dense<0.000000e+00> : vector<2x128xf32>
    %166 = tpu.matmul %165, %164, %cst_80 {dimension_numbers = #tpu.dot_dimension_numbers<[1], [0], [0], [1], [0, 0, 1, 1], [], []>} : vector<2x32xbf16>, vector<32x128xbf16>, vector<2x128xf32> -> vector<2x128xf32>
    %c0_81 = arith.constant 0 : index
    %c0_82 = arith.constant 0 : index
    %167 = vector.load %arg10[%c0_81, %c0_82] : memref<2x1xf32, #tpu.memory_space<vmem>>, vector<2x1xf32>
    %168 = vector.broadcast %167 : vector<2x1xf32> to vector<2x128xf32>
    %169 = arith.addf %166, %168 : vector<2x128xf32>
    %170 = vector.broadcast %3 : vector<1x128xf32> to vector<2x128xf32>
    %171 = arith.mulf %169, %170 : vector<2x128xf32>
    %c0_83 = arith.constant 0 : index
    %c0_84 = arith.constant 0 : index
    %c0_85 = arith.constant 0 : index
    %172 = vector.load %arg11[%c0_83, %c0_84, %c0_85] : memref<1x4x128xf32, #tpu.memory_space<vmem>>, vector<1x2x128xf32>
    %173 = vector.shape_cast %172 : vector<1x2x128xf32> to vector<2x128xf32>
    %174 = vector.shape_cast %4 : vector<2x128xf32> to vector<1x2x128xf32>
    tpu.vector_store %arg11[%c0_83, %c0_84, %c0_85], %174 {strides = array<i32>} : memref<1x4x128xf32, #tpu.memory_space<vmem>>, vector<1x2x128xf32>,
    %175 = vector.broadcast %3 : vector<1x128xf32> to vector<2x128xf32>
    %176 = arith.mulf %5, %175 : vector<2x128xf32>
    %177 = arith.addf %171, %176 : vector<2x128xf32>
    %c0_86 = arith.constant 0 : index
    %c2_87 = arith.constant 2 : index
    %c0_88 = arith.constant 0 : index
    %178 = vector.load %arg11[%c0_86, %c2_87, %c0_88] : memref<1x4x128xf32, #tpu.memory_space<vmem>>, vector<1x2x128xf32>
    %179 = vector.shape_cast %178 : vector<1x2x128xf32> to vector<2x128xf32>
    %180 = vector.shape_cast %177 : vector<2x128xf32> to vector<1x2x128xf32>
    tpu.vector_store %arg11[%c0_86, %c2_87, %c0_88], %180 {strides = array<i32>} : memref<1x4x128xf32, #tpu.memory_space<vmem>>, vector<1x2x128xf32>,
    return
  }
  func.func @transform_0(%arg0: i32) -> (i32, i32, i32) {
    %c0_i32 = arith.constant 0 : i32
    %c0_i32_0 = arith.constant 0 : i32
    %c0_i32_1 = arith.constant 0 : i32
    return %arg0, %c0_i32, %c0_i32_0 : i32, i32, i32
  }
  func.func @transform_1(%arg0: i32) -> (i32, i32, i32) {
    %c0_i32 = arith.constant 0 : i32
    %c0_i32_0 = arith.constant 0 : i32
    %c0_i32_1 = arith.constant 0 : i32
    return %arg0, %c0_i32, %c0_i32_0 : i32, i32, i32
  }
  func.func @transform_2(%arg0: i32) -> (i32, i32, i32, i32) {
    %c0_i32 = arith.constant 0 : i32
    %c0_i32_0 = arith.constant 0 : i32
    %c0_i32_1 = arith.constant 0 : i32
    %c0_i32_2 = arith.constant 0 : i32
    return %arg0, %c0_i32, %c0_i32_0, %c0_i32_1 : i32, i32, i32, i32
  }
  func.func @transform_3(%arg0: i32) -> (i32, i32) {
    %c0_i32 = arith.constant 0 : i32
    %c0_i32_0 = arith.constant 0 : i32
    %c0_i32_1 = arith.constant 0 : i32
    return %c0_i32, %c0_i32_0 : i32, i32
  }
  func.func @transform_4(%arg0: i32) -> (i32, i32) {
    %c0_i32 = arith.constant 0 : i32
    %c0_i32_0 = arith.constant 0 : i32
    %c0_i32_1 = arith.constant 0 : i32
    return %c0_i32, %c0_i32_0 : i32, i32
  }
  func.func @transform_5(%arg0: i32) -> (i32, i32, i32) {
    %c0_i32 = arith.constant 0 : i32
    %c0_i32_0 = arith.constant 0 : i32
    %c0_i32_1 = arith.constant 0 : i32
    %c0_i32_2 = arith.constant 0 : i32
    return %c0_i32, %c0_i32_0, %c0_i32_1 : i32, i32, i32
  }
  func.func @transform_6(%arg0: i32) -> (i32, i32, i32) {
    %c0_i32 = arith.constant 0 : i32
    %c0_i32_0 = arith.constant 0 : i32
    %c0_i32_1 = arith.constant 0 : i32
    %c0_i32_2 = arith.constant 0 : i32
    return %c0_i32, %c0_i32_0, %c0_i32_1 : i32, i32, i32
  }
  func.func @transform_7(%arg0: i32) -> (i32, i32, i32) {
    %c0_i32 = arith.constant 0 : i32
    %c0_i32_0 = arith.constant 0 : i32
    %c0_i32_1 = arith.constant 0 : i32
    %c0_i32_2 = arith.constant 0 : i32
    return %c0_i32, %c0_i32_0, %c0_i32_1 : i32, i32, i32
  }
  func.func @transform_8(%arg0: i32) -> (i32, i32) {
    %c0_i32 = arith.constant 0 : i32
    %c0_i32_0 = arith.constant 0 : i32
    %c0_i32_1 = arith.constant 0 : i32
    return %c0_i32, %c0_i32_0 : i32, i32
  }
  func.func @transform_9(%arg0: i32) -> (i32, i32) {
    %c0_i32 = arith.constant 0 : i32
    %c0_i32_0 = arith.constant 0 : i32
    %c0_i32_1 = arith.constant 0 : i32
    return %c0_i32, %c0_i32_0 : i32, i32
  }
  func.func @transform_10(%arg0: i32) -> (i32, i32, i32) {
    %c0_i32 = arith.constant 0 : i32
    %c0_i32_0 = arith.constant 0 : i32
    %c0_i32_1 = arith.constant 0 : i32
    return %arg0, %c0_i32, %c0_i32_0 : i32, i32, i32
  }
}

module attributes {stable_mosaic.version = 11 : i64} {
  func.func @_coupling_kernel(%arg0: i32, %arg1: memref<1x4x128xf32, #tpu.memory_space<vmem>>, %arg2: memref<1x1x128xf32, #tpu.memory_space<vmem>>, %arg3: memref<1x3x64x1xf32, #tpu.memory_space<vmem>>, %arg4: memref<32x2xbf16, #tpu.memory_space<vmem>>, %arg5: memref<32x1xf32, #tpu.memory_space<vmem>>, %arg6: memref<3x64x96xbf16, #tpu.memory_space<vmem>>, %arg7: memref<3x64x32xbf16, #tpu.memory_space<vmem>>, %arg8: memref<3x64x1xf32, #tpu.memory_space<vmem>>, %arg9: memref<2x32xbf16, #tpu.memory_space<vmem>>, %arg10: memref<2x1xf32, #tpu.memory_space<vmem>>, %arg11: memref<1x4x128xf32, #tpu.memory_space<vmem>>) attributes {dimension_semantics = [#tpu.dimension_semantics<parallel>], iteration_bounds = array<i64: 2>, scalar_prefetch = 0 : i64, scratch_operands = 0 : i64, tpu.core_type = #tpu.core_type<tc>, window_params = [{transform_indices = @transform_0, window_bounds = array<i64: 1, 4, 128>}, {transform_indices = @transform_1, window_bounds = array<i64: 1, 1, 128>}, {transform_indices = @transform_2, window_bounds = array<i64: 1, 3, 64, 1>}, {pipeline_mode = #tpu.pipeline_mode<synchronous>, transform_indices = @transform_3, window_bounds = array<i64: 32, 2>}, {pipeline_mode = #tpu.pipeline_mode<synchronous>, transform_indices = @transform_4, window_bounds = array<i64: 32, 1>}, {pipeline_mode = #tpu.pipeline_mode<synchronous>, transform_indices = @transform_5, window_bounds = array<i64: 3, 64, 96>}, {pipeline_mode = #tpu.pipeline_mode<synchronous>, transform_indices = @transform_6, window_bounds = array<i64: 3, 64, 32>}, {pipeline_mode = #tpu.pipeline_mode<synchronous>, transform_indices = @transform_7, window_bounds = array<i64: 3, 64, 1>}, {pipeline_mode = #tpu.pipeline_mode<synchronous>, transform_indices = @transform_8, window_bounds = array<i64: 2, 32>}, {pipeline_mode = #tpu.pipeline_mode<synchronous>, transform_indices = @transform_9, window_bounds = array<i64: 2, 1>}, {transform_indices = @transform_10, window_bounds = array<i64: 1, 4, 128>}]} {
    %c0 = arith.constant 0 : index
    %c0_0 = arith.constant 0 : index
    %c0_1 = arith.constant 0 : index
    %0 = vector.load %arg1[%c0, %c0_0, %c0_1] : memref<1x4x128xf32, #tpu.memory_space<vmem>>, vector<1x4x128xf32>
    %1 = vector.shape_cast %0 : vector<1x4x128xf32> to vector<4x128xf32>
    %c0_2 = arith.constant 0 : index
    %c0_3 = arith.constant 0 : index
    %c0_4 = arith.constant 0 : index
    %2 = vector.load %arg2[%c0_2, %c0_3, %c0_4] : memref<1x1x128xf32, #tpu.memory_space<vmem>>, vector<1x1x128xf32>
    %3 = vector.shape_cast %2 : vector<1x1x128xf32> to vector<1x128xf32>
    %4 = vector.extract_strided_slice %1 {offsets = [0, 0], sizes = [2, 128], strides = [1, 1]} : vector<4x128xf32> to vector<2x128xf32>
    %5 = vector.extract_strided_slice %1 {offsets = [2, 0], sizes = [2, 128], strides = [1, 1]} : vector<4x128xf32> to vector<2x128xf32>
    %c0_5 = arith.constant 0 : index
    %c0_6 = arith.constant 0 : index
    %6 = vector.load %arg4[%c0_5, %c0_6] : memref<32x2xbf16, #tpu.memory_space<vmem>>, vector<32x2xbf16>
    %7 = arith.truncf %4 : vector<2x128xf32> to vector<2x128xbf16>
    %cst = arith.constant dense<0.000000e+00> : vector<32x128xf32>
    %8 = tpu.matmul %6, %7, %cst {dimension_numbers = #tpu.dot_dimension_numbers<[1], [0], [0], [1], [0, 0, 1, 1], [], []>} : vector<32x2xbf16>, vector<2x128xbf16>, vector<32x128xf32> -> vector<32x128xf32>
    %c0_7 = arith.constant 0 : index
    %c0_8 = arith.constant 0 : index
    %9 = vector.load %arg5[%c0_7, %c0_8] : memref<32x1xf32, #tpu.memory_space<vmem>>, vector<32x1xf32>
    %10 = vector.broadcast %9 : vector<32x1xf32> to vector<32x128xf32>
    %11 = arith.addf %8, %10 : vector<32x128xf32>
    %12 = vector.broadcast %3 : vector<1x128xf32> to vector<32x128xf32>
    %13 = arith.mulf %11, %12 : vector<32x128xf32>
    %14 = tpu.iota {dimensions = array<i32: 1>} : vector<32x128xi32>
    %cst_9 = arith.constant 0.000000e+00 : f32
    %15 = vector.broadcast %cst_9 : f32 to vector<32x128xf32>
    %c1_i32 = arith.constant 1 : i32
    %16 = tpu.dynamic_rotate %13 by %c1_i32 dim 1 : vector<32x128xf32>, i32 -> vector<32x128xf32>
    %c1_i32_10 = arith.constant 1 : i32
    %17 = vector.broadcast %c1_i32_10 : i32 to vector<32x128xi32>
    %18 = arith.cmpi sge, %14, %17 : vector<32x128xi32>
    %c128_i32 = arith.constant 128 : i32
    %19 = vector.broadcast %c128_i32 : i32 to vector<32x128xi32>
    %20 = arith.cmpi slt, %14, %19 : vector<32x128xi32>
    %21 = arith.andi %18, %20 : vector<32x128xi1>
    %cst_11 = arith.constant 0.000000e+00 : f32
    %22 = vector.broadcast %cst_11 : f32 to vector<32x128xf32>
    %23 = arith.select %21, %16, %22 : vector<32x128xi1>, vector<32x128xf32>
    %c127_i32 = arith.constant 127 : i32
    %24 = tpu.dynamic_rotate %13 by %c127_i32 dim 1 : vector<32x128xf32>, i32 -> vector<32x128xf32>
    %c0_i32 = arith.constant 0 : i32
    %25 = vector.broadcast %c0_i32 : i32 to vector<32x128xi32>
    %26 = arith.cmpi sge, %14, %25 : vector<32x128xi32>
    %c127_i32_12 = arith.constant 127 : i32
    %27 = vector.broadcast %c127_i32_12 : i32 to vector<32x128xi32>
    %28 = arith.cmpi slt, %14, %27 : vector<32x128xi32>
    %29 = arith.andi %26, %28 : vector<32x128xi1>
    %cst_13 = arith.constant 0.000000e+00 : f32
    %30 = vector.broadcast %cst_13 : f32 to vector<32x128xf32>
    %31 = arith.select %29, %24, %30 : vector<32x128xi1>, vector<32x128xf32>
    %32 = tpu.concatenate %23, %13, %31 in 0 : vector<32x128xf32>, vector<32x128xf32>, vector<32x128xf32> -> vector<96x128xf32>
    %33 = arith.truncf %32 : vector<96x128xf32> to vector<96x128xbf16>
    %c0_14 = arith.constant 0 : index
    %c0_15 = arith.constant 0 : index
    %c0_16 = arith.constant 0 : index
    %34 = vector.load %arg6[%c0_14, %c0_15, %c0_16] : memref<3x64x96xbf16, #tpu.memory_space<vmem>>, vector<1x64x96xbf16>
    %35 = vector.shape_cast %34 : vector<1x64x96xbf16> to vector<64x96xbf16>
    %cst_17 = arith.constant dense<0.000000e+00> : vector<64x128xf32>
    %36 = tpu.matmul %35, %33, %cst_17 {dimension_numbers = #tpu.dot_dimension_numbers<[1], [0], [0], [1], [0, 0, 1, 1], [], []>} : vector<64x96xbf16>, vector<96x128xbf16>, vector<64x128xf32> -> vector<64x128xf32>
    %c0_18 = arith.constant 0 : index
    %c0_19 = arith.constant 0 : index
    %c0_20 = arith.constant 0 : index
    %c0_21 = arith.constant 0 : index
    %37 = vector.load %arg3[%c0_18, %c0_19, %c0_20, %c0_21] : memref<1x3x64x1xf32, #tpu.memory_space<vmem>>, vector<1x1x64x1xf32>
    %38 = vector.shape_cast %37 : vector<1x1x64x1xf32> to vector<64x1xf32>
    %39 = vector.broadcast %38 : vector<64x1xf32> to vector<64x128xf32>
    %40 = arith.addf %36, %39 : vector<64x128xf32>
    %41 = vector.extract_strided_slice %40 {offsets = [0, 0], sizes = [32, 128], strides = [1, 1]} : vector<64x128xf32> to vector<32x128xf32>
    %42 = math.tanh %41 : vector<32x128xf32>
    %43 = vector.extract_strided_slice %40 {offsets = [32, 0], sizes = [32, 128], strides = [1, 1]} : vector<64x128xf32> to vector<32x128xf32>
    %cst_22 = arith.constant 5.000000e-01 : f32
    %44 = vector.broadcast %cst_22 : f32 to vector<32x128xf32>
    %45 = arith.mulf %44, %43 : vector<32x128xf32>
    %46 = math.tanh %45 : vector<32x128xf32>
    %cst_23 = arith.constant 1.000000e+00 : f32
    %47 = vector.broadcast %cst_23 : f32 to vector<32x128xf32>
    %48 = arith.addf %46, %47 : vector<32x128xf32>
    %cst_24 = arith.constant 5.000000e-01 : f32
    %49 = vector.broadcast %cst_24 : f32 to vector<32x128xf32>
    %50 = arith.mulf %49, %48 : vector<32x128xf32>
    %51 = arith.mulf %42, %50 : vector<32x128xf32>
    %52 = arith.truncf %51 : vector<32x128xf32> to vector<32x128xbf16>
    %c0_25 = arith.constant 0 : index
    %c0_26 = arith.constant 0 : index
    %c0_27 = arith.constant 0 : index
    %53 = vector.load %arg7[%c0_25, %c0_26, %c0_27] : memref<3x64x32xbf16, #tpu.memory_space<vmem>>, vector<1x64x32xbf16>
    %54 = vector.shape_cast %53 : vector<1x64x32xbf16> to vector<64x32xbf16>
    %cst_28 = arith.constant dense<0.000000e+00> : vector<64x128xf32>
    %55 = tpu.matmul %54, %52, %cst_28 {dimension_numbers = #tpu.dot_dimension_numbers<[1], [0], [0], [1], [0, 0, 1, 1], [], []>} : vector<64x32xbf16>, vector<32x128xbf16>, vector<64x128xf32> -> vector<64x128xf32>
    %c0_29 = arith.constant 0 : index
    %c0_30 = arith.constant 0 : index
    %c0_31 = arith.constant 0 : index
    %56 = vector.load %arg8[%c0_29, %c0_30, %c0_31] : memref<3x64x1xf32, #tpu.memory_space<vmem>>, vector<1x64x1xf32>
    %57 = vector.shape_cast %56 : vector<1x64x1xf32> to vector<64x1xf32>
    %58 = vector.broadcast %57 : vector<64x1xf32> to vector<64x128xf32>
    %59 = arith.addf %55, %58 : vector<64x128xf32>
    %60 = vector.extract_strided_slice %59 {offsets = [0, 0], sizes = [32, 128], strides = [1, 1]} : vector<64x128xf32> to vector<32x128xf32>
    %61 = arith.addf %13, %60 : vector<32x128xf32>
    %62 = vector.broadcast %3 : vector<1x128xf32> to vector<32x128xf32>
    %63 = arith.mulf %61, %62 : vector<32x128xf32>
    %64 = vector.extract_strided_slice %59 {offsets = [32, 0], sizes = [32, 128], strides = [1, 1]} : vector<64x128xf32> to vector<32x128xf32>
    %65 = arith.addf %15, %64 : vector<32x128xf32>
    %c2_i32 = arith.constant 2 : i32
    %66 = tpu.dynamic_rotate %63 by %c2_i32 dim 1 : vector<32x128xf32>, i32 -> vector<32x128xf32>
    %c2_i32_32 = arith.constant 2 : i32
    %67 = vector.broadcast %c2_i32_32 : i32 to vector<32x128xi32>
    %68 = arith.cmpi sge, %14, %67 : vector<32x128xi32>
    %c128_i32_33 = arith.constant 128 : i32
    %69 = vector.broadcast %c128_i32_33 : i32 to vector<32x128xi32>
    %70 = arith.cmpi slt, %14, %69 : vector<32x128xi32>
    %71 = arith.andi %68, %70 : vector<32x128xi1>
    %cst_34 = arith.constant 0.000000e+00 : f32
    %72 = vector.broadcast %cst_34 : f32 to vector<32x128xf32>
    %73 = arith.select %71, %66, %72 : vector<32x128xi1>, vector<32x128xf32>
    %c126_i32 = arith.constant 126 : i32
    %74 = tpu.dynamic_rotate %63 by %c126_i32 dim 1 : vector<32x128xf32>, i32 -> vector<32x128xf32>
    %c0_i32_35 = arith.constant 0 : i32
    %75 = vector.broadcast %c0_i32_35 : i32 to vector<32x128xi32>
    %76 = arith.cmpi sge, %14, %75 : vector<32x128xi32>
    %c126_i32_36 = arith.constant 126 : i32
    %77 = vector.broadcast %c126_i32_36 : i32 to vector<32x128xi32>
    %78 = arith.cmpi slt, %14, %77 : vector<32x128xi32>
    %79 = arith.andi %76, %78 : vector<32x128xi1>
    %cst_37 = arith.constant 0.000000e+00 : f32
    %80 = vector.broadcast %cst_37 : f32 to vector<32x128xf32>
    %81 = arith.select %79, %74, %80 : vector<32x128xi1>, vector<32x128xf32>
    %82 = tpu.concatenate %73, %63, %81 in 0 : vector<32x128xf32>, vector<32x128xf32>, vector<32x128xf32> -> vector<96x128xf32>
    %83 = arith.truncf %82 : vector<96x128xf32> to vector<96x128xbf16>
    %c1 = arith.constant 1 : index
    %c0_38 = arith.constant 0 : index
    %c0_39 = arith.constant 0 : index
    %84 = vector.load %arg6[%c1, %c0_38, %c0_39] : memref<3x64x96xbf16, #tpu.memory_space<vmem>>, vector<1x64x96xbf16>
    %85 = vector.shape_cast %84 : vector<1x64x96xbf16> to vector<64x96xbf16>
    %cst_40 = arith.constant dense<0.000000e+00> : vector<64x128xf32>
    %86 = tpu.matmul %85, %83, %cst_40 {dimension_numbers = #tpu.dot_dimension_numbers<[1], [0], [0], [1], [0, 0, 1, 1], [], []>} : vector<64x96xbf16>, vector<96x128xbf16>, vector<64x128xf32> -> vector<64x128xf32>
    %c0_41 = arith.constant 0 : index
    %c1_42 = arith.constant 1 : index
    %c0_43 = arith.constant 0 : index
    %c0_44 = arith.constant 0 : index
    %87 = vector.load %arg3[%c0_41, %c1_42, %c0_43, %c0_44] : memref<1x3x64x1xf32, #tpu.memory_space<vmem>>, vector<1x1x64x1xf32>
    %88 = vector.shape_cast %87 : vector<1x1x64x1xf32> to vector<64x1xf32>
    %89 = vector.broadcast %88 : vector<64x1xf32> to vector<64x128xf32>
    %90 = arith.addf %86, %89 : vector<64x128xf32>
    %91 = vector.extract_strided_slice %90 {offsets = [0, 0], sizes = [32, 128], strides = [1, 1]} : vector<64x128xf32> to vector<32x128xf32>
    %92 = math.tanh %91 : vector<32x128xf32>
    %93 = vector.extract_strided_slice %90 {offsets = [32, 0], sizes = [32, 128], strides = [1, 1]} : vector<64x128xf32> to vector<32x128xf32>
    %cst_45 = arith.constant 5.000000e-01 : f32
    %94 = vector.broadcast %cst_45 : f32 to vector<32x128xf32>
    %95 = arith.mulf %94, %93 : vector<32x128xf32>
    %96 = math.tanh %95 : vector<32x128xf32>
    %cst_46 = arith.constant 1.000000e+00 : f32
    %97 = vector.broadcast %cst_46 : f32 to vector<32x128xf32>
    %98 = arith.addf %96, %97 : vector<32x128xf32>
    %cst_47 = arith.constant 5.000000e-01 : f32
    %99 = vector.broadcast %cst_47 : f32 to vector<32x128xf32>
    %100 = arith.mulf %99, %98 : vector<32x128xf32>
    %101 = arith.mulf %92, %100 : vector<32x128xf32>
    %102 = arith.truncf %101 : vector<32x128xf32> to vector<32x128xbf16>
    %c1_48 = arith.constant 1 : index
    %c0_49 = arith.constant 0 : index
    %c0_50 = arith.constant 0 : index
    %103 = vector.load %arg7[%c1_48, %c0_49, %c0_50] : memref<3x64x32xbf16, #tpu.memory_space<vmem>>, vector<1x64x32xbf16>
    %104 = vector.shape_cast %103 : vector<1x64x32xbf16> to vector<64x32xbf16>
    %cst_51 = arith.constant dense<0.000000e+00> : vector<64x128xf32>
    %105 = tpu.matmul %104, %102, %cst_51 {dimension_numbers = #tpu.dot_dimension_numbers<[1], [0], [0], [1], [0, 0, 1, 1], [], []>} : vector<64x32xbf16>, vector<32x128xbf16>, vector<64x128xf32> -> vector<64x128xf32>
    %c1_52 = arith.constant 1 : index
    %c0_53 = arith.constant 0 : index
    %c0_54 = arith.constant 0 : index
    %106 = vector.load %arg8[%c1_52, %c0_53, %c0_54] : memref<3x64x1xf32, #tpu.memory_space<vmem>>, vector<1x64x1xf32>
    %107 = vector.shape_cast %106 : vector<1x64x1xf32> to vector<64x1xf32>
    %108 = vector.broadcast %107 : vector<64x1xf32> to vector<64x128xf32>
    %109 = arith.addf %105, %108 : vector<64x128xf32>
    %110 = vector.extract_strided_slice %109 {offsets = [0, 0], sizes = [32, 128], strides = [1, 1]} : vector<64x128xf32> to vector<32x128xf32>
    %111 = arith.addf %63, %110 : vector<32x128xf32>
    %112 = vector.broadcast %3 : vector<1x128xf32> to vector<32x128xf32>
    %113 = arith.mulf %111, %112 : vector<32x128xf32>
    %114 = vector.extract_strided_slice %109 {offsets = [32, 0], sizes = [32, 128], strides = [1, 1]} : vector<64x128xf32> to vector<32x128xf32>
    %115 = arith.addf %65, %114 : vector<32x128xf32>
    %c4_i32 = arith.constant 4 : i32
    %116 = tpu.dynamic_rotate %113 by %c4_i32 dim 1 : vector<32x128xf32>, i32 -> vector<32x128xf32>
    %c4_i32_55 = arith.constant 4 : i32
    %117 = vector.broadcast %c4_i32_55 : i32 to vector<32x128xi32>
    %118 = arith.cmpi sge, %14, %117 : vector<32x128xi32>
    %c128_i32_56 = arith.constant 128 : i32
    %119 = vector.broadcast %c128_i32_56 : i32 to vector<32x128xi32>
    %120 = arith.cmpi slt, %14, %119 : vector<32x128xi32>
    %121 = arith.andi %118, %120 : vector<32x128xi1>
    %cst_57 = arith.constant 0.000000e+00 : f32
    %122 = vector.broadcast %cst_57 : f32 to vector<32x128xf32>
    %123 = arith.select %121, %116, %122 : vector<32x128xi1>, vector<32x128xf32>
    %c124_i32 = arith.constant 124 : i32
    %124 = tpu.dynamic_rotate %113 by %c124_i32 dim 1 : vector<32x128xf32>, i32 -> vector<32x128xf32>
    %c0_i32_58 = arith.constant 0 : i32
    %125 = vector.broadcast %c0_i32_58 : i32 to vector<32x128xi32>
    %126 = arith.cmpi sge, %14, %125 : vector<32x128xi32>
    %c124_i32_59 = arith.constant 124 : i32
    %127 = vector.broadcast %c124_i32_59 : i32 to vector<32x128xi32>
    %128 = arith.cmpi slt, %14, %127 : vector<32x128xi32>
    %129 = arith.andi %126, %128 : vector<32x128xi1>
    %cst_60 = arith.constant 0.000000e+00 : f32
    %130 = vector.broadcast %cst_60 : f32 to vector<32x128xf32>
    %131 = arith.select %129, %124, %130 : vector<32x128xi1>, vector<32x128xf32>
    %132 = tpu.concatenate %123, %113, %131 in 0 : vector<32x128xf32>, vector<32x128xf32>, vector<32x128xf32> -> vector<96x128xf32>
    %133 = arith.truncf %132 : vector<96x128xf32> to vector<96x128xbf16>
    %c2 = arith.constant 2 : index
    %c0_61 = arith.constant 0 : index
    %c0_62 = arith.constant 0 : index
    %134 = vector.load %arg6[%c2, %c0_61, %c0_62] : memref<3x64x96xbf16, #tpu.memory_space<vmem>>, vector<1x64x96xbf16>
    %135 = vector.shape_cast %134 : vector<1x64x96xbf16> to vector<64x96xbf16>
    %cst_63 = arith.constant dense<0.000000e+00> : vector<64x128xf32>
    %136 = tpu.matmul %135, %133, %cst_63 {dimension_numbers = #tpu.dot_dimension_numbers<[1], [0], [0], [1], [0, 0, 1, 1], [], []>} : vector<64x96xbf16>, vector<96x128xbf16>, vector<64x128xf32> -> vector<64x128xf32>
    %c0_64 = arith.constant 0 : index
    %c2_65 = arith.constant 2 : index
    %c0_66 = arith.constant 0 : index
    %c0_67 = arith.constant 0 : index
    %137 = vector.load %arg3[%c0_64, %c2_65, %c0_66, %c0_67] : memref<1x3x64x1xf32, #tpu.memory_space<vmem>>, vector<1x1x64x1xf32>
    %138 = vector.shape_cast %137 : vector<1x1x64x1xf32> to vector<64x1xf32>
    %139 = vector.broadcast %138 : vector<64x1xf32> to vector<64x128xf32>
    %140 = arith.addf %136, %139 : vector<64x128xf32>
    %141 = vector.extract_strided_slice %140 {offsets = [0, 0], sizes = [32, 128], strides = [1, 1]} : vector<64x128xf32> to vector<32x128xf32>
    %142 = math.tanh %141 : vector<32x128xf32>
    %143 = vector.extract_strided_slice %140 {offsets = [32, 0], sizes = [32, 128], strides = [1, 1]} : vector<64x128xf32> to vector<32x128xf32>
    %cst_68 = arith.constant 5.000000e-01 : f32
    %144 = vector.broadcast %cst_68 : f32 to vector<32x128xf32>
    %145 = arith.mulf %144, %143 : vector<32x128xf32>
    %146 = math.tanh %145 : vector<32x128xf32>
    %cst_69 = arith.constant 1.000000e+00 : f32
    %147 = vector.broadcast %cst_69 : f32 to vector<32x128xf32>
    %148 = arith.addf %146, %147 : vector<32x128xf32>
    %cst_70 = arith.constant 5.000000e-01 : f32
    %149 = vector.broadcast %cst_70 : f32 to vector<32x128xf32>
    %150 = arith.mulf %149, %148 : vector<32x128xf32>
    %151 = arith.mulf %142, %150 : vector<32x128xf32>
    %152 = arith.truncf %151 : vector<32x128xf32> to vector<32x128xbf16>
    %c2_71 = arith.constant 2 : index
    %c0_72 = arith.constant 0 : index
    %c0_73 = arith.constant 0 : index
    %153 = vector.load %arg7[%c2_71, %c0_72, %c0_73] : memref<3x64x32xbf16, #tpu.memory_space<vmem>>, vector<1x64x32xbf16>
    %154 = vector.shape_cast %153 : vector<1x64x32xbf16> to vector<64x32xbf16>
    %cst_74 = arith.constant dense<0.000000e+00> : vector<64x128xf32>
    %155 = tpu.matmul %154, %152, %cst_74 {dimension_numbers = #tpu.dot_dimension_numbers<[1], [0], [0], [1], [0, 0, 1, 1], [], []>} : vector<64x32xbf16>, vector<32x128xbf16>, vector<64x128xf32> -> vector<64x128xf32>
    %c2_75 = arith.constant 2 : index
    %c0_76 = arith.constant 0 : index
    %c0_77 = arith.constant 0 : index
    %156 = vector.load %arg8[%c2_75, %c0_76, %c0_77] : memref<3x64x1xf32, #tpu.memory_space<vmem>>, vector<1x64x1xf32>
    %157 = vector.shape_cast %156 : vector<1x64x1xf32> to vector<64x1xf32>
    %158 = vector.broadcast %157 : vector<64x1xf32> to vector<64x128xf32>
    %159 = arith.addf %155, %158 : vector<64x128xf32>
    %160 = vector.extract_strided_slice %159 {offsets = [32, 0], sizes = [32, 128], strides = [1, 1]} : vector<64x128xf32> to vector<32x128xf32>
    %161 = arith.addf %115, %160 : vector<32x128xf32>
    %162 = vector.broadcast %3 : vector<1x128xf32> to vector<32x128xf32>
    %163 = arith.mulf %161, %162 : vector<32x128xf32>
    %164 = arith.truncf %163 : vector<32x128xf32> to vector<32x128xbf16>
    %c0_78 = arith.constant 0 : index
    %c0_79 = arith.constant 0 : index
    %165 = vector.load %arg9[%c0_78, %c0_79] : memref<2x32xbf16, #tpu.memory_space<vmem>>, vector<2x32xbf16>
    %cst_80 = arith.constant dense<0.000000e+00> : vector<2x128xf32>
    %166 = tpu.matmul %165, %164, %cst_80 {dimension_numbers = #tpu.dot_dimension_numbers<[1], [0], [0], [1], [0, 0, 1, 1], [], []>} : vector<2x32xbf16>, vector<32x128xbf16>, vector<2x128xf32> -> vector<2x128xf32>
    %c0_81 = arith.constant 0 : index
    %c0_82 = arith.constant 0 : index
    %167 = vector.load %arg10[%c0_81, %c0_82] : memref<2x1xf32, #tpu.memory_space<vmem>>, vector<2x1xf32>
    %168 = vector.broadcast %167 : vector<2x1xf32> to vector<2x128xf32>
    %169 = arith.addf %166, %168 : vector<2x128xf32>
    %170 = vector.broadcast %3 : vector<1x128xf32> to vector<2x128xf32>
    %171 = arith.mulf %169, %170 : vector<2x128xf32>
    %c0_83 = arith.constant 0 : index
    %c0_84 = arith.constant 0 : index
    %c0_85 = arith.constant 0 : index
    %172 = vector.load %arg11[%c0_83, %c0_84, %c0_85] : memref<1x4x128xf32, #tpu.memory_space<vmem>>, vector<1x2x128xf32>
    %173 = vector.shape_cast %172 : vector<1x2x128xf32> to vector<2x128xf32>
    %174 = vector.shape_cast %4 : vector<2x128xf32> to vector<1x2x128xf32>
    tpu.vector_store %arg11[%c0_83, %c0_84, %c0_85], %174 {strides = array<i32>} : memref<1x4x128xf32, #tpu.memory_space<vmem>>, vector<1x2x128xf32>,
    %175 = vector.broadcast %3 : vector<1x128xf32> to vector<2x128xf32>
    %176 = arith.mulf %5, %175 : vector<2x128xf32>
    %177 = arith.addf %171, %176 : vector<2x128xf32>
    %c0_86 = arith.constant 0 : index
    %c2_87 = arith.constant 2 : index
    %c0_88 = arith.constant 0 : index
    %178 = vector.load %arg11[%c0_86, %c2_87, %c0_88] : memref<1x4x128xf32, #tpu.memory_space<vmem>>, vector<1x2x128xf32>
    %179 = vector.shape_cast %178 : vector<1x2x128xf32> to vector<2x128xf32>
    %180 = vector.shape_cast %177 : vector<2x128xf32> to vector<1x2x128xf32>
    tpu.vector_store %arg11[%c0_86, %c2_87, %c0_88], %180 {strides = array<i32>} : memref<1x4x128xf32, #tpu.memory_space<vmem>>, vector<1x2x128xf32>,
    return
  }
  func.func @transform_0(%arg0: i32) -> (i32, i32, i32) {
    %c0_i32 = arith.constant 0 : i32
    %c0_i32_0 = arith.constant 0 : i32
    %c0_i32_1 = arith.constant 0 : i32
    return %arg0, %c0_i32, %c0_i32_0 : i32, i32, i32
  }
  func.func @transform_1(%arg0: i32) -> (i32, i32, i32) {
    %c0_i32 = arith.constant 0 : i32
    %c0_i32_0 = arith.constant 0 : i32
    %c0_i32_1 = arith.constant 0 : i32
    return %arg0, %c0_i32, %c0_i32_0 : i32, i32, i32
  }
  func.func @transform_2(%arg0: i32) -> (i32, i32, i32, i32) {
    %c0_i32 = arith.constant 0 : i32
    %c0_i32_0 = arith.constant 0 : i32
    %c0_i32_1 = arith.constant 0 : i32
    %c0_i32_2 = arith.constant 0 : i32
    return %arg0, %c0_i32, %c0_i32_0, %c0_i32_1 : i32, i32, i32, i32
  }
  func.func @transform_3(%arg0: i32) -> (i32, i32) {
    %c0_i32 = arith.constant 0 : i32
    %c0_i32_0 = arith.constant 0 : i32
    %c0_i32_1 = arith.constant 0 : i32
    return %c0_i32, %c0_i32_0 : i32, i32
  }
  func.func @transform_4(%arg0: i32) -> (i32, i32) {
    %c0_i32 = arith.constant 0 : i32
    %c0_i32_0 = arith.constant 0 : i32
    %c0_i32_1 = arith.constant 0 : i32
    return %c0_i32, %c0_i32_0 : i32, i32
  }
  func.func @transform_5(%arg0: i32) -> (i32, i32, i32) {
    %c0_i32 = arith.constant 0 : i32
    %c0_i32_0 = arith.constant 0 : i32
    %c0_i32_1 = arith.constant 0 : i32
    %c0_i32_2 = arith.constant 0 : i32
    return %c0_i32, %c0_i32_0, %c0_i32_1 : i32, i32, i32
  }
  func.func @transform_6(%arg0: i32) -> (i32, i32, i32) {
    %c0_i32 = arith.constant 0 : i32
    %c0_i32_0 = arith.constant 0 : i32
    %c0_i32_1 = arith.constant 0 : i32
    %c0_i32_2 = arith.constant 0 : i32
    return %c0_i32, %c0_i32_0, %c0_i32_1 : i32, i32, i32
  }
  func.func @transform_7(%arg0: i32) -> (i32, i32, i32) {
    %c0_i32 = arith.constant 0 : i32
    %c0_i32_0 = arith.constant 0 : i32
    %c0_i32_1 = arith.constant 0 : i32
    %c0_i32_2 = arith.constant 0 : i32
    return %c0_i32, %c0_i32_0, %c0_i32_1 : i32, i32, i32
  }
  func.func @transform_8(%arg0: i32) -> (i32, i32) {
    %c0_i32 = arith.constant 0 : i32
    %c0_i32_0 = arith.constant 0 : i32
    %c0_i32_1 = arith.constant 0 : i32
    return %c0_i32, %c0_i32_0 : i32, i32
  }
  func.func @transform_9(%arg0: i32) -> (i32, i32) {
    %c0_i32 = arith.constant 0 : i32
    %c0_i32_0 = arith.constant 0 : i32
    %c0_i32_1 = arith.constant 0 : i32
    return %c0_i32, %c0_i32_0 : i32, i32
  }
  func.func @transform_10(%arg0: i32) -> (i32, i32, i32) {
    %c0_i32 = arith.constant 0 : i32
    %c0_i32_0 = arith.constant 0 : i32
    %c0_i32_1 = arith.constant 0 : i32
    return %arg0, %c0_i32, %c0_i32_0 : i32, i32, i32
  }
}

</mosaic_0001>

<llo_original>
// kernel: block_forward.4
$region0: #{block_forward.4}
  #allocation0 [shape = 'u32[]', space=smem, size = 0x4, offset = 0x4, fixed_abs, tag = 'smem constant byte address 0x4 - core index']
  #allocation1 [shape = 'u32[144,128]{1,0:T(1,128)}', space=vmem, size = 0x12000, scoped, tag = 'internal scratch']
  %s0 = inlined_call_operand.vmem [shape: f32[2,4,128], index: 0, kind: input, shape index: {}]
  %s1 = inlined_call_operand.vmem [shape: f32[2,1,128], index: 1, kind: input, shape index: {}]
  %s2 = inlined_call_operand.hbm [shape: f32[2,3,64,1], index: 2, kind: input, shape index: {}]
  %s3 = inlined_call_operand.vmem [shape: bf16[32,2], index: 3, kind: input, shape index: {}]
  %s4 = inlined_call_operand.hbm [shape: f32[32,1], index: 4, kind: input, shape index: {}]
  %s5 = inlined_call_operand.hbm [shape: bf16[3,64,96], index: 5, kind: input, shape index: {}]
  %s6 = inlined_call_operand.vmem [shape: bf16[3,64,32], index: 6, kind: input, shape index: {}]
  %s7 = inlined_call_operand.hbm [shape: f32[3,64,1], index: 7, kind: input, shape index: {}]
  %s8 = inlined_call_operand.vmem [shape: bf16[2,32], index: 8, kind: input, shape index: {}]
  %s9 = inlined_call_operand.vmem [shape: f32[2,1], index: 9, kind: input, shape index: {}]
  %s10 = inlined_call_operand.vmem [shape: f32[2,4,128], index: 10, kind: output, shape index: {}]
  %s11 = sld [smem:[#allocation0]]
  $region89: #{block_forward.4} parent=0
    _
  %s13 = ssub.s32 1, %s11
  %s14 = scalar_select 0, %s13, %s11
  $region1: #{block_forward.4} parent=0
    #allocation2 [shape = 'u8[196608]{0}', space=vmem, size = 0x30000, scoped, tag = 'input window, operand 2']
    #allocation3 [shape = 's32[2]{0}', space=sflag, size = 0x8, scoped, tag = 'scoped memory for block_forward.4']
    #allocation4 [shape = 'u8[16384]{0}', space=vmem, size = 0x4000, scoped, tag = 'input window, operand 4, single buffered']
    #allocation5 [shape = 's32[1]{0}', space=sflag, size = 0x4, scoped, tag = 'scoped memory for block_forward.4']
    #allocation6 [shape = 'u8[49152]{0}', space=vmem, size = 0xc000, scoped, tag = 'input window, operand 5, single buffered']
    #allocation7 [shape = 'u8[98304]{0}', space=vmem, size = 0x18000, scoped, tag = 'input window, operand 7, single buffered']
    #allocation8 [shape = 's32[1]{0}', space=sflag, size = 0x4, scoped, tag = 'scoped memory for block_forward.4']
    %15 = vsyncpa [#allocation3], 0
    %s16 = scalar_lea.sflag [#allocation3], 1
    %17 = vsyncpa %s16, 0
    %18 = vsyncpa [#allocation5], 0
    %19 = vsyncpa [#allocation8], 0
    loop: start=0, step=1, limit=4
    $region2: #{block_forward.4} parent=1 // loop_pre_header
      _
    $region3: #{block_forward.4} parent=1 // loop_header
      %s21 = sphi 0, %s25
      %p22 = scmp.ge.s32.totalorder %s21, 4
      %s31 = sphi 0, %s33
      %s34 = sphi 0, %s31
      %s35 = sphi 0, %s34
      %s51 = sphi 0, %s35
      %s57 = sphi 0, %s59
      %s60 = sphi 0, %s57
      %s61 = sphi 0, %s60
      %s77 = sphi 0, %s61
      %s83 = sphi 0, %s85
      %s86 = sphi 0, %s83
      %s87 = sphi 0, %s86
      %s103 = sphi 0, %s87
      %s107 = sphi 0, %s107
      %s109 = sphi 0, %s107
      %s110 = sphi 0, %s109
      %s124 = sphi 0, %s110
      %s128 = sphi 0, %s128
      %s130 = sphi 0, %s128
      %s131 = sphi 0, %s130
      %s145 = sphi 0, %s131
      %s149 = sphi 0, %s149
      %s151 = sphi 0, %s149
      %s152 = sphi 0, %s151
      %s166 = sphi 0, %s152
      %s170 = sphi 0, %s170
      %s172 = sphi 0, %s170
      %s173 = sphi 0, %s172
      %s187 = sphi 0, %s173
      %s191 = sphi 0, %s191
      %s193 = sphi 0, %s191
      %s194 = sphi 0, %s193
      %s208 = sphi 0, %s194
      %s212 = sphi 0, %s212
      %s214 = sphi 0, %s212
      %s215 = sphi 0, %s214
      %s229 = sphi 0, %s215
      %s233 = sphi 0, %s233
      %s235 = sphi 0, %s233
      %s236 = sphi 0, %s235
      %s250 = sphi 0, %s236
      %s256 = sphi 0, %s258
      %s259 = sphi 0, %s256
      %s260 = sphi 0, %s259
      %s276 = sphi 0, %s260
    $region4: #{block_forward.4} parent=1 // loop_header_branch
      %24 = sbr.rel (%p22) target = $region8
    $region5: #{block_forward.4} parent=1 // loop_body
      %s26 = ssub.s32 %s21, 1
      %s27 = ssub.s32 %s21, 2
      %s28 = sadd.s32 %s21, 1
      %s29 = ssub.s32 %s21, %s28
      %p30 = scmp.eq.s32.totalorder %s29, 0
      %s32 = sadd.s32 %s31, 1
      %s33 = scalar_select %p30, %s31, %s32
      %p36 = pneg %p30
      %p37 = scmp.eq.s32.totalorder %s21, 1
      %p38 = por %p36, %p37
      %p39 = scmp.ne.s32.totalorder %s31, %s34
      %p40 = scmp.eq.s32.totalorder %s21, 0
      %p41 = por %p39, %p40
      %p42 = scmp.ne.s32.totalorder %s31, %s34
      %p43 = scmp.eq.s32.totalorder %s26, 1
      %p44 = por %p42, %p43
      %p45 = scmp.ne.s32.totalorder %s34, %s35
      %p46 = scmp.eq.s32.totalorder %s26, 0
      %p47 = por %p45, %p46
      %p48 = scmp.ne.s32.totalorder %s34, %s35
      %p49 = scmp.eq.s32.totalorder %s27, 1
      %p50 = por %p48, %p49
      %p52 = scmp.ne.s32.totalorder %s35, %s51
      %p53 = scmp.eq.s32.totalorder %s27, 0
      %p54 = por %p52, %p53
      %s55 = ssub.s32 %s21, %s28
      %p56 = scmp.eq.s32.totalorder %s55, 0
      %s58 = sadd.s32 %s57, 1
      %s59 = scalar_select %p56, %s57, %s58
      %p62 = pneg %p56
      %p63 = scmp.eq.s32.totalorder %s21, 1
      %p64 = por %p62, %p63
      %p65 = scmp.ne.s32.totalorder %s57, %s60
      %p66 = scmp.eq.s32.totalorder %s21, 0
      %p67 = por %p65, %p66
      %p68 = scmp.ne.s32.totalorder %s57, %s60
      %p69 = scmp.eq.s32.totalorder %s26, 1
      %p70 = por %p68, %p69
      %p71 = scmp.ne.s32.totalorder %s60, %s61
      %p72 = scmp.eq.s32.totalorder %s26, 0
      %p73 = por %p71, %p72
      %p74 = scmp.ne.s32.totalorder %s60, %s61
      %p75 = scmp.eq.s32.totalorder %s27, 1
      %p76 = por %p74, %p75
      %p78 = scmp.ne.s32.totalorder %s61, %s77
      %p79 = scmp.eq.s32.totalorder %s27, 0
      %p80 = por %p78, %p79
      %s81 = ssub.s32 %s21, %s28
      %p82 = scmp.eq.s32.totalorder %s81, 0
      %s84 = sadd.s32 %s83, 1
      %s85 = scalar_select %p82, %s83, %s84
      %p88 = pneg %p82
      %p89 = scmp.eq.s32.totalorder %s21, 1
      %p90 = por %p88, %p89
      %p91 = scmp.ne.s32.totalorder %s83, %s86
      %p92 = scmp.eq.s32.totalorder %s21, 0
      %p93 = por %p91, %p92
      %p94 = scmp.ne.s32.totalorder %s83, %s86
      %p95 = scmp.eq.s32.totalorder %s26, 1
      %p96 = por %p94, %p95
      %p97 = scmp.ne.s32.totalorder %s86, %s87
      %p98 = scmp.eq.s32.totalorder %s26, 0
      %p99 = por %p97, %p98
      %p100 = scmp.ne.s32.totalorder %s86, %s87
      %p101 = scmp.eq.s32.totalorder %s27, 1
      %p102 = por %p100, %p101
      %p104 = scmp.ne.s32.totalorder %s87, %s103
      %p105 = scmp.eq.s32.totalorder %s27, 0
      %p106 = por %p104, %p105
      %s108 = sadd.s32 %s107, 1
      %p111 = scmp.eq.s32.totalorder %s21, 1
      %p112 = scmp.ne.s32.totalorder %s107, %s109
      %p113 = scmp.eq.s32.totalorder %s21, 0
      %p114 = por %p112, %p113
      %p115 = scmp.ne.s32.totalorder %s107, %s109
      %p116 = scmp.eq.s32.totalorder %s26, 1
      %p117 = por %p115, %p116
      %p118 = scmp.ne.s32.totalorder %s109, %s110
      %p119 = scmp.eq.s32.totalorder %s26, 0
      %p120 = por %p118, %p119
      %p121 = scmp.ne.s32.totalorder %s109, %s110
      %p122 = scmp.eq.s32.totalorder %s27, 1
      %p123 = por %p121, %p122
      %p125 = scmp.ne.s32.totalorder %s110, %s124
      %p126 = scmp.eq.s32.totalorder %s27, 0
      %p127 = por %p125, %p126
      %s129 = sadd.s32 %s128, 1
      %p132 = scmp.eq.s32.totalorder %s21, 1
      %p133 = scmp.ne.s32.totalorder %s128, %s130
      %p134 = scmp.eq.s32.totalorder %s21, 0
      %p135 = por %p133, %p134
      %p136 = scmp.ne.s32.totalorder %s128, %s130
      %p137 = scmp.eq.s32.totalorder %s26, 1
      %p138 = por %p136, %p137
      %p139 = scmp.ne.s32.totalorder %s130, %s131
      %p140 = scmp.eq.s32.totalorder %s26, 0
      %p141 = por %p139, %p140
      %p142 = scmp.ne.s32.totalorder %s130, %s131
      %p143 = scmp.eq.s32.totalorder %s27, 1
      %p144 = por %p142, %p143
      %p146 = scmp.ne.s32.totalorder %s131, %s145
      %p147 = scmp.eq.s32.totalorder %s27, 0
      %p148 = por %p146, %p147
      %s150 = sadd.s32 %s149, 1
      %p153 = scmp.eq.s32.totalorder %s21, 1
      %p154 = scmp.ne.s32.totalorder %s149, %s151
      %p155 = scmp.eq.s32.totalorder %s21, 0
      %p156 = por %p154, %p155
      %p157 = scmp.ne.s32.totalorder %s149, %s151
      %p158 = scmp.eq.s32.totalorder %s26, 1
      %p159 = por %p157, %p158
      %p160 = scmp.ne.s32.totalorder %s151, %s152
      %p161 = scmp.eq.s32.totalorder %s26, 0
      %p162 = por %p160, %p161
      %p163 = scmp.ne.s32.totalorder %s151, %s152
      %p164 = scmp.eq.s32.totalorder %s27, 1
      %p165 = por %p163, %p164
      %p167 = scmp.ne.s32.totalorder %s152, %s166
      %p168 = scmp.eq.s32.totalorder %s27, 0
      %p169 = por %p167, %p168
      %s171 = sadd.s32 %s170, 1
      %p174 = scmp.eq.s32.totalorder %s21, 1
      %p175 = scmp.ne.s32.totalorder %s170, %s172
      %p176 = scmp.eq.s32.totalorder %s21, 0
      %p177 = por %p175, %p176
      %p178 = scmp.ne.s32.totalorder %s170, %s172
      %p179 = scmp.eq.s32.totalorder %s26, 1
      %p180 = por %p178, %p179
      %p181 = scmp.ne.s32.totalorder %s172, %s173
      %p182 = scmp.eq.s32.totalorder %s26, 0
      %p183 = por %p181, %p182
      %p184 = scmp.ne.s32.totalorder %s172, %s173
      %p185 = scmp.eq.s32.totalorder %s27, 1
      %p186 = por %p184, %p185
      %p188 = scmp.ne.s32.totalorder %s173, %s187
      %p189 = scmp.eq.s32.totalorder %s27, 0
      %p190 = por %p188, %p189
      %s192 = sadd.s32 %s191, 1
      %p195 = scmp.eq.s32.totalorder %s21, 1
      %p196 = scmp.ne.s32.totalorder %s191, %s193
      %p197 = scmp.eq.s32.totalorder %s21, 0
      %p198 = por %p196, %p197
      %p199 = scmp.ne.s32.totalorder %s191, %s193
      %p200 = scmp.eq.s32.totalorder %s26, 1
      %p201 = por %p199, %p200
      %p202 = scmp.ne.s32.totalorder %s193, %s194
      %p203 = scmp.eq.s32.totalorder %s26, 0
      %p204 = por %p202, %p203
      %p205 = scmp.ne.s32.totalorder %s193, %s194
      %p206 = scmp.eq.s32.totalorder %s27, 1
      %p207 = por %p205, %p206
      %p209 = scmp.ne.s32.totalorder %s194, %s208
      %p210 = scmp.eq.s32.totalorder %s27, 0
      %p211 = por %p209, %p210
      %s213 = sadd.s32 %s212, 1
      %p216 = scmp.eq.s32.totalorder %s21, 1
      %p217 = scmp.ne.s32.totalorder %s212, %s214
      %p218 = scmp.eq.s32.totalorder %s21, 0
      %p219 = por %p217, %p218
      %p220 = scmp.ne.s32.totalorder %s212, %s214
      %p221 = scmp.eq.s32.totalorder %s26, 1
      %p222 = por %p220, %p221
      %p223 = scmp.ne.s32.totalorder %s214, %s215
      %p224 = scmp.eq.s32.totalorder %s26, 0
      %p225 = por %p223, %p224
      %p226 = scmp.ne.s32.totalorder %s214, %s215
      %p227 = scmp.eq.s32.totalorder %s27, 1
      %p228 = por %p226, %p227
      %p230 = scmp.ne.s32.totalorder %s215, %s229
      %p231 = scmp.eq.s32.totalorder %s27, 0
      %p232 = por %p230, %p231
      %s234 = sadd.s32 %s233, 1
      %p237 = scmp.eq.s32.totalorder %s21, 1
      %p238 = scmp.ne.s32.totalorder %s233, %s235
      %p239 = scmp.eq.s32.totalorder %s21, 0
      %p240 = por %p238, %p239
      %p241 = scmp.ne.s32.totalorder %s233, %s235
      %p242 = scmp.eq.s32.totalorder %s26, 1
      %p243 = por %p241, %p242
      %p244 = scmp.ne.s32.totalorder %s235, %s236
      %p245 = scmp.eq.s32.totalorder %s26, 0
      %p246 = por %p244, %p245
      %p247 = scmp.ne.s32.totalorder %s235, %s236
      %p248 = scmp.eq.s32.totalorder %s27, 1
      %p249 = por %p247, %p248
      %p251 = scmp.ne.s32.totalorder %s236, %s250
      %p252 = scmp.eq.s32.totalorder %s27, 0
      %p253 = por %p251, %p252
      %s254 = ssub.s32 %s21, %s28
      %p255 = scmp.eq.s32.totalorder %s254, 0
      %s257 = sadd.s32 %s256, 1
      %s258 = scalar_select %p255, %s256, %s257
      %p261 = pneg %p255
      %p262 = scmp.eq.s32.totalorder %s21, 1
      %p263 = por %p261, %p262
      %p264 = scmp.ne.s32.totalorder %s256, %s259
      %p265 = scmp.eq.s32.totalorder %s21, 0
      %p266 = por %p264, %p265
      %p267 = scmp.ne.s32.totalorder %s256, %s259
      %p268 = scmp.eq.s32.totalorder %s26, 1
      %p269 = por %p267, %p268
      %p270 = scmp.ne.s32.totalorder %s259, %s260
      %p271 = scmp.eq.s32.totalorder %s26, 0
      %p272 = por %p270, %p271
      %p273 = scmp.ne.s32.totalorder %s259, %s260
      %p274 = scmp.eq.s32.totalorder %s27, 1
      %p275 = por %p273, %p274
      %p277 = scmp.ne.s32.totalorder %s260, %s276
      %p278 = scmp.eq.s32.totalorder %s27, 0
      %p279 = por %p277, %p278
      %p280 = scmp.le.s32.totalorder 1, %s21
      %p281 = scmp.lt.s32.totalorder %s21, 3
      %p282 = pnand %p280, %p281
      %p283 = pneg %p282
      // Predicated region
      $region9: #{block_forward.4} parent=5 // pred_check
        _
      $region10: #{block_forward.4} parent=5 // pred_check_branch
        %285 = sbr.rel (%p282) target = $region12
      $region11: #{block_forward.4} parent=5 // pred_region
        %s286 = ssub.s32 %s21, 1
        // Predicated region
        $region13: #{block_forward.4} parent=11 // pred_check
          %p287 = pneg %p120
        $region14: #{block_forward.4} parent=11 // pred_check_branch
          %289 = sbr.rel (%p287) target = $region16
        $region15: #{block_forward.4} parent=11 // pred_region
          _
        $region16: #{block_forward.4} parent=11 // pred_fallthru
          _
        // Predicated region
        $region17: #{block_forward.4} parent=11 // pred_check
          %p290 = pneg %p141
        $region18: #{block_forward.4} parent=11 // pred_check_branch
          %292 = sbr.rel (%p290) target = $region20
        $region19: #{block_forward.4} parent=11 // pred_region
          %s294 = ssub.s32 512, 512
          %295 = vsyncadd [#allocation5], %s294
          %s296 = sshll.u32 [#allocation4], 4
          %s297 = int_to_ptr.vmem [resolvable:$true] %s296
          %302 = dma.hbm_to_vmem [thread:$0]  %s4, 512, %s297, [#allocation5], 128, 128, 8
        $region20: #{block_forward.4} parent=11 // pred_fallthru
          _
        // Predicated region
        $region21: #{block_forward.4} parent=11 // pred_check
          %p303 = pneg %p162
        $region22: #{block_forward.4} parent=11 // pred_check_branch
          %305 = sbr.rel (%p303) target = $region24
        $region23: #{block_forward.4} parent=11 // pred_region
          %s307 = ssub.s32 1536, 1536
          %308 = vsyncadd [#allocation5], %s307
          %s309 = sshll.u32 [#allocation6], 4
          %s310 = int_to_ptr.vmem [resolvable:$true] %s309
          %315 = dma.hbm_to_vmem [thread:$0]  %s5, 1536, %s310, [#allocation5], 64, 64, 4
        $region24: #{block_forward.4} parent=11 // pred_fallthru
          _
        // Predicated region
        $region25: #{block_forward.4} parent=11 // pred_check
          %p316 = pneg %p183
        $region26: #{block_forward.4} parent=11 // pred_check_branch
          %318 = sbr.rel (%p316) target = $region28
        $region27: #{block_forward.4} parent=11 // pred_region
          _
        $region28: #{block_forward.4} parent=11 // pred_fallthru
          _
        // Predicated region
        $region29: #{block_forward.4} parent=11 // pred_check
          %p319 = pneg %p204
        $region30: #{block_forward.4} parent=11 // pred_check_branch
          %321 = sbr.rel (%p319) target = $region32
        $region31: #{block_forward.4} parent=11 // pred_region
          %s323 = ssub.s32 3072, 3072
          %324 = vsyncadd [#allocation8], %s323
          %s325 = sshll.u32 [#allocation7], 4
          %s326 = int_to_ptr.vmem [resolvable:$true] %s325
          %331 = dma.hbm_to_vmem [thread:$0]  %s7, 3072, %s326, [#allocation8], 128, 128, 8
        $region32: #{block_forward.4} parent=11 // pred_fallthru
          _
        // Predicated region
        $region33: #{block_forward.4} parent=11 // pred_check
          %p332 = pneg %p225
        $region34: #{block_forward.4} parent=11 // pred_check_branch
          %334 = sbr.rel (%p332) target = $region36
        $region35: #{block_forward.4} parent=11 // pred_region
          _
        $region36: #{block_forward.4} parent=11 // pred_fallthru
          _
        // Predicated region
        $region37: #{block_forward.4} parent=11 // pred_check
          %p335 = pneg %p246
        $region38: #{block_forward.4} parent=11 // pred_check_branch
          %337 = sbr.rel (%p335) target = $region40
        $region39: #{block_forward.4} parent=11 // pred_region
          _
        $region40: #{block_forward.4} parent=11 // pred_fallthru
          _
      $region12: #{block_forward.4} parent=5 // pred_fallthru
        _
      %p338 = scmp.lt.s32.totalorder %s21, 2
      // Predicated region
      $region41: #{block_forward.4} parent=5 // pred_check
        %p339 = pneg %p338
      $region42: #{block_forward.4} parent=5 // pred_check_branch
        %341 = sbr.rel (%p339) target = $region44
      $region43: #{block_forward.4} parent=5 // pred_region
        // Predicated region
        $region45: #{block_forward.4} parent=43 // pred_check
          %p342 = pneg %p41
        $region46: #{block_forward.4} parent=43 // pred_check_branch
          %344 = sbr.rel (%p342) target = $region48
        $region47: #{block_forward.4} parent=43 // pred_region
          %p345 = scmp.lt.s32.totalorder %s21, 1
          %s346 = scalar_select %p345, %s21, 1
          %s347 = smul.addr %s346, 4
          %s348 = scalar_lea.vmem %s0, %s347
        $region48: #{block_forward.4} parent=43 // pred_fallthru
          _
        // Predicated region
        $region49: #{block_forward.4} parent=43 // pred_check
          %p349 = pneg %p67
        $region50: #{block_forward.4} parent=43 // pred_check_branch
          %351 = sbr.rel (%p349) target = $region52
        $region51: #{block_forward.4} parent=43 // pred_region
          %p352 = scmp.lt.s32.totalorder %s21, 1
          %s353 = scalar_select %p352, %s21, 1
          %s354 = scalar_lea.vmem %s1, %s353
        $region52: #{block_forward.4} parent=43 // pred_fallthru
          _
        // Predicated region
        $region53: #{block_forward.4} parent=43 // pred_check
          %p355 = pneg %p93
        $region54: #{block_forward.4} parent=43 // pred_check_branch
          %357 = sbr.rel (%p355) target = $region56
        $region55: #{block_forward.4} parent=43 // pred_region
          %s358 = sand.u32 %s83, 1
          %s359 = scalar_lea.sflag [#allocation3], %s358
          %s360 = sand.u32 %s83, 1
          %s361 = smul.addr %s360, 192
          %s362 = scalar_lea.vmem [#allocation2], %s361
          %s364 = ssub.s32 3072, 3072
          %365 = vsyncadd %s359, %s364
          %s366 = smul.addr %s21, 24
          %s367 = smul.addr %s366, 128
          %s368 = scalar_lea.hbm %s2, %s367
          %s369 = sshll.u32 %s362, 4
          %s370 = int_to_ptr.vmem [resolvable:$true] %s369
          %375 = dma.hbm_to_vmem [thread:$0]  %s368, 3072, %s370, %s359, 128, 128, 8
        $region56: #{block_forward.4} parent=43 // pred_fallthru
          _
      $region44: #{block_forward.4} parent=5 // pred_fallthru
        _
      %p376 = scmp.le.s32.totalorder 1, %s21
      %p377 = scmp.lt.s32.totalorder %s21, 3
      %p378 = pnand %p376, %p377
      %p379 = pneg %p378
      // Predicated region
      $region57: #{block_forward.4} parent=5 // pred_check
        _
      $region58: #{block_forward.4} parent=5 // pred_check_branch
        %381 = sbr.rel (%p378) target = $region60
      $region59: #{block_forward.4} parent=5 // pred_region
        %s382 = ssub.s32 %s21, 1
        %s383 = sand.u32 %s86, 1
        %s384 = scalar_lea.sflag [#allocation3], %s383
        %s385 = sand.u32 %s86, 1
        %s386 = smul.addr %s385, 192
        %s387 = scalar_lea.vmem [#allocation2], %s386
        // Predicated region
        $region61: #{block_forward.4} parent=59 // pred_check
          %p388 = pneg %p99
        $region62: #{block_forward.4} parent=59 // pred_check_branch
          %390 = sbr.rel (%p388) target = $region64
        $region63: #{block_forward.4} parent=59 // pred_region
          %391 = dma.done %s384, 3072
        $region64: #{block_forward.4} parent=59 // pred_fallthru
          _
        // Predicated region
        $region65: #{block_forward.4} parent=59 // pred_check
          %p392 = pneg %p141
        $region66: #{block_forward.4} parent=59 // pred_check_branch
          %394 = sbr.rel (%p392) target = $region68
        $region67: #{block_forward.4} parent=59 // pred_region
          %395 = dma.done [#allocation5], 512
        $region68: #{block_forward.4} parent=59 // pred_fallthru
          _
        // Predicated region
        $region69: #{block_forward.4} parent=59 // pred_check
          %p396 = pneg %p162
        $region70: #{block_forward.4} parent=59 // pred_check_branch
          %398 = sbr.rel (%p396) target = $region72
        $region71: #{block_forward.4} parent=59 // pred_region
          %399 = dma.done [#allocation5], 1536
        $region72: #{block_forward.4} parent=59 // pred_fallthru
          _
        // Predicated region
        $region73: #{block_forward.4} parent=59 // pred_check
          %p400 = pneg %p204
        $region74: #{block_forward.4} parent=59 // pred_check_branch
          %402 = sbr.rel (%p400) target = $region76
        $region75: #{block_forward.4} parent=59 // pred_region
          %403 = dma.done [#allocation8], 3072
        $region76: #{block_forward.4} parent=59 // pred_fallthru
          _
        %p404 = scmp.lt.s32.totalorder %s26, 1
        %s405 = scalar_select %p404, %s26, 1
        %s406 = smul.addr %s405, 4
        %s407 = scalar_lea.vmem %s0, %s406
        %p408 = pneg %p47
        %p409 = pneg %p44
        %p410 = scmp.lt.s32.totalorder %s26, 1
        %s411 = scalar_select %p410, %s26, 1
        %s412 = scalar_lea.vmem %s1, %s411
        %p413 = pneg %p73
        %p414 = pneg %p70
        %s415 = sand.u32 %s86, 1
        %s416 = scalar_lea.sflag [#allocation3], %s415
        %s417 = sand.u32 %s86, 1
        %s418 = smul.addr %s417, 192
        %s419 = scalar_lea.vmem [#allocation2], %s418
        %p420 = pneg %p99
        %p421 = pneg %p96
        %p422 = pneg %p120
        %p423 = pneg %p117
        %p424 = pneg %p141
        %p425 = pneg %p138
        %p426 = pneg %p162
        %p427 = pneg %p159
        %p428 = pneg %p183
        %p429 = pneg %p180
        %p430 = pneg %p204
        %p431 = pneg %p201
        %p432 = pneg %p225
        %p433 = pneg %p222
        %p434 = pneg %p246
        %p435 = pneg %p243
        %p436 = pneg %p272
        %p437 = pneg %p269
        %p438 = scmp.lt.s32.totalorder %s26, 1
        %s439 = scalar_select %p438, %s26, 1
        %s440 = smul.addr %s439, 4
        %s441 = scalar_lea.vmem %s10, %s440
        %p442 = scmp.lt.s32.totalorder %s26, 1
        %s443 = scalar_select %p442, %s26, 1
        %s444 = smul.addr %s443, 4
        %s445 = scalar_lea.vmem %s0, %s444
        %p446 = scmp.lt.s32.totalorder %s26, 1
        %s447 = scalar_select %p446, %s26, 1
        %s448 = scalar_lea.vmem %s1, %s447
        %p449 = scmp.lt.s32.totalorder %s26, 1
        %s450 = scalar_select %p449, %s26, 1
        %s451 = smul.addr %s450, 4
        %s452 = scalar_lea.vmem %s10, %s451
        %v454 = vld [vmem:[%s445] sm:$0xf]
        %v455 = vld [vmem:[%s448] sm:$0x1]
        %v456 = vld [vmem:[%s3] sm:$0xf]
        %v457 = vld [vmem:[%s3 + $0x4] sm:$0xf]
        %v458 = vld [vmem:[%s3 + $0x8] sm:$0xf]
        %v459 = vld [vmem:[%s3 + $0xc] sm:$0xf]
        %v460 = vpack.c.bf16 %v454, %v454
        %v461 = vld [vmem:[#allocation4] sm:$0xff]
        %v462 = vld [vmem:[#allocation4 + $0x8] sm:$0xff]
        %v463 = vld [vmem:[#allocation4 + $0x10] sm:$0xff]
        %v464 = vld [vmem:[#allocation4 + $0x18] sm:$0xff]
        %466 = vset.pattern.permute.xlu0 0
        %467 = vperm.xlu0 %466, %v461
        %v468 = vpop.permute.xlu0 %467
        %471 = vset.pattern.permute.xlu0 0
        %472 = vperm.xlu0 %471, %v462
        %v473 = vpop.permute.xlu0 %472
        %476 = vset.pattern.permute.xlu0 0
        %477 = vperm.xlu0 %476, %v463
        %v478 = vpop.permute.xlu0 %477
        %481 = vset.pattern.permute.xlu0 0
        %482 = vperm.xlu0 %481, %v464
        %v483 = vpop.permute.xlu0 %482
        %v489 = vunpack.c.l.b16 %v456
        %v490 = vunpack.c.l.b16 %v457
        %v491 = vunpack.c.l.b16 %v458
        %v492 = vunpack.c.l.b16 %v459
        %v493 = vpack.c.b16 %v490, %v489
        %v494 = vpack.c.b16 %v492, %v491
        %vm495 = vcmask 15360
        %v497 = vsel %vm495, %v493, 0
        %v500 = vsel %vm495, %v494, 0
        %vm502 = vcmask 1040384
        %v504 = vsel %vm502, %v460, 0
        %506 = vmatprep.subr.bf16.mxu0 0
        %507 = vmatpush1.bf16.msra.mxu0 %v504
        %508 = vmatprep.subr.bf16.mxu0 0
        %509 = vmatpush1.bf16.msra.mxu0 0
        %510 = vmatprep.subr.bf16.mxu0 0
        %511 = vmatpush1.bf16.msra.mxu0 0
        %512 = vmatprep.subr.bf16.mxu0 0
        %513 = vmatpush1.bf16.msra.mxu0 0
        %514 = vmatprep.subr.bf16.mxu0 0
        %515 = vmatpush1.bf16.msra.mxu0 0
        %516 = vmatprep.subr.bf16.mxu0 0
        %517 = vmatpush1.bf16.msra.mxu0 0
        %518 = vmatprep.subr.bf16.mxu0 0
        %519 = vmatpush1.bf16.msra.mxu0 0
        %520 = vmatprep.subr.bf16.mxu0 0
        %521 = vmatpush1.bf16.msra.mxu0 0
        %522 = vmatprep.subr.bf16.mxu0 0
        %523 = vmatpush1.bf16.msra.mxu0 0
        %524 = vmatprep.subr.bf16.mxu0 0
        %525 = vmatpush1.bf16.msra.mxu0 0
        %526 = vmatprep.subr.bf16.mxu0 0
        %527 = vmatpush1.bf16.msra.mxu0 0
        %528 = vmatprep.subr.bf16.mxu0 0
        %529 = vmatpush1.bf16.msra.mxu0 0
        %530 = vmatprep.subr.bf16.mxu0 0
        %531 = vmatpush1.bf16.msra.mxu0 0
        %532 = vmatprep.subr.bf16.mxu0 0
        %533 = vmatpush1.bf16.msra.mxu0 0
        %534 = vmatprep.subr.bf16.mxu0 0
        %535 = vmatpush1.bf16.msra.mxu0 0
        %536 = vmatprep.subr.bf16.mxu0 0
        %537 = vmatpush1.bf16.msra.mxu0 0
        %538 = vmatprep.mubr.bf16.mxu0 0
        %539 = vmatmul.mubr.bf16.gmra.mrb[0].mxu0 %v497
        %v540 = vpop.f32.mrb[0].mxu0
        %v541 = vadd.f32 %v468, %v540
        %v542 = vpop.f32.mrb[0].mxu0
        %v543 = vpop.f32.mrb[0].mxu0
        %v544 = vadd.f32 %v473, %v543
        %v545 = vpop.f32.mrb[0].mxu0
        %546 = vmatprep.mubr.bf16.mxu0 0
        %547 = vmatmul.mubr.bf16.gmra.mrb[0].mxu0 %v500
        %v548 = vpop.f32.mrb[0].mxu0
        %v549 = vadd.f32 %v478, %v548
        %v550 = vpop.f32.mrb[0].mxu0
        %v551 = vpop.f32.mrb[0].mxu0
        %v552 = vadd.f32 %v483, %v551
        %v553 = vpop.f32.mrb[0].mxu0
        %554 = vdwg.mxu0
        %v556 = vlaneseq
        %v557 = vshrl.u32 %v556, 7
        %v558 = vsub.s32 0, %v557
        %v559 = vrot.slane %v455, %v558
        %v561 = vmul.f32 %v541, %v559
        %v562 = vmul.f32 %v544, %v559
        %v563 = vmul.f32 %v549, %v559
        %v564 = vmul.f32 %v552, %v559
        %v565 = vlaneseq
        %v566 = vand.u32 %v565, 127
        %567 = vrot.lane.b32.xlu0 %v561, 1
        %v568 = vpop.permute.xlu0 %567
        %569 = vrot.lane.b32.xlu0 %v562, 1
        %v570 = vpop.permute.xlu0 %569
        %571 = vrot.lane.b32.xlu0 %v563, 1
        %v572 = vpop.permute.xlu0 %571
        %573 = vrot.lane.b32.xlu0 %v564, 1
        %v574 = vpop.permute.xlu0 %573
        %vm575 = vcmp.ge.s32.totalorder %v566, 1
        %vm576 = vcmp.lt.s32.totalorder %v566, 128
        %vm577 = vmand %vm575, %vm576
        %v578 = vsel %vm577, %v568, 0.0
        %v579 = vsel %vm577, %v570, 0.0
        %v580 = vsel %vm577, %v572, 0.0
        %v581 = vsel %vm577, %v574, 0.0
        %582 = vrot.lane.b32.xlu0 %v561, 127
        %v583 = vpop.permute.xlu0 %582
        %584 = vrot.lane.b32.xlu0 %v562, 127
        %v585 = vpop.permute.xlu0 %584
        %586 = vrot.lane.b32.xlu0 %v563, 127
        %v587 = vpop.permute.xlu0 %586
        %588 = vrot.lane.b32.xlu0 %v564, 127
        %v589 = vpop.permute.xlu0 %588
        %vm590 = vcmp.ge.s32.totalorder %v566, 0
        %vm591 = vcmp.lt.s32.totalorder %v566, 127
        %vm592 = vmand %vm590, %vm591
        %v593 = vsel %vm592, %v583, 0.0
        %v594 = vsel %vm592, %v585, 0.0
        %v595 = vsel %vm592, %v587, 0.0
        %v596 = vsel %vm592, %v589, 0.0
        %v597 = vpack.c.bf16 %v579, %v578
        %v598 = vpack.c.bf16 %v581, %v580
        %v599 = vpack.c.bf16 %v562, %v561
        %v600 = vpack.c.bf16 %v564, %v563
        %v601 = vpack.c.bf16 %v594, %v593
        %v602 = vpack.c.bf16 %v596, %v595
        %v603 = vld [vmem:[#allocation6] sm:$0xf]
        %v604 = vld [vmem:[#allocation6 + $0x4] sm:$0xf]
        %v605 = vld [vmem:[#allocation6 + $0x8] sm:$0xf]
        %v606 = vld [vmem:[#allocation6 + $0xc] sm:$0xf]
        %v607 = vld [vmem:[#allocation6 + $0x10] sm:$0xf]
        %v608 = vld [vmem:[#allocation6 + $0x14] sm:$0xf]
        %v609 = vld [vmem:[#allocation6 + $0x18] sm:$0xf]
        %v610 = vld [vmem:[#allocation6 + $0x1c] sm:$0xf]
        %v611 = vld [vmem:[%s387] sm:$0xff]
        %v612 = vld [vmem:[%s387 + $0x8] sm:$0xff]
        %v613 = vld [vmem:[%s387 + $0x10] sm:$0xff]
        %v614 = vld [vmem:[%s387 + $0x18] sm:$0xff]
        %v615 = vld [vmem:[%s387 + $0x20] sm:$0xff]
        %v616 = vld [vmem:[%s387 + $0x28] sm:$0xff]
        %v617 = vld [vmem:[%s387 + $0x30] sm:$0xff]
        %v618 = vld [vmem:[%s387 + $0x38] sm:$0xff]
        %620 = vset.pattern.permute.xlu0 0
        %621 = vperm.xlu0 %620, %v611
        %v622 = vpop.permute.xlu0 %621
        %625 = vset.pattern.permute.xlu0 0
        %626 = vperm.xlu0 %625, %v612
        %v627 = vpop.permute.xlu0 %626
        %630 = vset.pattern.permute.xlu0 0
        %631 = vperm.xlu0 %630, %v613
        %v632 = vpop.permute.xlu0 %631
        %635 = vset.pattern.permute.xlu0 0
        %636 = vperm.xlu0 %635, %v614
        %v637 = vpop.permute.xlu0 %636
        %640 = vset.pattern.permute.xlu0 0
        %641 = vperm.xlu0 %640, %v615
        %v642 = vpop.permute.xlu0 %641
        %645 = vset.pattern.permute.xlu0 0
        %646 = vperm.xlu0 %645, %v616
        %v647 = vpop.permute.xlu0 %646
        %650 = vset.pattern.permute.xlu0 0
        %651 = vperm.xlu0 %650, %v617
        %v652 = vpop.permute.xlu0 %651
        %655 = vset.pattern.permute.xlu0 0
        %656 = vperm.xlu0 %655, %v618
        %v657 = vpop.permute.xlu0 %656
        %v667 = vunpack.c.l.b16 %v603
        %v668 = vunpack.c.l.b16 %v604
        %v669 = vunpack.c.l.b16 %v605
        %v670 = vunpack.c.l.b16 %v606
        %v671 = vunpack.c.l.b16 %v607
        %v672 = vunpack.c.l.b16 %v608
        %v673 = vunpack.c.l.b16 %v609
        %v674 = vunpack.c.l.b16 %v610
        %v675 = vpack.c.b16 %v668, %v667
        %v676 = vpack.c.b16 %v670, %v669
        %v677 = vpack.c.b16 %v672, %v671
        %v678 = vpack.c.b16 %v674, %v673
        %vm679 = vcmask 785408
        %v681 = vsel %vm679, %v675, 0
        %v684 = vsel %vm679, %v676, 0
        %v687 = vsel %vm679, %v677, 0
        %v690 = vsel %vm679, %v678, 0
        %692 = vmatprep.subr.bf16.mxu0 0
        %693 = vmatpush1.bf16.msra.mxu0 %v597
        %694 = vmatprep.subr.bf16.mxu0 0
        %695 = vmatpush1.bf16.msra.mxu0 %v598
        %696 = vmatprep.subr.bf16.mxu0 0
        %697 = vmatpush1.bf16.msra.mxu0 %v599
        %698 = vmatprep.subr.bf16.mxu0 0
        %699 = vmatpush1.bf16.msra.mxu0 %v600
        %700 = vmatprep.subr.bf16.mxu0 0
        %701 = vmatpush1.bf16.msra.mxu0 %v601
        %702 = vmatprep.subr.bf16.mxu0 0
        %703 = vmatpush1.bf16.msra.mxu0 %v602
        %704 = vmatprep.subr.bf16.mxu0 0
        %705 = vmatpush1.bf16.msra.mxu0 0
        %706 = vmatprep.subr.bf16.mxu0 0
        %707 = vmatpush1.bf16.msra.mxu0 0
        %708 = vmatprep.subr.bf16.mxu0 0
        %709 = vmatpush1.bf16.msra.mxu0 0
        %710 = vmatprep.subr.bf16.mxu0 0
        %711 = vmatpush1.bf16.msra.mxu0 0
        %712 = vmatprep.subr.bf16.mxu0 0
        %713 = vmatpush1.bf16.msra.mxu0 0
        %714 = vmatprep.subr.bf16.mxu0 0
        %715 = vmatpush1.bf16.msra.mxu0 0
        %716 = vmatprep.subr.bf16.mxu0 0
        %717 = vmatpush1.bf16.msra.mxu0 0
        %718 = vmatprep.subr.bf16.mxu0 0
        %719 = vmatpush1.bf16.msra.mxu0 0
        %720 = vmatprep.subr.bf16.mxu0 0
        %721 = vmatpush1.bf16.msra.mxu0 0
        %722 = vmatprep.subr.bf16.mxu0 0
        %723 = vmatpush1.bf16.msra.mxu0 0
        %724 = vmatprep.mubr.bf16.mxu0 0
        %725 = vmatmul.mubr.bf16.gmra.mrb[0].mxu0 %v681
        %v726 = vpop.f32.mrb[0].mxu0
        %v727 = vadd.f32 %v622, %v726
        %v728 = vpop.f32.mrb[0].mxu0
        %v729 = vpop.f32.mrb[0].mxu0
        %v730 = vadd.f32 %v627, %v729
        %v731 = vpop.f32.mrb[0].mxu0
        %732 = vmatprep.mubr.bf16.mxu0 0
        %733 = vmatmul.mubr.bf16.gmra.mrb[0].mxu0 %v684
        %v734 = vpop.f32.mrb[0].mxu0
        %v735 = vadd.f32 %v632, %v734
        %v736 = vpop.f32.mrb[0].mxu0
        %v737 = vpop.f32.mrb[0].mxu0
        %v738 = vadd.f32 %v637, %v737
        %v739 = vpop.f32.mrb[0].mxu0
        %740 = vmatprep.mubr.bf16.mxu0 0
        %741 = vmatmul.mubr.bf16.gmra.mrb[0].mxu0 %v687
        %v742 = vpop.f32.mrb[0].mxu0
        %v743 = vadd.f32 %v642, %v742
        %v744 = vpop.f32.mrb[0].mxu0
        %v745 = vpop.f32.mrb[0].mxu0
        %v746 = vadd.f32 %v647, %v745
        %v747 = vpop.f32.mrb[0].mxu0
        %748 = vmatprep.mubr.bf16.mxu0 0
        %749 = vmatmul.mubr.bf16.gmra.mrb[0].mxu0 %v690
        %v750 = vpop.f32.mrb[0].mxu0
        %v751 = vadd.f32 %v652, %v750
        %v752 = vpop.f32.mrb[0].mxu0
        %v753 = vpop.f32.mrb[0].mxu0
        %v754 = vadd.f32 %v657, %v753
        %v755 = vpop.f32.mrb[0].mxu0
        %756 = vdwg.mxu0
        %v757 = vtanh.pop %v727
        %v758 = vtanh.pop %v730
        %v759 = vtanh.pop %v735
        %v760 = vtanh.pop %v738
        %v761 = vmul.f32 %v743, 0.5
        %v762 = vmul.f32 %v746, 0.5
        %v763 = vmul.f32 %v751, 0.5
        %v764 = vmul.f32 %v754, 0.5
        %v765 = vtanh.pop %v761
        %v766 = vtanh.pop %v762
        %v767 = vtanh.pop %v763
        %v768 = vtanh.pop %v764
        %v769 = vadd.f32 %v765, 1.0
        %v770 = vadd.f32 %v766, 1.0
        %v771 = vadd.f32 %v767, 1.0
        %v772 = vadd.f32 %v768, 1.0
        %v773 = vmul.f32 %v769, 0.5
        %v774 = vmul.f32 %v770, 0.5
        %v775 = vmul.f32 %v771, 0.5
        %v776 = vmul.f32 %v772, 0.5
        %v777 = vmul.f32 %v757, %v773
        %v778 = vmul.f32 %v758, %v774
        %v779 = vmul.f32 %v759, %v775
        %v780 = vmul.f32 %v760, %v776
        %v781 = vpack.c.bf16 %v778, %v777
        %v782 = vpack.c.bf16 %v780, %v779
        %v783 = vld [vmem:[%s6] sm:$0xf]
        %v784 = vld [vmem:[%s6 + $0x4] sm:$0xf]
        %v785 = vld [vmem:[%s6 + $0x8] sm:$0xf]
        %v786 = vld [vmem:[%s6 + $0xc] sm:$0xf]
        %v787 = vld [vmem:[%s6 + $0x10] sm:$0xf]
        %v788 = vld [vmem:[%s6 + $0x14] sm:$0xf]
        %v789 = vld [vmem:[%s6 + $0x18] sm:$0xf]
        %v790 = vld [vmem:[%s6 + $0x1c] sm:$0xf]
        %v791 = vld [vmem:[#allocation7] sm:$0xff]
        %v792 = vld [vmem:[#allocation7 + $0x8] sm:$0xff]
        %v793 = vld [vmem:[#allocation7 + $0x10] sm:$0xff]
        %v794 = vld [vmem:[#allocation7 + $0x18] sm:$0xff]
        %v795 = vld [vmem:[#allocation7 + $0x20] sm:$0xff]
        %v796 = vld [vmem:[#allocation7 + $0x28] sm:$0xff]
        %v797 = vld [vmem:[#allocation7 + $0x30] sm:$0xff]
        %v798 = vld [vmem:[#allocation7 + $0x38] sm:$0xff]
        %800 = vset.pattern.permute.xlu0 0
        %801 = vperm.xlu0 %800, %v791
        %v802 = vpop.permute.xlu0 %801
        %805 = vset.pattern.permute.xlu0 0
        %806 = vperm.xlu0 %805, %v792
        %v807 = vpop.permute.xlu0 %806
        %810 = vset.pattern.permute.xlu0 0
        %811 = vperm.xlu0 %810, %v793
        %v812 = vpop.permute.xlu0 %811
        %815 = vset.pattern.permute.xlu0 0
        %816 = vperm.xlu0 %815, %v794
        %v817 = vpop.permute.xlu0 %816
        %820 = vset.pattern.permute.xlu0 0
        %821 = vperm.xlu0 %820, %v795
        %v822 = vpop.permute.xlu0 %821
        %825 = vset.pattern.permute.xlu0 0
        %826 = vperm.xlu0 %825, %v796
        %v827 = vpop.permute.xlu0 %826
        %830 = vset.pattern.permute.xlu0 0
        %831 = vperm.xlu0 %830, %v797
        %v832 = vpop.permute.xlu0 %831
        %835 = vset.pattern.permute.xlu0 0
        %836 = vperm.xlu0 %835, %v798
        %v837 = vpop.permute.xlu0 %836
        %v847 = vunpack.c.l.b16 %v783
        %v848 = vunpack.c.l.b16 %v784
        %v849 = vunpack.c.l.b16 %v785
        %v850 = vunpack.c.l.b16 %v786
        %v851 = vunpack.c.l.b16 %v787
        %v852 = vunpack.c.l.b16 %v788
        %v853 = vunpack.c.l.b16 %v789
        %v854 = vunpack.c.l.b16 %v790
        %v855 = vpack.c.b16 %v848, %v847
        %v856 = vpack.c.b16 %v850, %v849
        %v857 = vpack.c.b16 %v852, %v851
        %v858 = vpack.c.b16 %v854, %v853
        %vm859 = vcmask 261120
        %v861 = vsel %vm859, %v855, 0
        %v864 = vsel %vm859, %v856, 0
        %v867 = vsel %vm859, %v857, 0
        %v870 = vsel %vm859, %v858, 0
        %872 = vmatprep.subr.bf16.mxu0 0
        %873 = vmatpush1.bf16.msra.mxu0 %v781
        %874 = vmatprep.subr.bf16.mxu0 0
        %875 = vmatpush1.bf16.msra.mxu0 %v782
        %876 = vmatprep.subr.bf16.mxu0 0
        %877 = vmatpush1.bf16.msra.mxu0 0
        %878 = vmatprep.subr.bf16.mxu0 0
        %879 = vmatpush1.bf16.msra.mxu0 0
        %880 = vmatprep.subr.bf16.mxu0 0
        %881 = vmatpush1.bf16.msra.mxu0 0
        %882 = vmatprep.subr.bf16.mxu0 0
        %883 = vmatpush1.bf16.msra.mxu0 0
        %884 = vmatprep.subr.bf16.mxu0 0
        %885 = vmatpush1.bf16.msra.mxu0 0
        %886 = vmatprep.subr.bf16.mxu0 0
        %887 = vmatpush1.bf16.msra.mxu0 0
        %888 = vmatprep.subr.bf16.mxu0 0
        %889 = vmatpush1.bf16.msra.mxu0 0
        %890 = vmatprep.subr.bf16.mxu0 0
        %891 = vmatpush1.bf16.msra.mxu0 0
        %892 = vmatprep.subr.bf16.mxu0 0
        %893 = vmatpush1.bf16.msra.mxu0 0
        %894 = vmatprep.subr.bf16.mxu0 0
        %895 = vmatpush1.bf16.msra.mxu0 0
        %896 = vmatprep.subr.bf16.mxu0 0
        %897 = vmatpush1.bf16.msra.mxu0 0
        %898 = vmatprep.subr.bf16.mxu0 0
        %899 = vmatpush1.bf16.msra.mxu0 0
        %900 = vmatprep.subr.bf16.mxu0 0
        %901 = vmatpush1.bf16.msra.mxu0 0
        %902 = vmatprep.subr.bf16.mxu0 0
        %903 = vmatpush1.bf16.msra.mxu0 0
        %904 = vmatprep.mubr.bf16.mxu0 0
        %905 = vmatmul.mubr.bf16.gmra.mrb[0].mxu0 %v861
        %v906 = vpop.f32.mrb[0].mxu0
        %v907 = vadd.f32 %v802, %v906
        %v908 = vpop.f32.mrb[0].mxu0
        %v909 = vpop.f32.mrb[0].mxu0
        %v910 = vadd.f32 %v807, %v909
        %v911 = vpop.f32.mrb[0].mxu0
        %912 = vmatprep.mubr.bf16.mxu0 0
        %913 = vmatmul.mubr.bf16.gmra.mrb[0].mxu0 %v864
        %v914 = vpop.f32.mrb[0].mxu0
        %v915 = vadd.f32 %v812, %v914
        %v916 = vpop.f32.mrb[0].mxu0
        %v917 = vpop.f32.mrb[0].mxu0
        %v918 = vadd.f32 %v817, %v917
        %v919 = vpop.f32.mrb[0].mxu0
        %920 = vmatprep.mubr.bf16.mxu0 0
        %921 = vmatmul.mubr.bf16.gmra.mrb[0].mxu0 %v867
        %v922 = vpop.f32.mrb[0].mxu0
        %v923 = vadd.f32 %v822, %v922
        %v924 = vpop.f32.mrb[0].mxu0
        %v925 = vpop.f32.mrb[0].mxu0
        %v926 = vadd.f32 %v827, %v925
        %v927 = vpop.f32.mrb[0].mxu0
        %928 = vmatprep.mubr.bf16.mxu0 0
        %929 = vmatmul.mubr.bf16.gmra.mrb[0].mxu0 %v870
        %v930 = vpop.f32.mrb[0].mxu0
        %v931 = vadd.f32 %v832, %v930
        %v932 = vpop.f32.mrb[0].mxu0
        %v933 = vpop.f32.mrb[0].mxu0
        %v934 = vadd.f32 %v837, %v933
        %v935 = vpop.f32.mrb[0].mxu0
        %936 = vdwg.mxu0
        %v937 = vadd.f32 %v561, %v907
        %v938 = vadd.f32 %v562, %v910
        %v939 = vadd.f32 %v563, %v915
        %v940 = vadd.f32 %v564, %v918
        %v941 = vmul.f32 %v937, %v559
        %v942 = vmul.f32 %v938, %v559
        %v943 = vmul.f32 %v939, %v559
        %v944 = vmul.f32 %v940, %v559
        %v945 = vadd.f32 %v923, 0.0
        %v946 = vadd.f32 %v926, 0.0
        %v947 = vadd.f32 %v931, 0.0
        %v948 = vadd.f32 %v934, 0.0
        %949 = vrot.lane.b32.xlu0 %v941, 2
        %v950 = vpop.permute.xlu0 %949
        %951 = vrot.lane.b32.xlu0 %v942, 2
        %v952 = vpop.permute.xlu0 %951
        %953 = vrot.lane.b32.xlu0 %v943, 2
        %v954 = vpop.permute.xlu0 %953
        %955 = vrot.lane.b32.xlu0 %v944, 2
        %v956 = vpop.permute.xlu0 %955
        %vm957 = vcmp.ge.s32.totalorder %v566, 2
        %vm958 = vmand %vm957, %vm576
        %v959 = vsel %vm958, %v950, 0.0
        %v960 = vsel %vm958, %v952, 0.0
        %v961 = vsel %vm958, %v954, 0.0
        %v962 = vsel %vm958, %v956, 0.0
        %963 = vrot.lane.b32.xlu0 %v941, 126
        %v964 = vpop.permute.xlu0 %963
        %965 = vrot.lane.b32.xlu0 %v942, 126
        %v966 = vpop.permute.xlu0 %965
        %967 = vrot.lane.b32.xlu0 %v943, 126
        %v968 = vpop.permute.xlu0 %967
        %969 = vrot.lane.b32.xlu0 %v944, 126
        %v970 = vpop.permute.xlu0 %969
        %vm971 = vcmp.lt.s32.totalorder %v566, 126
        %vm972 = vmand %vm590, %vm971
        %v973 = vsel %vm972, %v964, 0.0
        %v974 = vsel %vm972, %v966, 0.0
        %v975 = vsel %vm972, %v968, 0.0
        %v976 = vsel %vm972, %v970, 0.0
        %v977 = vpack.c.bf16 %v960, %v959
        %v978 = vpack.c.bf16 %v962, %v961
        %v979 = vpack.c.bf16 %v942, %v941
        %v980 = vpack.c.bf16 %v944, %v943
        %v981 = vpack.c.bf16 %v974, %v973
        %v982 = vpack.c.bf16 %v976, %v975
        %s983 = scalar_lea.vmem [#allocation6], 32
        %v984 = vld [vmem:[%s983] sm:$0xf]
        %v985 = vld [vmem:[%s983 + $0x4] sm:$0xf]
        %v986 = vld [vmem:[%s983 + $0x8] sm:$0xf]
        %v987 = vld [vmem:[%s983 + $0xc] sm:$0xf]
        %v988 = vld [vmem:[%s983 + $0x10] sm:$0xf]
        %v989 = vld [vmem:[%s983 + $0x14] sm:$0xf]
        %v990 = vld [vmem:[%s983 + $0x18] sm:$0xf]
        %v991 = vld [vmem:[%s983 + $0x1c] sm:$0xf]
        %s992 = scalar_lea.vmem %s387, 64 [#allocation2]
        %v993 = vld [vmem:[%s992] sm:$0xff]
        %v994 = vld [vmem:[%s992 + $0x8] sm:$0xff]
        %v995 = vld [vmem:[%s992 + $0x10] sm:$0xff]
        %v996 = vld [vmem:[%s992 + $0x18] sm:$0xff]
        %v997 = vld [vmem:[%s992 + $0x20] sm:$0xff]
        %v998 = vld [vmem:[%s992 + $0x28] sm:$0xff]
        %v999 = vld [vmem:[%s992 + $0x30] sm:$0xff]
        %v1000 = vld [vmem:[%s992 + $0x38] sm:$0xff]
        %1002 = vset.pattern.permute.xlu0 0
        %1003 = vperm.xlu0 %1002, %v993
        %v1004 = vpop.permute.xlu0 %1003
        %1007 = vset.pattern.permute.xlu0 0
        %1008 = vperm.xlu0 %1007, %v994
        %v1009 = vpop.permute.xlu0 %1008
        %1012 = vset.pattern.permute.xlu0 0
        %1013 = vperm.xlu0 %1012, %v995
        %v1014 = vpop.permute.xlu0 %1013
        %1017 = vset.pattern.permute.xlu0 0
        %1018 = vperm.xlu0 %1017, %v996
        %v1019 = vpop.permute.xlu0 %1018
        %1022 = vset.pattern.permute.xlu0 0
        %1023 = vperm.xlu0 %1022, %v997
        %v1024 = vpop.permute.xlu0 %1023
        %1027 = vset.pattern.permute.xlu0 0
        %1028 = vperm.xlu0 %1027, %v998
        %v1029 = vpop.permute.xlu0 %1028
        %1032 = vset.pattern.permute.xlu0 0
        %1033 = vperm.xlu0 %1032, %v999
        %v1034 = vpop.permute.xlu0 %1033
        %1037 = vset.pattern.permute.xlu0 0
        %1038 = vperm.xlu0 %1037, %v1000
        %v1039 = vpop.permute.xlu0 %1038
        %v1049 = vunpack.c.l.b16 %v984
        %v1050 = vunpack.c.l.b16 %v985
        %v1051 = vunpack.c.l.b16 %v986
        %v1052 = vunpack.c.l.b16 %v987
        %v1053 = vunpack.c.l.b16 %v988
        %v1054 = vunpack.c.l.b16 %v989
        %v1055 = vunpack.c.l.b16 %v990
        %v1056 = vunpack.c.l.b16 %v991
        %v1057 = vpack.c.b16 %v1050, %v1049
        %v1058 = vpack.c.b16 %v1052, %v1051
        %v1059 = vpack.c.b16 %v1054, %v1053
        %v1060 = vpack.c.b16 %v1056, %v1055
        %v1062 = vsel %vm679, %v1057, 0
        %v1065 = vsel %vm679, %v1058, 0
        %v1068 = vsel %vm679, %v1059, 0
        %v1071 = vsel %vm679, %v1060, 0
        %1073 = vmatprep.subr.bf16.mxu0 0
        %1074 = vmatpush1.bf16.msra.mxu0 %v977
        %1075 = vmatprep.subr.bf16.mxu0 0
        %1076 = vmatpush1.bf16.msra.mxu0 %v978
        %1077 = vmatprep.subr.bf16.mxu0 0
        %1078 = vmatpush1.bf16.msra.mxu0 %v979
        %1079 = vmatprep.subr.bf16.mxu0 0
        %1080 = vmatpush1.bf16.msra.mxu0 %v980
        %1081 = vmatprep.subr.bf16.mxu0 0
        %1082 = vmatpush1.bf16.msra.mxu0 %v981
        %1083 = vmatprep.subr.bf16.mxu0 0
        %1084 = vmatpush1.bf16.msra.mxu0 %v982
        %1085 = vmatprep.subr.bf16.mxu0 0
        %1086 = vmatpush1.bf16.msra.mxu0 0
        %1087 = vmatprep.subr.bf16.mxu0 0
        %1088 = vmatpush1.bf16.msra.mxu0 0
        %1089 = vmatprep.subr.bf16.mxu0 0
        %1090 = vmatpush1.bf16.msra.mxu0 0
        %1091 = vmatprep.subr.bf16.mxu0 0
        %1092 = vmatpush1.bf16.msra.mxu0 0
        %1093 = vmatprep.subr.bf16.mxu0 0
        %1094 = vmatpush1.bf16.msra.mxu0 0
        %1095 = vmatprep.subr.bf16.mxu0 0
        %1096 = vmatpush1.bf16.msra.mxu0 0
        %1097 = vmatprep.subr.bf16.mxu0 0
        %1098 = vmatpush1.bf16.msra.mxu0 0
        %1099 = vmatprep.subr.bf16.mxu0 0
        %1100 = vmatpush1.bf16.msra.mxu0 0
        %1101 = vmatprep.subr.bf16.mxu0 0
        %1102 = vmatpush1.bf16.msra.mxu0 0
        %1103 = vmatprep.subr.bf16.mxu0 0
        %1104 = vmatpush1.bf16.msra.mxu0 0
        %1105 = vmatprep.mubr.bf16.mxu0 0
        %1106 = vmatmul.mubr.bf16.gmra.mrb[0].mxu0 %v1062
        %v1107 = vpop.f32.mrb[0].mxu0
        %v1108 = vadd.f32 %v1004, %v1107
        %v1109 = vpop.f32.mrb[0].mxu0
        %v1110 = vpop.f32.mrb[0].mxu0
        %v1111 = vadd.f32 %v1009, %v1110
        %v1112 = vpop.f32.mrb[0].mxu0
        %1113 = vmatprep.mubr.bf16.mxu0 0
        %1114 = vmatmul.mubr.bf16.gmra.mrb[0].mxu0 %v1065
        %v1115 = vpop.f32.mrb[0].mxu0
        %v1116 = vadd.f32 %v1014, %v1115
        %v1117 = vpop.f32.mrb[0].mxu0
        %v1118 = vpop.f32.mrb[0].mxu0
        %v1119 = vadd.f32 %v1019, %v1118
        %v1120 = vpop.f32.mrb[0].mxu0
        %1121 = vmatprep.mubr.bf16.mxu0 0
        %1122 = vmatmul.mubr.bf16.gmra.mrb[0].mxu0 %v1068
        %v1123 = vpop.f32.mrb[0].mxu0
        %v1124 = vadd.f32 %v1024, %v1123
        %v1125 = vpop.f32.mrb[0].mxu0
        %v1126 = vpop.f32.mrb[0].mxu0
        %v1127 = vadd.f32 %v1029, %v1126
        %v1128 = vpop.f32.mrb[0].mxu0
        %1129 = vmatprep.mubr.bf16.mxu0 0
        %1130 = vmatmul.mubr.bf16.gmra.mrb[0].mxu0 %v1071
        %v1131 = vpop.f32.mrb[0].mxu0
        %v1132 = vadd.f32 %v1034, %v1131
        %v1133 = vpop.f32.mrb[0].mxu0
        %v1134 = vpop.f32.mrb[0].mxu0
        %v1135 = vadd.f32 %v1039, %v1134
        %v1136 = vpop.f32.mrb[0].mxu0
        %1137 = vdwg.mxu0
        %v1138 = vtanh.pop %v1108
        %v1139 = vtanh.pop %v1111
        %v1140 = vtanh.pop %v1116
        %v1141 = vtanh.pop %v1119
        %v1142 = vmul.f32 %v1124, 0.5
        %v1143 = vmul.f32 %v1127, 0.5
        %v1144 = vmul.f32 %v1132, 0.5
        %v1145 = vmul.f32 %v1135, 0.5
        %v1146 = vtanh.pop %v1142
        %v1147 = vtanh.pop %v1143
        %v1148 = vtanh.pop %v1144
        %v1149 = vtanh.pop %v1145
        %v1150 = vadd.f32 %v1146, 1.0
        %v1151 = vadd.f32 %v1147, 1.0
        %v1152 = vadd.f32 %v1148, 1.0
        %v1153 = vadd.f32 %v1149, 1.0
        %v1154 = vmul.f32 %v1150, 0.5
        %v1155 = vmul.f32 %v1151, 0.5
        %v1156 = vmul.f32 %v1152, 0.5
        %v1157 = vmul.f32 %v1153, 0.5
        %v1158 = vmul.f32 %v1138, %v1154
        %v1159 = vmul.f32 %v1139, %v1155
        %v1160 = vmul.f32 %v1140, %v1156
        %v1161 = vmul.f32 %v1141, %v1157
        %v1162 = vpack.c.bf16 %v1159, %v1158
        %v1163 = vpack.c.bf16 %v1161, %v1160
        %s1164 = scalar_lea.vmem %s6, 32
        %v1165 = vld [vmem:[%s1164] sm:$0xf]
        %v1166 = vld [vmem:[%s1164 + $0x4] sm:$0xf]
        %v1167 = vld [vmem:[%s1164 + $0x8] sm:$0xf]
        %v1168 = vld [vmem:[%s1164 + $0xc] sm:$0xf]
        %v1169 = vld [vmem:[%s1164 + $0x10] sm:$0xf]
        %v1170 = vld [vmem:[%s1164 + $0x14] sm:$0xf]
        %v1171 = vld [vmem:[%s1164 + $0x18] sm:$0xf]
        %v1172 = vld [vmem:[%s1164 + $0x1c] sm:$0xf]
        %s1173 = scalar_lea.vmem [#allocation7], 64
        %v1174 = vld [vmem:[%s1173] sm:$0xff]
        %v1175 = vld [vmem:[%s1173 + $0x8] sm:$0xff]
        %v1176 = vld [vmem:[%s1173 + $0x10] sm:$0xff]
        %v1177 = vld [vmem:[%s1173 + $0x18] sm:$0xff]
        %v1178 = vld [vmem:[%s1173 + $0x20] sm:$0xff]
        %v1179 = vld [vmem:[%s1173 + $0x28] sm:$0xff]
        %v1180 = vld [vmem:[%s1173 + $0x30] sm:$0xff]
        %v1181 = vld [vmem:[%s1173 + $0x38] sm:$0xff]
        %1183 = vset.pattern.permute.xlu0 0
        %1184 = vperm.xlu0 %1183, %v1174
        %v1185 = vpop.permute.xlu0 %1184
        %1188 = vset.pattern.permute.xlu0 0
        %1189 = vperm.xlu0 %1188, %v1175
        %v1190 = vpop.permute.xlu0 %1189
        %1193 = vset.pattern.permute.xlu0 0
        %1194 = vperm.xlu0 %1193, %v1176
        %v1195 = vpop.permute.xlu0 %1194
        %1198 = vset.pattern.permute.xlu0 0
        %1199 = vperm.xlu0 %1198, %v1177
        %v1200 = vpop.permute.xlu0 %1199
        %1203 = vset.pattern.permute.xlu0 0
        %1204 = vperm.xlu0 %1203, %v1178
        %v1205 = vpop.permute.xlu0 %1204
        %1208 = vset.pattern.permute.xlu0 0
        %1209 = vperm.xlu0 %1208, %v1179
        %v1210 = vpop.permute.xlu0 %1209
        %1213 = vset.pattern.permute.xlu0 0
        %1214 = vperm.xlu0 %1213, %v1180
        %v1215 = vpop.permute.xlu0 %1214
        %1218 = vset.pattern.permute.xlu0 0
        %1219 = vperm.xlu0 %1218, %v1181
        %v1220 = vpop.permute.xlu0 %1219
        %v1230 = vunpack.c.l.b16 %v1165
        %v1231 = vunpack.c.l.b16 %v1166
        %v1232 = vunpack.c.l.b16 %v1167
        %v1233 = vunpack.c.l.b16 %v1168
        %v1234 = vunpack.c.l.b16 %v1169
        %v1235 = vunpack.c.l.b16 %v1170
        %v1236 = vunpack.c.l.b16 %v1171
        %v1237 = vunpack.c.l.b16 %v1172
        %v1238 = vpack.c.b16 %v1231, %v1230
        %v1239 = vpack.c.b16 %v1233, %v1232
        %v1240 = vpack.c.b16 %v1235, %v1234
        %v1241 = vpack.c.b16 %v1237, %v1236
        %v1243 = vsel %vm859, %v1238, 0
        %v1246 = vsel %vm859, %v1239, 0
        %v1249 = vsel %vm859, %v1240, 0
        %v1252 = vsel %vm859, %v1241, 0
        %1254 = vmatprep.subr.bf16.mxu0 0
        %1255 = vmatpush1.bf16.msra.mxu0 %v1162
        %1256 = vmatprep.subr.bf16.mxu0 0
        %1257 = vmatpush1.bf16.msra.mxu0 %v1163
        %1258 = vmatprep.subr.bf16.mxu0 0
        %1259 = vmatpush1.bf16.msra.mxu0 0
        %1260 = vmatprep.subr.bf16.mxu0 0
        %1261 = vmatpush1.bf16.msra.mxu0 0
        %1262 = vmatprep.subr.bf16.mxu0 0
        %1263 = vmatpush1.bf16.msra.mxu0 0
        %1264 = vmatprep.subr.bf16.mxu0 0
        %1265 = vmatpush1.bf16.msra.mxu0 0
        %1266 = vmatprep.subr.bf16.mxu0 0
        %1267 = vmatpush1.bf16.msra.mxu0 0
        %1268 = vmatprep.subr.bf16.mxu0 0
        %1269 = vmatpush1.bf16.msra.mxu0 0
        %1270 = vmatprep.subr.bf16.mxu0 0
        %1271 = vmatpush1.bf16.msra.mxu0 0
        %1272 = vmatprep.subr.bf16.mxu0 0
        %1273 = vmatpush1.bf16.msra.mxu0 0
        %1274 = vmatprep.subr.bf16.mxu0 0
        %1275 = vmatpush1.bf16.msra.mxu0 0
        %1276 = vmatprep.subr.bf16.mxu0 0
        %1277 = vmatpush1.bf16.msra.mxu0 0
        %1278 = vmatprep.subr.bf16.mxu0 0
        %1279 = vmatpush1.bf16.msra.mxu0 0
        %1280 = vmatprep.subr.bf16.mxu0 0
        %1281 = vmatpush1.bf16.msra.mxu0 0
        %1282 = vmatprep.subr.bf16.mxu0 0
        %1283 = vmatpush1.bf16.msra.mxu0 0
        %1284 = vmatprep.subr.bf16.mxu0 0
        %1285 = vmatpush1.bf16.msra.mxu0 0
        %1286 = vmatprep.mubr.bf16.mxu0 0
        %1287 = vmatmul.mubr.bf16.gmra.mrb[0].mxu0 %v1243
        %v1288 = vpop.f32.mrb[0].mxu0
        %v1289 = vadd.f32 %v1185, %v1288
        %v1290 = vpop.f32.mrb[0].mxu0
        %v1291 = vpop.f32.mrb[0].mxu0
        %v1292 = vadd.f32 %v1190, %v1291
        %v1293 = vpop.f32.mrb[0].mxu0
        %1294 = vmatprep.mubr.bf16.mxu0 0
        %1295 = vmatmul.mubr.bf16.gmra.mrb[0].mxu0 %v1246
        %v1296 = vpop.f32.mrb[0].mxu0
        %v1297 = vadd.f32 %v1195, %v1296
        %v1298 = vpop.f32.mrb[0].mxu0
        %v1299 = vpop.f32.mrb[0].mxu0
        %v1300 = vadd.f32 %v1200, %v1299
        %v1301 = vpop.f32.mrb[0].mxu0
        %1302 = vmatprep.mubr.bf16.mxu0 0
        %1303 = vmatmul.mubr.bf16.gmra.mrb[0].mxu0 %v1249
        %v1304 = vpop.f32.mrb[0].mxu0
        %v1305 = vadd.f32 %v1205, %v1304
        %v1306 = vpop.f32.mrb[0].mxu0
        %v1307 = vpop.f32.mrb[0].mxu0
        %v1308 = vadd.f32 %v1210, %v1307
        %v1309 = vpop.f32.mrb[0].mxu0
        %1310 = vmatprep.mubr.bf16.mxu0 0
        %1311 = vmatmul.mubr.bf16.gmra.mrb[0].mxu0 %v1252
        %v1312 = vpop.f32.mrb[0].mxu0
        %v1313 = vadd.f32 %v1215, %v1312
        %v1314 = vpop.f32.mrb[0].mxu0
        %v1315 = vpop.f32.mrb[0].mxu0
        %v1316 = vadd.f32 %v1220, %v1315
        %v1317 = vpop.f32.mrb[0].mxu0
        %1318 = vdwg.mxu0
        %v1319 = vadd.f32 %v941, %v1289
        %v1320 = vadd.f32 %v942, %v1292
        %v1321 = vadd.f32 %v943, %v1297
        %v1322 = vadd.f32 %v944, %v1300
        %v1323 = vmul.f32 %v1319, %v559
        %v1324 = vmul.f32 %v1320, %v559
        %v1325 = vmul.f32 %v1321, %v559
        %v1326 = vmul.f32 %v1322, %v559
        %v1327 = vadd.f32 %v945, %v1305
        %v1328 = vadd.f32 %v946, %v1308
        %v1329 = vadd.f32 %v947, %v1313
        %v1330 = vadd.f32 %v948, %v1316
        %1331 = vrot.lane.b32.xlu0 %v1323, 4
        %v1332 = vpop.permute.xlu0 %1331
        %1333 = vrot.lane.b32.xlu0 %v1324, 4
        %v1334 = vpop.permute.xlu0 %1333
        %1335 = vrot.lane.b32.xlu0 %v1325, 4
        %v1336 = vpop.permute.xlu0 %1335
        %1337 = vrot.lane.b32.xlu0 %v1326, 4
        %v1338 = vpop.permute.xlu0 %1337
        %vm1339 = vcmp.ge.s32.totalorder %v566, 4
        %vm1340 = vmand %vm1339, %vm576
        %v1341 = vsel %vm1340, %v1332, 0.0
        %v1342 = vsel %vm1340, %v1334, 0.0
        %v1343 = vsel %vm1340, %v1336, 0.0
        %v1344 = vsel %vm1340, %v1338, 0.0
        %1345 = vrot.lane.b32.xlu0 %v1323, 124
        %v1346 = vpop.permute.xlu0 %1345
        %1347 = vrot.lane.b32.xlu0 %v1324, 124
        %v1348 = vpop.permute.xlu0 %1347
        %1349 = vrot.lane.b32.xlu0 %v1325, 124
        %v1350 = vpop.permute.xlu0 %1349
        %1351 = vrot.lane.b32.xlu0 %v1326, 124
        %v1352 = vpop.permute.xlu0 %1351
        %vm1353 = vcmp.lt.s32.totalorder %v566, 124
        %vm1354 = vmand %vm590, %vm1353
        %v1355 = vsel %vm1354, %v1346, 0.0
        %v1356 = vsel %vm1354, %v1348, 0.0
        %v1357 = vsel %vm1354, %v1350, 0.0
        %v1358 = vsel %vm1354, %v1352, 0.0
        %v1359 = vpack.c.bf16 %v1342, %v1341
        %v1360 = vpack.c.bf16 %v1344, %v1343
        %v1361 = vpack.c.bf16 %v1324, %v1323
        %v1362 = vpack.c.bf16 %v1326, %v1325
        %v1363 = vpack.c.bf16 %v1356, %v1355
        %v1364 = vpack.c.bf16 %v1358, %v1357
        %s1365 = scalar_lea.vmem [#allocation6], 64
        %v1366 = vld [vmem:[%s1365] sm:$0xf]
        %v1367 = vld [vmem:[%s1365 + $0x4] sm:$0xf]
        %v1368 = vld [vmem:[%s1365 + $0x8] sm:$0xf]
        %v1369 = vld [vmem:[%s1365 + $0xc] sm:$0xf]
        %v1370 = vld [vmem:[%s1365 + $0x10] sm:$0xf]
        %v1371 = vld [vmem:[%s1365 + $0x14] sm:$0xf]
        %v1372 = vld [vmem:[%s1365 + $0x18] sm:$0xf]
        %v1373 = vld [vmem:[%s1365 + $0x1c] sm:$0xf]
        %s1374 = scalar_lea.vmem %s387, 128 [#allocation2]
        %v1375 = vld [vmem:[%s1374] sm:$0xff]
        %v1376 = vld [vmem:[%s1374 + $0x8] sm:$0xff]
        %v1377 = vld [vmem:[%s1374 + $0x10] sm:$0xff]
        %v1378 = vld [vmem:[%s1374 + $0x18] sm:$0xff]
        %v1379 = vld [vmem:[%s1374 + $0x20] sm:$0xff]
        %v1380 = vld [vmem:[%s1374 + $0x28] sm:$0xff]
        %v1381 = vld [vmem:[%s1374 + $0x30] sm:$0xff]
        %v1382 = vld [vmem:[%s1374 + $0x38] sm:$0xff]
        %1384 = vset.pattern.permute.xlu0 0
        %1385 = vperm.xlu0 %1384, %v1375
        %v1386 = vpop.permute.xlu0 %1385
        %1389 = vset.pattern.permute.xlu0 0
        %1390 = vperm.xlu0 %1389, %v1376
        %v1391 = vpop.permute.xlu0 %1390
        %1394 = vset.pattern.permute.xlu0 0
        %1395 = vperm.xlu0 %1394, %v1377
        %v1396 = vpop.permute.xlu0 %1395
        %1399 = vset.pattern.permute.xlu0 0
        %1400 = vperm.xlu0 %1399, %v1378
        %v1401 = vpop.permute.xlu0 %1400
        %1404 = vset.pattern.permute.xlu0 0
        %1405 = vperm.xlu0 %1404, %v1379
        %v1406 = vpop.permute.xlu0 %1405
        %1409 = vset.pattern.permute.xlu0 0
        %1410 = vperm.xlu0 %1409, %v1380
        %v1411 = vpop.permute.xlu0 %1410
        %1414 = vset.pattern.permute.xlu0 0
        %1415 = vperm.xlu0 %1414, %v1381
        %v1416 = vpop.permute.xlu0 %1415
        %1419 = vset.pattern.permute.xlu0 0
        %1420 = vperm.xlu0 %1419, %v1382
        %v1421 = vpop.permute.xlu0 %1420
        %v1431 = vunpack.c.l.b16 %v1366
        %v1432 = vunpack.c.l.b16 %v1367
        %v1433 = vunpack.c.l.b16 %v1368
        %v1434 = vunpack.c.l.b16 %v1369
        %v1435 = vunpack.c.l.b16 %v1370
        %v1436 = vunpack.c.l.b16 %v1371
        %v1437 = vunpack.c.l.b16 %v1372
        %v1438 = vunpack.c.l.b16 %v1373
        %v1439 = vpack.c.b16 %v1432, %v1431
        %v1440 = vpack.c.b16 %v1434, %v1433
        %v1441 = vpack.c.b16 %v1436, %v1435
        %v1442 = vpack.c.b16 %v1438, %v1437
        %v1444 = vsel %vm679, %v1439, 0
        %v1447 = vsel %vm679, %v1440, 0
        %v1450 = vsel %vm679, %v1441, 0
        %v1453 = vsel %vm679, %v1442, 0
        %1455 = vmatprep.subr.bf16.mxu0 0
        %1456 = vmatpush1.bf16.msra.mxu0 %v1359
        %1457 = vmatprep.subr.bf16.mxu0 0
        %1458 = vmatpush1.bf16.msra.mxu0 %v1360
        %1459 = vmatprep.subr.bf16.mxu0 0
        %1460 = vmatpush1.bf16.msra.mxu0 %v1361
        %1461 = vmatprep.subr.bf16.mxu0 0
        %1462 = vmatpush1.bf16.msra.mxu0 %v1362
        %1463 = vmatprep.subr.bf16.mxu0 0
        %1464 = vmatpush1.bf16.msra.mxu0 %v1363
        %1465 = vmatprep.subr.bf16.mxu0 0
        %1466 = vmatpush1.bf16.msra.mxu0 %v1364
        %1467 = vmatprep.subr.bf16.mxu0 0
        %1468 = vmatpush1.bf16.msra.mxu0 0
        %1469 = vmatprep.subr.bf16.mxu0 0
        %1470 = vmatpush1.bf16.msra.mxu0 0
        %1471 = vmatprep.subr.bf16.mxu0 0
        %1472 = vmatpush1.bf16.msra.mxu0 0
        %1473 = vmatprep.subr.bf16.mxu0 0
        %1474 = vmatpush1.bf16.msra.mxu0 0
        %1475 = vmatprep.subr.bf16.mxu0 0
        %1476 = vmatpush1.bf16.msra.mxu0 0
        %1477 = vmatprep.subr.bf16.mxu0 0
        %1478 = vmatpush1.bf16.msra.mxu0 0
        %1479 = vmatprep.subr.bf16.mxu0 0
        %1480 = vmatpush1.bf16.msra.mxu0 0
        %1481 = vmatprep.subr.bf16.mxu0 0
        %1482 = vmatpush1.bf16.msra.mxu0 0
        %1483 = vmatprep.subr.bf16.mxu0 0
        %1484 = vmatpush1.bf16.msra.mxu0 0
        %1485 = vmatprep.subr.bf16.mxu0 0
        %1486 = vmatpush1.bf16.msra.mxu0 0
        %1487 = vmatprep.mubr.bf16.mxu0 0
        %1488 = vmatmul.mubr.bf16.gmra.mrb[0].mxu0 %v1444
        %v1489 = vpop.f32.mrb[0].mxu0
        %v1490 = vadd.f32 %v1386, %v1489
        %v1491 = vpop.f32.mrb[0].mxu0
        %v1492 = vpop.f32.mrb[0].mxu0
        %v1493 = vadd.f32 %v1391, %v1492
        %v1494 = vpop.f32.mrb[0].mxu0
        %1495 = vmatprep.mubr.bf16.mxu0 0
        %1496 = vmatmul.mubr.bf16.gmra.mrb[0].mxu0 %v1447
        %v1497 = vpop.f32.mrb[0].mxu0
        %v1498 = vadd.f32 %v1396, %v1497
        %v1499 = vpop.f32.mrb[0].mxu0
        %v1500 = vpop.f32.mrb[0].mxu0
        %v1501 = vadd.f32 %v1401, %v1500
        %v1502 = vpop.f32.mrb[0].mxu0
        %1503 = vmatprep.mubr.bf16.mxu0 0
        %1504 = vmatmul.mubr.bf16.gmra.mrb[0].mxu0 %v1450
        %v1505 = vpop.f32.mrb[0].mxu0
        %v1506 = vadd.f32 %v1406, %v1505
        %v1507 = vpop.f32.mrb[0].mxu0
        %v1508 = vpop.f32.mrb[0].mxu0
        %v1509 = vadd.f32 %v1411, %v1508
        %v1510 = vpop.f32.mrb[0].mxu0
        %1511 = vmatprep.mubr.bf16.mxu0 0
        %1512 = vmatmul.mubr.bf16.gmra.mrb[0].mxu0 %v1453
        %v1513 = vpop.f32.mrb[0].mxu0
        %v1514 = vadd.f32 %v1416, %v1513
        %v1515 = vpop.f32.mrb[0].mxu0
        %v1516 = vpop.f32.mrb[0].mxu0
        %v1517 = vadd.f32 %v1421, %v1516
        %v1518 = vpop.f32.mrb[0].mxu0
        %1519 = vdwg.mxu0
        %v1520 = vtanh.pop %v1490
        %v1521 = vtanh.pop %v1493
        %v1522 = vtanh.pop %v1498
        %v1523 = vtanh.pop %v1501
        %v1524 = vmul.f32 %v1506, 0.5
        %v1525 = vmul.f32 %v1509, 0.5
        %v1526 = vmul.f32 %v1514, 0.5
        %v1527 = vmul.f32 %v1517, 0.5
        %v1528 = vtanh.pop %v1524
        %v1529 = vtanh.pop %v1525
        %v1530 = vtanh.pop %v1526
        %v1531 = vtanh.pop %v1527
        %v1532 = vadd.f32 %v1528, 1.0
        %v1533 = vadd.f32 %v1529, 1.0
        %v1534 = vadd.f32 %v1530, 1.0
        %v1535 = vadd.f32 %v1531, 1.0
        %v1536 = vmul.f32 %v1532, 0.5
        %v1537 = vmul.f32 %v1533, 0.5
        %v1538 = vmul.f32 %v1534, 0.5
        %v1539 = vmul.f32 %v1535, 0.5
        %v1540 = vmul.f32 %v1520, %v1536
        %v1541 = vmul.f32 %v1521, %v1537
        %v1542 = vmul.f32 %v1522, %v1538
        %v1543 = vmul.f32 %v1523, %v1539
        %v1544 = vpack.c.bf16 %v1541, %v1540
        %v1545 = vpack.c.bf16 %v1543, %v1542
        %s1546 = scalar_lea.vmem %s6, 64
        %v1547 = vld [vmem:[%s1546] sm:$0xf]
        %v1548 = vld [vmem:[%s1546 + $0x4] sm:$0xf]
        %v1549 = vld [vmem:[%s1546 + $0x8] sm:$0xf]
        %v1550 = vld [vmem:[%s1546 + $0xc] sm:$0xf]
        %v1551 = vld [vmem:[%s1546 + $0x10] sm:$0xf]
        %v1552 = vld [vmem:[%s1546 + $0x14] sm:$0xf]
        %v1553 = vld [vmem:[%s1546 + $0x18] sm:$0xf]
        %v1554 = vld [vmem:[%s1546 + $0x1c] sm:$0xf]
        %s1555 = scalar_lea.vmem [#allocation7], 128
        %v1556 = vld [vmem:[%s1555] sm:$0xff]
        %v1557 = vld [vmem:[%s1555 + $0x8] sm:$0xff]
        %v1558 = vld [vmem:[%s1555 + $0x10] sm:$0xff]
        %v1559 = vld [vmem:[%s1555 + $0x18] sm:$0xff]
        %v1560 = vld [vmem:[%s1555 + $0x20] sm:$0xff]
        %v1561 = vld [vmem:[%s1555 + $0x28] sm:$0xff]
        %v1562 = vld [vmem:[%s1555 + $0x30] sm:$0xff]
        %v1563 = vld [vmem:[%s1555 + $0x38] sm:$0xff]
        %1565 = vset.pattern.permute.xlu0 0
        %1566 = vperm.xlu0 %1565, %v1556
        %v1567 = vpop.permute.xlu0 %1566
        %1569 = vset.pattern.permute.xlu0 0
        %1570 = vperm.xlu0 %1569, %v1557
        %v1571 = vpop.permute.xlu0 %1570
        %1573 = vset.pattern.permute.xlu0 0
        %1574 = vperm.xlu0 %1573, %v1558
        %v1575 = vpop.permute.xlu0 %1574
        %1577 = vset.pattern.permute.xlu0 0
        %1578 = vperm.xlu0 %1577, %v1559
        %v1579 = vpop.permute.xlu0 %1578
        %1581 = vset.pattern.permute.xlu0 0
        %1582 = vperm.xlu0 %1581, %v1560
        %v1583 = vpop.permute.xlu0 %1582
        %1586 = vset.pattern.permute.xlu0 0
        %1587 = vperm.xlu0 %1586, %v1561
        %v1588 = vpop.permute.xlu0 %1587
        %1591 = vset.pattern.permute.xlu0 0
        %1592 = vperm.xlu0 %1591, %v1562
        %v1593 = vpop.permute.xlu0 %1592
        %1596 = vset.pattern.permute.xlu0 0
        %1597 = vperm.xlu0 %1596, %v1563
        %v1598 = vpop.permute.xlu0 %1597
        %v1608 = vunpack.c.l.b16 %v1547
        %v1609 = vunpack.c.l.b16 %v1548
        %v1610 = vunpack.c.l.b16 %v1549
        %v1611 = vunpack.c.l.b16 %v1550
        %v1612 = vunpack.c.l.b16 %v1551
        %v1613 = vunpack.c.l.b16 %v1552
        %v1614 = vunpack.c.l.b16 %v1553
        %v1615 = vunpack.c.l.b16 %v1554
        %v1616 = vpack.c.b16 %v1609, %v1608
        %v1617 = vpack.c.b16 %v1611, %v1610
        %v1618 = vpack.c.b16 %v1613, %v1612
        %v1619 = vpack.c.b16 %v1615, %v1614
        %v1621 = vsel %vm859, %v1616, 0
        %v1624 = vsel %vm859, %v1617, 0
        %v1627 = vsel %vm859, %v1618, 0
        %v1630 = vsel %vm859, %v1619, 0
        %1632 = vmatprep.subr.bf16.mxu0 0
        %1633 = vmatpush1.bf16.msra.mxu0 %v1544
        %1634 = vmatprep.subr.bf16.mxu0 0
        %1635 = vmatpush1.bf16.msra.mxu0 %v1545
        %1636 = vmatprep.subr.bf16.mxu0 0
        %1637 = vmatpush1.bf16.msra.mxu0 0
        %1638 = vmatprep.subr.bf16.mxu0 0
        %1639 = vmatpush1.bf16.msra.mxu0 0
        %1640 = vmatprep.subr.bf16.mxu0 0
        %1641 = vmatpush1.bf16.msra.mxu0 0
        %1642 = vmatprep.subr.bf16.mxu0 0
        %1643 = vmatpush1.bf16.msra.mxu0 0
        %1644 = vmatprep.subr.bf16.mxu0 0
        %1645 = vmatpush1.bf16.msra.mxu0 0
        %1646 = vmatprep.subr.bf16.mxu0 0
        %1647 = vmatpush1.bf16.msra.mxu0 0
        %1648 = vmatprep.subr.bf16.mxu0 0
        %1649 = vmatpush1.bf16.msra.mxu0 0
        %1650 = vmatprep.subr.bf16.mxu0 0
        %1651 = vmatpush1.bf16.msra.mxu0 0
        %1652 = vmatprep.subr.bf16.mxu0 0
        %1653 = vmatpush1.bf16.msra.mxu0 0
        %1654 = vmatprep.subr.bf16.mxu0 0
        %1655 = vmatpush1.bf16.msra.mxu0 0
        %1656 = vmatprep.subr.bf16.mxu0 0
        %1657 = vmatpush1.bf16.msra.mxu0 0
        %1658 = vmatprep.subr.bf16.mxu0 0
        %1659 = vmatpush1.bf16.msra.mxu0 0
        %1660 = vmatprep.subr.bf16.mxu0 0
        %1661 = vmatpush1.bf16.msra.mxu0 0
        %1662 = vmatprep.subr.bf16.mxu0 0
        %1663 = vmatpush1.bf16.msra.mxu0 0
        %1664 = vmatprep.mubr.bf16.mxu0 0
        %1665 = vmatmul.mubr.bf16.gmra.mrb[0].mxu0 %v1621
        %v1666 = vpop.f32.mrb[0].mxu0
        %v1667 = vpop.f32.mrb[0].mxu0
        %v1668 = vpop.f32.mrb[0].mxu0
        %v1669 = vpop.f32.mrb[0].mxu0
        %1670 = vmatprep.mubr.bf16.mxu0 0
        %1671 = vmatmul.mubr.bf16.gmra.mrb[0].mxu0 %v1624
        %v1672 = vpop.f32.mrb[0].mxu0
        %v1673 = vpop.f32.mrb[0].mxu0
        %v1674 = vpop.f32.mrb[0].mxu0
        %v1675 = vpop.f32.mrb[0].mxu0
        %1676 = vmatprep.mubr.bf16.mxu0 0
        %1677 = vmatmul.mubr.bf16.gmra.mrb[0].mxu0 %v1627
        %v1678 = vpop.f32.mrb[0].mxu0
        %v1679 = vadd.f32 %v1583, %v1678
        %v1680 = vpop.f32.mrb[0].mxu0
        %v1681 = vpop.f32.mrb[0].mxu0
        %v1682 = vadd.f32 %v1588, %v1681
        %v1683 = vpop.f32.mrb[0].mxu0
        %1684 = vmatprep.mubr.bf16.mxu0 0
        %1685 = vmatmul.mubr.bf16.gmra.mrb[0].mxu0 %v1630
        %v1686 = vpop.f32.mrb[0].mxu0
        %v1687 = vadd.f32 %v1593, %v1686
        %v1688 = vpop.f32.mrb[0].mxu0
        %v1689 = vpop.f32.mrb[0].mxu0
        %v1690 = vadd.f32 %v1598, %v1689
        %v1691 = vpop.f32.mrb[0].mxu0
        %1692 = vdwg.mxu0
        %v1693 = vadd.f32 %v1327, %v1679
        %v1694 = vadd.f32 %v1328, %v1682
        %v1695 = vadd.f32 %v1329, %v1687
        %v1696 = vadd.f32 %v1330, %v1690
        %v1697 = vmul.f32 %v1693, %v559
        %v1698 = vmul.f32 %v1694, %v559
        %v1699 = vmul.f32 %v1695, %v559
        %v1700 = vmul.f32 %v1696, %v559
        %v1701 = vpack.c.bf16 %v1698, %v1697
        %v1702 = vpack.c.bf16 %v1700, %v1699
        %v1703 = vld [vmem:[%s8] sm:$0x1]
        %v1704 = vld [vmem:[%s9] sm:$0x3]
        %1706 = vset.pattern.permute.xlu0 0
        %1707 = vperm.xlu0 %1706, %v1704
        %v1708 = vpop.permute.xlu0 %1707
        %v1711 = vsel %vm859, %v1703, 0
        %1713 = vmatprep.subr.bf16.mxu0 0
        %1714 = vmatpush1.bf16.msra.mxu0 %v1701
        %1715 = vmatprep.subr.bf16.mxu0 0
        %1716 = vmatpush1.bf16.msra.mxu0 %v1702
        %1717 = vmatprep.subr.bf16.mxu0 0
        %1718 = vmatpush1.bf16.msra.mxu0 0
        %1719 = vmatprep.subr.bf16.mxu0 0
        %1720 = vmatpush1.bf16.msra.mxu0 0
        %1721 = vmatprep.subr.bf16.mxu0 0
        %1722 = vmatpush1.bf16.msra.mxu0 0
        %1723 = vmatprep.subr.bf16.mxu0 0
        %1724 = vmatpush1.bf16.msra.mxu0 0
        %1725 = vmatprep.subr.bf16.mxu0 0
        %1726 = vmatpush1.bf16.msra.mxu0 0
        %1727 = vmatprep.subr.bf16.mxu0 0
        %1728 = vmatpush1.bf16.msra.mxu0 0
        %1729 = vmatprep.subr.bf16.mxu0 0
        %1730 = vmatpush1.bf16.msra.mxu0 0
        %1731 = vmatprep.subr.bf16.mxu0 0
        %1732 = vmatpush1.bf16.msra.mxu0 0
        %1733 = vmatprep.subr.bf16.mxu0 0
        %1734 = vmatpush1.bf16.msra.mxu0 0
        %1735 = vmatprep.subr.bf16.mxu0 0
        %1736 = vmatpush1.bf16.msra.mxu0 0
        %1737 = vmatprep.subr.bf16.mxu0 0
        %1738 = vmatpush1.bf16.msra.mxu0 0
        %1739 = vmatprep.subr.bf16.mxu0 0
        %1740 = vmatpush1.bf16.msra.mxu0 0
        %1741 = vmatprep.subr.bf16.mxu0 0
        %1742 = vmatpush1.bf16.msra.mxu0 0
        %1743 = vmatprep.subr.bf16.mxu0 0
        %1744 = vmatpush1.bf16.msra.mxu0 0
        %1745 = vmatprep.mubr.bf16.mxu0 0
        %1746 = vmatmul.mubr.bf16.gmra.mrb[0].mxu0 %v1711
        %v1747 = vpop.f32.mrb[0].mxu0
        %v1748 = vadd.f32 %v1708, %v1747
        %v1749 = vpop.f32.mrb[0].mxu0
        %v1750 = vpop.f32.mrb[0].mxu0
        %v1751 = vpop.f32.mrb[0].mxu0
        %1752 = vdwg.mxu0
        %v1753 = vmul.f32 %v1748, %v559
        %1754 = vst [vmem:[%s452] sm:$0x3] %v454
        %v1755 = vmul.f32 %v454, %v559
        %v1757 = vrot.slane %v1755, 2
        %v1759 = vadd.f32 %v1753, %v1757
        %1760 = vst [vmem:[%s452 + $0x2] sm:$0x3] %v1759
        %p1761 = scmp.lt.s32.totalorder %s26, 1
        %s1762 = scalar_select %p1761, %s26, 1
        %s1763 = smul.addr %s1762, 4
        %s1764 = scalar_lea.vmem %s10, %s1763
        // Predicated region
        $region77: #{block_forward.4} parent=59 // pred_check
          %p1765 = pneg %p269
        $region78: #{block_forward.4} parent=59 // pred_check_branch
          %1767 = sbr.rel (%p1765) target = $region80
        $region79: #{block_forward.4} parent=59 // pred_region
          _
        $region80: #{block_forward.4} parent=59 // pred_fallthru
          _
      $region60: #{block_forward.4} parent=5 // pred_fallthru
        _
      %p1768 = scmp.le.s32.totalorder 2, %s21
      // Predicated region
      $region81: #{block_forward.4} parent=5 // pred_check
        %p1769 = pneg %p1768
      $region82: #{block_forward.4} parent=5 // pred_check_branch
        %1771 = sbr.rel (%p1769) target = $region84
      $region83: #{block_forward.4} parent=5 // pred_region
        %s1772 = ssub.s32 %s21, 2
        // Predicated region
        $region85: #{block_forward.4} parent=83 // pred_check
          %p1773 = pneg %p275
        $region86: #{block_forward.4} parent=83 // pred_check_branch
          %1775 = sbr.rel (%p1773) target = $region88
        $region87: #{block_forward.4} parent=83 // pred_region
          %p1776 = scmp.lt.s32.totalorder %s27, 1
          %s1777 = scalar_select %p1776, %s27, 1
          %s1778 = smul.addr %s1777, 4
          %s1779 = scalar_lea.vmem %s10, %s1778
        $region88: #{block_forward.4} parent=83 // pred_fallthru
          _
      $region84: #{block_forward.4} parent=5 // pred_fallthru
        _
    $region6: #{block_forward.4} parent=1 // loop_footer
      %s25 = sadd.s32 1, %s21
    $region7: #{block_forward.4} parent=1 // loop_footer_branch
      %20 = sbr.rel target = $region3
    $region8: #{block_forward.4} parent=1 // loop_exit
      _
    %1780 = vsyncpa [#allocation3], 1
    %s1781 = scalar_lea.sflag [#allocation3], 1
    %1782 = vsyncpa %s1781, 1
    %1783 = vsyncpa [#allocation5], 1
    %1784 = vsyncpa [#allocation8], 1

// kernel: block_forward.5
$region0: #{block_forward.5}
  #allocation0 [shape = 'u32[]', space=smem, size = 0x4, offset = 0x4, fixed_abs, tag = 'smem constant byte address 0x4 - core index']
  #allocation1 [shape = 'u32[144,128]{1,0:T(1,128)}', space=vmem, size = 0x12000, scoped, tag = 'internal scratch']
  %s0 = inlined_call_operand.vmem [shape: f32[2,4,128], index: 0, kind: input, shape index: {}]
  %s1 = inlined_call_operand.vmem [shape: f32[2,1,128], index: 1, kind: input, shape index: {}]
  %s2 = inlined_call_operand.vmem [shape: f32[2,3,64,1], index: 2, kind: input, shape index: {}]
  %s3 = inlined_call_operand.vmem [shape: bf16[32,2], index: 3, kind: input, shape index: {}]
  %s4 = inlined_call_operand.vmem [shape: f32[32,1], index: 4, kind: input, shape index: {}]
  %s5 = inlined_call_operand.vmem [shape: bf16[3,64,96], index: 5, kind: input, shape index: {}]
  %s6 = inlined_call_operand.vmem [shape: bf16[3,64,32], index: 6, kind: input, shape index: {}]
  %s7 = inlined_call_operand.vmem [shape: f32[3,64,1], index: 7, kind: input, shape index: {}]
  %s8 = inlined_call_operand.vmem [shape: bf16[2,32], index: 8, kind: input, shape index: {}]
  %s9 = inlined_call_operand.vmem [shape: f32[2,1], index: 9, kind: input, shape index: {}]
  %s10 = inlined_call_operand.vmem [shape: f32[2,4,128], index: 10, kind: output, shape index: {}]
  %s11 = sld [smem:[#allocation0]]
  $region73: #{block_forward.5} parent=0
    _
  %s13 = ssub.s32 1, %s11
  %s14 = scalar_select 0, %s13, %s11
  loop: start=0, step=1, limit=4
  $region2: #{block_forward.5} parent=0 // loop_pre_header
    _
  $region3: #{block_forward.5} parent=0 // loop_header
    %s16 = sphi 0, %s20
    %p17 = scmp.ge.s32.totalorder %s16, 4
    %s26 = sphi 0, %s28
    %s29 = sphi 0, %s26
    %s30 = sphi 0, %s29
    %s46 = sphi 0, %s30
    %s52 = sphi 0, %s54
    %s55 = sphi 0, %s52
    %s56 = sphi 0, %s55
    %s72 = sphi 0, %s56
    %s78 = sphi 0, %s80
    %s81 = sphi 0, %s78
    %s82 = sphi 0, %s81
    %s98 = sphi 0, %s82
    %s102 = sphi 0, %s102
    %s104 = sphi 0, %s102
    %s105 = sphi 0, %s104
    %s119 = sphi 0, %s105
    %s123 = sphi 0, %s123
    %s125 = sphi 0, %s123
    %s126 = sphi 0, %s125
    %s140 = sphi 0, %s126
    %s144 = sphi 0, %s144
    %s146 = sphi 0, %s144
    %s147 = sphi 0, %s146
    %s161 = sphi 0, %s147
    %s165 = sphi 0, %s165
    %s167 = sphi 0, %s165
    %s168 = sphi 0, %s167
    %s182 = sphi 0, %s168
    %s186 = sphi 0, %s186
    %s188 = sphi 0, %s186
    %s189 = sphi 0, %s188
    %s203 = sphi 0, %s189
    %s207 = sphi 0, %s207
    %s209 = sphi 0, %s207
    %s210 = sphi 0, %s209
    %s224 = sphi 0, %s210
    %s228 = sphi 0, %s228
    %s230 = sphi 0, %s228
    %s231 = sphi 0, %s230
    %s245 = sphi 0, %s231
    %s251 = sphi 0, %s253
    %s254 = sphi 0, %s251
    %s255 = sphi 0, %s254
    %s271 = sphi 0, %s255
  $region4: #{block_forward.5} parent=0 // loop_header_branch
    %19 = sbr.rel (%p17) target = $region8
  $region5: #{block_forward.5} parent=0 // loop_body
    %s21 = ssub.s32 %s16, 1
    %s22 = ssub.s32 %s16, 2
    %s23 = sadd.s32 %s16, 1
    %s24 = ssub.s32 %s16, %s23
    %p25 = scmp.eq.s32.totalorder %s24, 0
    %s27 = sadd.s32 %s26, 1
    %s28 = scalar_select %p25, %s26, %s27
    %p31 = pneg %p25
    %p32 = scmp.eq.s32.totalorder %s16, 1
    %p33 = por %p31, %p32
    %p34 = scmp.ne.s32.totalorder %s26, %s29
    %p35 = scmp.eq.s32.totalorder %s16, 0
    %p36 = por %p34, %p35
    %p37 = scmp.ne.s32.totalorder %s26, %s29
    %p38 = scmp.eq.s32.totalorder %s21, 1
    %p39 = por %p37, %p38
    %p40 = scmp.ne.s32.totalorder %s29, %s30
    %p41 = scmp.eq.s32.totalorder %s21, 0
    %p42 = por %p40, %p41
    %p43 = scmp.ne.s32.totalorder %s29, %s30
    %p44 = scmp.eq.s32.totalorder %s22, 1
    %p45 = por %p43, %p44
    %p47 = scmp.ne.s32.totalorder %s30, %s46
    %p48 = scmp.eq.s32.totalorder %s22, 0
    %p49 = por %p47, %p48
    %s50 = ssub.s32 %s16, %s23
    %p51 = scmp.eq.s32.totalorder %s50, 0
    %s53 = sadd.s32 %s52, 1
    %s54 = scalar_select %p51, %s52, %s53
    %p57 = pneg %p51
    %p58 = scmp.eq.s32.totalorder %s16, 1
    %p59 = por %p57, %p58
    %p60 = scmp.ne.s32.totalorder %s52, %s55
    %p61 = scmp.eq.s32.totalorder %s16, 0
    %p62 = por %p60, %p61
    %p63 = scmp.ne.s32.totalorder %s52, %s55
    %p64 = scmp.eq.s32.totalorder %s21, 1
    %p65 = por %p63, %p64
    %p66 = scmp.ne.s32.totalorder %s55, %s56
    %p67 = scmp.eq.s32.totalorder %s21, 0
    %p68 = por %p66, %p67
    %p69 = scmp.ne.s32.totalorder %s55, %s56
    %p70 = scmp.eq.s32.totalorder %s22, 1
    %p71 = por %p69, %p70
    %p73 = scmp.ne.s32.totalorder %s56, %s72
    %p74 = scmp.eq.s32.totalorder %s22, 0
    %p75 = por %p73, %p74
    %s76 = ssub.s32 %s16, %s23
    %p77 = scmp.eq.s32.totalorder %s76, 0
    %s79 = sadd.s32 %s78, 1
    %s80 = scalar_select %p77, %s78, %s79
    %p83 = pneg %p77
    %p84 = scmp.eq.s32.totalorder %s16, 1
    %p85 = por %p83, %p84
    %p86 = scmp.ne.s32.totalorder %s78, %s81
    %p87 = scmp.eq.s32.totalorder %s16, 0
    %p88 = por %p86, %p87
    %p89 = scmp.ne.s32.totalorder %s78, %s81
    %p90 = scmp.eq.s32.totalorder %s21, 1
    %p91 = por %p89, %p90
    %p92 = scmp.ne.s32.totalorder %s81, %s82
    %p93 = scmp.eq.s32.totalorder %s21, 0
    %p94 = por %p92, %p93
    %p95 = scmp.ne.s32.totalorder %s81, %s82
    %p96 = scmp.eq.s32.totalorder %s22, 1
    %p97 = por %p95, %p96
    %p99 = scmp.ne.s32.totalorder %s82, %s98
    %p100 = scmp.eq.s32.totalorder %s22, 0
    %p101 = por %p99, %p100
    %s103 = sadd.s32 %s102, 1
    %p106 = scmp.eq.s32.totalorder %s16, 1
    %p107 = scmp.ne.s32.totalorder %s102, %s104
    %p108 = scmp.eq.s32.totalorder %s16, 0
    %p109 = por %p107, %p108
    %p110 = scmp.ne.s32.totalorder %s102, %s104
    %p111 = scmp.eq.s32.totalorder %s21, 1
    %p112 = por %p110, %p111
    %p113 = scmp.ne.s32.totalorder %s104, %s105
    %p114 = scmp.eq.s32.totalorder %s21, 0
    %p115 = por %p113, %p114
    %p116 = scmp.ne.s32.totalorder %s104, %s105
    %p117 = scmp.eq.s32.totalorder %s22, 1
    %p118 = por %p116, %p117
    %p120 = scmp.ne.s32.totalorder %s105, %s119
    %p121 = scmp.eq.s32.totalorder %s22, 0
    %p122 = por %p120, %p121
    %s124 = sadd.s32 %s123, 1
    %p127 = scmp.eq.s32.totalorder %s16, 1
    %p128 = scmp.ne.s32.totalorder %s123, %s125
    %p129 = scmp.eq.s32.totalorder %s16, 0
    %p130 = por %p128, %p129
    %p131 = scmp.ne.s32.totalorder %s123, %s125
    %p132 = scmp.eq.s32.totalorder %s21, 1
    %p133 = por %p131, %p132
    %p134 = scmp.ne.s32.totalorder %s125, %s126
    %p135 = scmp.eq.s32.totalorder %s21, 0
    %p136 = por %p134, %p135
    %p137 = scmp.ne.s32.totalorder %s125, %s126
    %p138 = scmp.eq.s32.totalorder %s22, 1
    %p139 = por %p137, %p138
    %p141 = scmp.ne.s32.totalorder %s126, %s140
    %p142 = scmp.eq.s32.totalorder %s22, 0
    %p143 = por %p141, %p142
    %s145 = sadd.s32 %s144, 1
    %p148 = scmp.eq.s32.totalorder %s16, 1
    %p149 = scmp.ne.s32.totalorder %s144, %s146
    %p150 = scmp.eq.s32.totalorder %s16, 0
    %p151 = por %p149, %p150
    %p152 = scmp.ne.s32.totalorder %s144, %s146
    %p153 = scmp.eq.s32.totalorder %s21, 1
    %p154 = por %p152, %p153
    %p155 = scmp.ne.s32.totalorder %s146, %s147
    %p156 = scmp.eq.s32.totalorder %s21, 0
    %p157 = por %p155, %p156
    %p158 = scmp.ne.s32.totalorder %s146, %s147
    %p159 = scmp.eq.s32.totalorder %s22, 1
    %p160 = por %p158, %p159
    %p162 = scmp.ne.s32.totalorder %s147, %s161
    %p163 = scmp.eq.s32.totalorder %s22, 0
    %p164 = por %p162, %p163
    %s166 = sadd.s32 %s165, 1
    %p169 = scmp.eq.s32.totalorder %s16, 1
    %p170 = scmp.ne.s32.totalorder %s165, %s167
    %p171 = scmp.eq.s32.totalorder %s16, 0
    %p172 = por %p170, %p171
    %p173 = scmp.ne.s32.totalorder %s165, %s167
    %p174 = scmp.eq.s32.totalorder %s21, 1
    %p175 = por %p173, %p174
    %p176 = scmp.ne.s32.totalorder %s167, %s168
    %p177 = scmp.eq.s32.totalorder %s21, 0
    %p178 = por %p176, %p177
    %p179 = scmp.ne.s32.totalorder %s167, %s168
    %p180 = scmp.eq.s32.totalorder %s22, 1
    %p181 = por %p179, %p180
    %p183 = scmp.ne.s32.totalorder %s168, %s182
    %p184 = scmp.eq.s32.totalorder %s22, 0
    %p185 = por %p183, %p184
    %s187 = sadd.s32 %s186, 1
    %p190 = scmp.eq.s32.totalorder %s16, 1
    %p191 = scmp.ne.s32.totalorder %s186, %s188
    %p192 = scmp.eq.s32.totalorder %s16, 0
    %p193 = por %p191, %p192
    %p194 = scmp.ne.s32.totalorder %s186, %s188
    %p195 = scmp.eq.s32.totalorder %s21, 1
    %p196 = por %p194, %p195
    %p197 = scmp.ne.s32.totalorder %s188, %s189
    %p198 = scmp.eq.s32.totalorder %s21, 0
    %p199 = por %p197, %p198
    %p200 = scmp.ne.s32.totalorder %s188, %s189
    %p201 = scmp.eq.s32.totalorder %s22, 1
    %p202 = por %p200, %p201
    %p204 = scmp.ne.s32.totalorder %s189, %s203
    %p205 = scmp.eq.s32.totalorder %s22, 0
    %p206 = por %p204, %p205
    %s208 = sadd.s32 %s207, 1
    %p211 = scmp.eq.s32.totalorder %s16, 1
    %p212 = scmp.ne.s32.totalorder %s207, %s209
    %p213 = scmp.eq.s32.totalorder %s16, 0
    %p214 = por %p212, %p213
    %p215 = scmp.ne.s32.totalorder %s207, %s209
    %p216 = scmp.eq.s32.totalorder %s21, 1
    %p217 = por %p215, %p216
    %p218 = scmp.ne.s32.totalorder %s209, %s210
    %p219 = scmp.eq.s32.totalorder %s21, 0
    %p220 = por %p218, %p219
    %p221 = scmp.ne.s32.totalorder %s209, %s210
    %p222 = scmp.eq.s32.totalorder %s22, 1
    %p223 = por %p221, %p222
    %p225 = scmp.ne.s32.totalorder %s210, %s224
    %p226 = scmp.eq.s32.totalorder %s22, 0
    %p227 = por %p225, %p226
    %s229 = sadd.s32 %s228, 1
    %p232 = scmp.eq.s32.totalorder %s16, 1
    %p233 = scmp.ne.s32.totalorder %s228, %s230
    %p234 = scmp.eq.s32.totalorder %s16, 0
    %p235 = por %p233, %p234
    %p236 = scmp.ne.s32.totalorder %s228, %s230
    %p237 = scmp.eq.s32.totalorder %s21, 1
    %p238 = por %p236, %p237
    %p239 = scmp.ne.s32.totalorder %s230, %s231
    %p240 = scmp.eq.s32.totalorder %s21, 0
    %p241 = por %p239, %p240
    %p242 = scmp.ne.s32.totalorder %s230, %s231
    %p243 = scmp.eq.s32.totalorder %s22, 1
    %p244 = por %p242, %p243
    %p246 = scmp.ne.s32.totalorder %s231, %s245
    %p247 = scmp.eq.s32.totalorder %s22, 0
    %p248 = por %p246, %p247
    %s249 = ssub.s32 %s16, %s23
    %p250 = scmp.eq.s32.totalorder %s249, 0
    %s252 = sadd.s32 %s251, 1
    %s253 = scalar_select %p250, %s251, %s252
    %p256 = pneg %p250
    %p257 = scmp.eq.s32.totalorder %s16, 1
    %p258 = por %p256, %p257
    %p259 = scmp.ne.s32.totalorder %s251, %s254
    %p260 = scmp.eq.s32.totalorder %s16, 0
    %p261 = por %p259, %p260
    %p262 = scmp.ne.s32.totalorder %s251, %s254
    %p263 = scmp.eq.s32.totalorder %s21, 1
    %p264 = por %p262, %p263
    %p265 = scmp.ne.s32.totalorder %s254, %s255
    %p266 = scmp.eq.s32.totalorder %s21, 0
    %p267 = por %p265, %p266
    %p268 = scmp.ne.s32.totalorder %s254, %s255
    %p269 = scmp.eq.s32.totalorder %s22, 1
    %p270 = por %p268, %p269
    %p272 = scmp.ne.s32.totalorder %s255, %s271
    %p273 = scmp.eq.s32.totalorder %s22, 0
    %p274 = por %p272, %p273
    %p275 = scmp.le.s32.totalorder 1, %s16
    %p276 = scmp.lt.s32.totalorder %s16, 3
    %p277 = pnand %p275, %p276
    %p278 = pneg %p277
    // Predicated region
    $region9: #{block_forward.5} parent=5 // pred_check
      _
    $region10: #{block_forward.5} parent=5 // pred_check_branch
      %280 = sbr.rel (%p277) target = $region12
    $region11: #{block_forward.5} parent=5 // pred_region
      %s281 = ssub.s32 %s16, 1
      // Predicated region
      $region13: #{block_forward.5} parent=11 // pred_check
        %p282 = pneg %p115
      $region14: #{block_forward.5} parent=11 // pred_check_branch
        %284 = sbr.rel (%p282) target = $region16
      $region15: #{block_forward.5} parent=11 // pred_region
        _
      $region16: #{block_forward.5} parent=11 // pred_fallthru
        _
      // Predicated region
      $region17: #{block_forward.5} parent=11 // pred_check
        %p285 = pneg %p136
      $region18: #{block_forward.5} parent=11 // pred_check_branch
        %287 = sbr.rel (%p285) target = $region20
      $region19: #{block_forward.5} parent=11 // pred_region
        _
      $region20: #{block_forward.5} parent=11 // pred_fallthru
        _
      // Predicated region
      $region21: #{block_forward.5} parent=11 // pred_check
        %p288 = pneg %p157
      $region22: #{block_forward.5} parent=11 // pred_check_branch
        %290 = sbr.rel (%p288) target = $region24
      $region23: #{block_forward.5} parent=11 // pred_region
        _
      $region24: #{block_forward.5} parent=11 // pred_fallthru
        _
      // Predicated region
      $region25: #{block_forward.5} parent=11 // pred_check
        %p291 = pneg %p178
      $region26: #{block_forward.5} parent=11 // pred_check_branch
        %293 = sbr.rel (%p291) target = $region28
      $region27: #{block_forward.5} parent=11 // pred_region
        _
      $region28: #{block_forward.5} parent=11 // pred_fallthru
        _
      // Predicated region
      $region29: #{block_forward.5} parent=11 // pred_check
        %p294 = pneg %p199
      $region30: #{block_forward.5} parent=11 // pred_check_branch
        %296 = sbr.rel (%p294) target = $region32
      $region31: #{block_forward.5} parent=11 // pred_region
        _
      $region32: #{block_forward.5} parent=11 // pred_fallthru
        _
      // Predicated region
      $region33: #{block_forward.5} parent=11 // pred_check
        %p297 = pneg %p220
      $region34: #{block_forward.5} parent=11 // pred_check_branch
        %299 = sbr.rel (%p297) target = $region36
      $region35: #{block_forward.5} parent=11 // pred_region
        _
      $region36: #{block_forward.5} parent=11 // pred_fallthru
        _
      // Predicated region
      $region37: #{block_forward.5} parent=11 // pred_check
        %p300 = pneg %p241
      $region38: #{block_forward.5} parent=11 // pred_check_branch
        %302 = sbr.rel (%p300) target = $region40
      $region39: #{block_forward.5} parent=11 // pred_region
        _
      $region40: #{block_forward.5} parent=11 // pred_fallthru
        _
    $region12: #{block_forward.5} parent=5 // pred_fallthru
      _
    %p303 = scmp.lt.s32.totalorder %s16, 2
    // Predicated region
    $region41: #{block_forward.5} parent=5 // pred_check
      %p304 = pneg %p303
    $region42: #{block_forward.5} parent=5 // pred_check_branch
      %306 = sbr.rel (%p304) target = $region44
    $region43: #{block_forward.5} parent=5 // pred_region
      // Predicated region
      $region45: #{block_forward.5} parent=43 // pred_check
        %p307 = pneg %p36
      $region46: #{block_forward.5} parent=43 // pred_check_branch
        %309 = sbr.rel (%p307) target = $region48
      $region47: #{block_forward.5} parent=43 // pred_region
        %p310 = scmp.lt.s32.totalorder %s16, 1
        %s311 = scalar_select %p310, %s16, 1
        %s312 = smul.addr %s311, 4
        %s313 = scalar_lea.vmem %s0, %s312
      $region48: #{block_forward.5} parent=43 // pred_fallthru
        _
      // Predicated region
      $region49: #{block_forward.5} parent=43 // pred_check
        %p314 = pneg %p62
      $region50: #{block_forward.5} parent=43 // pred_check_branch
        %316 = sbr.rel (%p314) target = $region52
      $region51: #{block_forward.5} parent=43 // pred_region
        %p317 = scmp.lt.s32.totalorder %s16, 1
        %s318 = scalar_select %p317, %s16, 1
        %s319 = scalar_lea.vmem %s1, %s318
      $region52: #{block_forward.5} parent=43 // pred_fallthru
        _
      // Predicated region
      $region53: #{block_forward.5} parent=43 // pred_check
        %p320 = pneg %p88
      $region54: #{block_forward.5} parent=43 // pred_check_branch
        %322 = sbr.rel (%p320) target = $region56
      $region55: #{block_forward.5} parent=43 // pred_region
        %p323 = scmp.lt.s32.totalorder %s16, 1
        %s324 = scalar_select %p323, %s16, 1
        %s325 = smul.addr %s324, 24
        %s326 = smul.addr %s325, 8
        %s327 = scalar_lea.vmem %s2, %s326
      $region56: #{block_forward.5} parent=43 // pred_fallthru
        _
    $region44: #{block_forward.5} parent=5 // pred_fallthru
      _
    %p328 = scmp.le.s32.totalorder 1, %s16
    %p329 = scmp.lt.s32.totalorder %s16, 3
    %p330 = pnand %p328, %p329
    %p331 = pneg %p330
    // Predicated region
    $region57: #{block_forward.5} parent=5 // pred_check
      _
    $region58: #{block_forward.5} parent=5 // pred_check_branch
      %333 = sbr.rel (%p330) target = $region60
    $region59: #{block_forward.5} parent=5 // pred_region
      %s334 = ssub.s32 %s16, 1
      %p335 = scmp.lt.s32.totalorder %s21, 1
      %s336 = scalar_select %p335, %s21, 1
      %s337 = smul.addr %s336, 4
      %s338 = scalar_lea.vmem %s0, %s337
      %p339 = pneg %p42
      %p340 = pneg %p39
      %p341 = scmp.lt.s32.totalorder %s21, 1
      %s342 = scalar_select %p341, %s21, 1
      %s343 = scalar_lea.vmem %s1, %s342
      %p344 = pneg %p68
      %p345 = pneg %p65
      %p346 = scmp.lt.s32.totalorder %s21, 1
      %s347 = scalar_select %p346, %s21, 1
      %s348 = smul.addr %s347, 24
      %s349 = smul.addr %s348, 8
      %s350 = scalar_lea.vmem %s2, %s349
      %p351 = pneg %p94
      %p352 = pneg %p91
      %p353 = pneg %p115
      %p354 = pneg %p112
      %p355 = pneg %p136
      %p356 = pneg %p133
      %p357 = pneg %p157
      %p358 = pneg %p154
      %p359 = pneg %p178
      %p360 = pneg %p175
      %p361 = pneg %p199
      %p362 = pneg %p196
      %p363 = pneg %p220
      %p364 = pneg %p217
      %p365 = pneg %p241
      %p366 = pneg %p238
      %p367 = pneg %p267
      %p368 = pneg %p264
      %p369 = scmp.lt.s32.totalorder %s21, 1
      %s370 = scalar_select %p369, %s21, 1
      %s371 = smul.addr %s370, 4
      %s372 = scalar_lea.vmem %s10, %s371
      %p373 = scmp.lt.s32.totalorder %s21, 1
      %s374 = scalar_select %p373, %s21, 1
      %s375 = smul.addr %s374, 4
      %s376 = scalar_lea.vmem %s0, %s375
      %p377 = scmp.lt.s32.totalorder %s21, 1
      %s378 = scalar_select %p377, %s21, 1
      %s379 = scalar_lea.vmem %s1, %s378
      %p380 = scmp.lt.s32.totalorder %s21, 1
      %s381 = scalar_select %p380, %s21, 1
      %s382 = smul.addr %s381, 24
      %s383 = smul.addr %s382, 8
      %s384 = scalar_lea.vmem %s2, %s383
      %p385 = scmp.lt.s32.totalorder %s21, 1
      %s386 = scalar_select %p385, %s21, 1
      %s387 = smul.addr %s386, 4
      %s388 = scalar_lea.vmem %s10, %s387
      %v390 = vld [vmem:[%s376] sm:$0xf]
      %v391 = vld [vmem:[%s379] sm:$0x1]
      %v392 = vld [vmem:[%s3] sm:$0xf]
      %v393 = vld [vmem:[%s3 + $0x4] sm:$0xf]
      %v394 = vld [vmem:[%s3 + $0x8] sm:$0xf]
      %v395 = vld [vmem:[%s3 + $0xc] sm:$0xf]
      %v396 = vpack.c.bf16 %v390, %v390
      %v397 = vld [vmem:[%s4] sm:$0xff]
      %v398 = vld [vmem:[%s4 + $0x8] sm:$0xff]
      %v399 = vld [vmem:[%s4 + $0x10] sm:$0xff]
      %v400 = vld [vmem:[%s4 + $0x18] sm:$0xff]
      %402 = vset.pattern.permute.xlu0 0
      %403 = vperm.xlu0 %402, %v397
      %v404 = vpop.permute.xlu0 %403
      %407 = vset.pattern.permute.xlu0 0
      %408 = vperm.xlu0 %407, %v398
      %v409 = vpop.permute.xlu0 %408
      %412 = vset.pattern.permute.xlu0 0
      %413 = vperm.xlu0 %412, %v399
      %v414 = vpop.permute.xlu0 %413
      %417 = vset.pattern.permute.xlu0 0
      %418 = vperm.xlu0 %417, %v400
      %v419 = vpop.permute.xlu0 %418
      %v425 = vunpack.c.l.b16 %v392
      %v426 = vunpack.c.l.b16 %v393
      %v427 = vunpack.c.l.b16 %v394
      %v428 = vunpack.c.l.b16 %v395
      %v429 = vpack.c.b16 %v426, %v425
      %v430 = vpack.c.b16 %v428, %v427
      %vm431 = vcmask 15360
      %v433 = vsel %vm431, %v429, 0
      %v436 = vsel %vm431, %v430, 0
      %vm438 = vcmask 1040384
      %v440 = vsel %vm438, %v396, 0
      %442 = vmatprep.subr.bf16.mxu0 0
      %443 = vmatpush1.bf16.msra.mxu0 %v440
      %444 = vmatprep.subr.bf16.mxu0 0
      %445 = vmatpush1.bf16.msra.mxu0 0
      %446 = vmatprep.subr.bf16.mxu0 0
      %447 = vmatpush1.bf16.msra.mxu0 0
      %448 = vmatprep.subr.bf16.mxu0 0
      %449 = vmatpush1.bf16.msra.mxu0 0
      %450 = vmatprep.subr.bf16.mxu0 0
      %451 = vmatpush1.bf16.msra.mxu0 0
      %452 = vmatprep.subr.bf16.mxu0 0
      %453 = vmatpush1.bf16.msra.mxu0 0
      %454 = vmatprep.subr.bf16.mxu0 0
      %455 = vmatpush1.bf16.msra.mxu0 0
      %456 = vmatprep.subr.bf16.mxu0 0
      %457 = vmatpush1.bf16.msra.mxu0 0
      %458 = vmatprep.subr.bf16.mxu0 0
      %459 = vmatpush1.bf16.msra.mxu0 0
      %460 = vmatprep.subr.bf16.mxu0 0
      %461 = vmatpush1.bf16.msra.mxu0 0
      %462 = vmatprep.subr.bf16.mxu0 0
      %463 = vmatpush1.bf16.msra.mxu0 0
      %464 = vmatprep.subr.bf16.mxu0 0
      %465 = vmatpush1.bf16.msra.mxu0 0
      %466 = vmatprep.subr.bf16.mxu0 0
      %467 = vmatpush1.bf16.msra.mxu0 0
      %468 = vmatprep.subr.bf16.mxu0 0
      %469 = vmatpush1.bf16.msra.mxu0 0
      %470 = vmatprep.subr.bf16.mxu0 0
      %471 = vmatpush1.bf16.msra.mxu0 0
      %472 = vmatprep.subr.bf16.mxu0 0
      %473 = vmatpush1.bf16.msra.mxu0 0
      %474 = vmatprep.mubr.bf16.mxu0 0
      %475 = vmatmul.mubr.bf16.gmra.mrb[0].mxu0 %v433
      %v476 = vpop.f32.mrb[0].mxu0
      %v477 = vadd.f32 %v404, %v476
      %v478 = vpop.f32.mrb[0].mxu0
      %v479 = vpop.f32.mrb[0].mxu0
      %v480 = vadd.f32 %v409, %v479
      %v481 = vpop.f32.mrb[0].mxu0
      %482 = vmatprep.mubr.bf16.mxu0 0
      %483 = vmatmul.mubr.bf16.gmra.mrb[0].mxu0 %v436
      %v484 = vpop.f32.mrb[0].mxu0
      %v485 = vadd.f32 %v414, %v484
      %v486 = vpop.f32.mrb[0].mxu0
      %v487 = vpop.f32.mrb[0].mxu0
      %v488 = vadd.f32 %v419, %v487
      %v489 = vpop.f32.mrb[0].mxu0
      %490 = vdwg.mxu0
      %v492 = vlaneseq
      %v493 = vshrl.u32 %v492, 7
      %v494 = vsub.s32 0, %v493
      %v495 = vrot.slane %v391, %v494
      %v497 = vmul.f32 %v477, %v495
      %v498 = vmul.f32 %v480, %v495
      %v499 = vmul.f32 %v485, %v495
      %v500 = vmul.f32 %v488, %v495
      %v501 = vlaneseq
      %v502 = vand.u32 %v501, 127
      %503 = vrot.lane.b32.xlu0 %v497, 1
      %v504 = vpop.permute.xlu0 %503
      %505 = vrot.lane.b32.xlu0 %v498, 1
      %v506 = vpop.permute.xlu0 %505
      %507 = vrot.lane.b32.xlu0 %v499, 1
      %v508 = vpop.permute.xlu0 %507
      %509 = vrot.lane.b32.xlu0 %v500, 1
      %v510 = vpop.permute.xlu0 %509
      %vm511 = vcmp.ge.s32.totalorder %v502, 1
      %vm512 = vcmp.lt.s32.totalorder %v502, 128
      %vm513 = vmand %vm511, %vm512
      %v514 = vsel %vm513, %v504, 0.0
      %v515 = vsel %vm513, %v506, 0.0
      %v516 = vsel %vm513, %v508, 0.0
      %v517 = vsel %vm513, %v510, 0.0
      %518 = vrot.lane.b32.xlu0 %v497, 127
      %v519 = vpop.permute.xlu0 %518
      %520 = vrot.lane.b32.xlu0 %v498, 127
      %v521 = vpop.permute.xlu0 %520
      %522 = vrot.lane.b32.xlu0 %v499, 127
      %v523 = vpop.permute.xlu0 %522
      %524 = vrot.lane.b32.xlu0 %v500, 127
      %v525 = vpop.permute.xlu0 %524
      %vm526 = vcmp.ge.s32.totalorder %v502, 0
      %vm527 = vcmp.lt.s32.totalorder %v502, 127
      %vm528 = vmand %vm526, %vm527
      %v529 = vsel %vm528, %v519, 0.0
      %v530 = vsel %vm528, %v521, 0.0
      %v531 = vsel %vm528, %v523, 0.0
      %v532 = vsel %vm528, %v525, 0.0
      %v533 = vpack.c.bf16 %v515, %v514
      %v534 = vpack.c.bf16 %v517, %v516
      %v535 = vpack.c.bf16 %v498, %v497
      %v536 = vpack.c.bf16 %v500, %v499
      %v537 = vpack.c.bf16 %v530, %v529
      %v538 = vpack.c.bf16 %v532, %v531
      %v539 = vld [vmem:[%s5] sm:$0xf]
      %v540 = vld [vmem:[%s5 + $0x4] sm:$0xf]
      %v541 = vld [vmem:[%s5 + $0x8] sm:$0xf]
      %v542 = vld [vmem:[%s5 + $0xc] sm:$0xf]
      %v543 = vld [vmem:[%s5 + $0x10] sm:$0xf]
      %v544 = vld [vmem:[%s5 + $0x14] sm:$0xf]
      %v545 = vld [vmem:[%s5 + $0x18] sm:$0xf]
      %v546 = vld [vmem:[%s5 + $0x1c] sm:$0xf]
      %v547 = vld [vmem:[%s384] sm:$0xff]
      %v548 = vld [vmem:[%s384 + $0x8] sm:$0xff]
      %v549 = vld [vmem:[%s384 + $0x10] sm:$0xff]
      %v550 = vld [vmem:[%s384 + $0x18] sm:$0xff]
      %v551 = vld [vmem:[%s384 + $0x20] sm:$0xff]
      %v552 = vld [vmem:[%s384 + $0x28] sm:$0xff]
      %v553 = vld [vmem:[%s384 + $0x30] sm:$0xff]
      %v554 = vld [vmem:[%s384 + $0x38] sm:$0xff]
      %556 = vset.pattern.permute.xlu0 0
      %557 = vperm.xlu0 %556, %v547
      %v558 = vpop.permute.xlu0 %557
      %561 = vset.pattern.permute.xlu0 0
      %562 = vperm.xlu0 %561, %v548
      %v563 = vpop.permute.xlu0 %562
      %566 = vset.pattern.permute.xlu0 0
      %567 = vperm.xlu0 %566, %v549
      %v568 = vpop.permute.xlu0 %567
      %571 = vset.pattern.permute.xlu0 0
      %572 = vperm.xlu0 %571, %v550
      %v573 = vpop.permute.xlu0 %572
      %576 = vset.pattern.permute.xlu0 0
      %577 = vperm.xlu0 %576, %v551
      %v578 = vpop.permute.xlu0 %577
      %581 = vset.pattern.permute.xlu0 0
      %582 = vperm.xlu0 %581, %v552
      %v583 = vpop.permute.xlu0 %582
      %586 = vset.pattern.permute.xlu0 0
      %587 = vperm.xlu0 %586, %v553
      %v588 = vpop.permute.xlu0 %587
      %591 = vset.pattern.permute.xlu0 0
      %592 = vperm.xlu0 %591, %v554
      %v593 = vpop.permute.xlu0 %592
      %v603 = vunpack.c.l.b16 %v539
      %v604 = vunpack.c.l.b16 %v540
      %v605 = vunpack.c.l.b16 %v541
      %v606 = vunpack.c.l.b16 %v542
      %v607 = vunpack.c.l.b16 %v543
      %v608 = vunpack.c.l.b16 %v544
      %v609 = vunpack.c.l.b16 %v545
      %v610 = vunpack.c.l.b16 %v546
      %v611 = vpack.c.b16 %v604, %v603
      %v612 = vpack.c.b16 %v606, %v605
      %v613 = vpack.c.b16 %v608, %v607
      %v614 = vpack.c.b16 %v610, %v609
      %vm615 = vcmask 785408
      %v617 = vsel %vm615, %v611, 0
      %v620 = vsel %vm615, %v612, 0
      %v623 = vsel %vm615, %v613, 0
      %v626 = vsel %vm615, %v614, 0
      %628 = vmatprep.subr.bf16.mxu0 0
      %629 = vmatpush1.bf16.msra.mxu0 %v533
      %630 = vmatprep.subr.bf16.mxu0 0
      %631 = vmatpush1.bf16.msra.mxu0 %v534
      %632 = vmatprep.subr.bf16.mxu0 0
      %633 = vmatpush1.bf16.msra.mxu0 %v535
      %634 = vmatprep.subr.bf16.mxu0 0
      %635 = vmatpush1.bf16.msra.mxu0 %v536
      %636 = vmatprep.subr.bf16.mxu0 0
      %637 = vmatpush1.bf16.msra.mxu0 %v537
      %638 = vmatprep.subr.bf16.mxu0 0
      %639 = vmatpush1.bf16.msra.mxu0 %v538
      %640 = vmatprep.subr.bf16.mxu0 0
      %641 = vmatpush1.bf16.msra.mxu0 0
      %642 = vmatprep.subr.bf16.mxu0 0
      %643 = vmatpush1.bf16.msra.mxu0 0
      %644 = vmatprep.subr.bf16.mxu0 0
      %645 = vmatpush1.bf16.msra.mxu0 0
      %646 = vmatprep.subr.bf16.mxu0 0
      %647 = vmatpush1.bf16.msra.mxu0 0
      %648 = vmatprep.subr.bf16.mxu0 0
      %649 = vmatpush1.bf16.msra.mxu0 0
      %650 = vmatprep.subr.bf16.mxu0 0
      %651 = vmatpush1.bf16.msra.mxu0 0
      %652 = vmatprep.subr.bf16.mxu0 0
      %653 = vmatpush1.bf16.msra.mxu0 0
      %654 = vmatprep.subr.bf16.mxu0 0
      %655 = vmatpush1.bf16.msra.mxu0 0
      %656 = vmatprep.subr.bf16.mxu0 0
      %657 = vmatpush1.bf16.msra.mxu0 0
      %658 = vmatprep.subr.bf16.mxu0 0
      %659 = vmatpush1.bf16.msra.mxu0 0
      %660 = vmatprep.mubr.bf16.mxu0 0
      %661 = vmatmul.mubr.bf16.gmra.mrb[0].mxu0 %v617
      %v662 = vpop.f32.mrb[0].mxu0
      %v663 = vadd.f32 %v558, %v662
      %v664 = vpop.f32.mrb[0].mxu0
      %v665 = vpop.f32.mrb[0].mxu0
      %v666 = vadd.f32 %v563, %v665
      %v667 = vpop.f32.mrb[0].mxu0
      %668 = vmatprep.mubr.bf16.mxu0 0
      %669 = vmatmul.mubr.bf16.gmra.mrb[0].mxu0 %v620
      %v670 = vpop.f32.mrb[0].mxu0
      %v671 = vadd.f32 %v568, %v670
      %v672 = vpop.f32.mrb[0].mxu0
      %v673 = vpop.f32.mrb[0].mxu0
      %v674 = vadd.f32 %v573, %v673
      %v675 = vpop.f32.mrb[0].mxu0
      %676 = vmatprep.mubr.bf16.mxu0 0
      %677 = vmatmul.mubr.bf16.gmra.mrb[0].mxu0 %v623
      %v678 = vpop.f32.mrb[0].mxu0
      %v679 = vadd.f32 %v578, %v678
      %v680 = vpop.f32.mrb[0].mxu0
      %v681 = vpop.f32.mrb[0].mxu0
      %v682 = vadd.f32 %v583, %v681
      %v683 = vpop.f32.mrb[0].mxu0
      %684 = vmatprep.mubr.bf16.mxu0 0
      %685 = vmatmul.mubr.bf16.gmra.mrb[0].mxu0 %v626
      %v686 = vpop.f32.mrb[0].mxu0
      %v687 = vadd.f32 %v588, %v686
      %v688 = vpop.f32.mrb[0].mxu0
      %v689 = vpop.f32.mrb[0].mxu0
      %v690 = vadd.f32 %v593, %v689
      %v691 = vpop.f32.mrb[0].mxu0
      %692 = vdwg.mxu0
      %v693 = vtanh.pop %v663
      %v694 = vtanh.pop %v666
      %v695 = vtanh.pop %v671
      %v696 = vtanh.pop %v674
      %v697 = vmul.f32 %v679, 0.5
      %v698 = vmul.f32 %v682, 0.5
      %v699 = vmul.f32 %v687, 0.5
      %v700 = vmul.f32 %v690, 0.5
      %v701 = vtanh.pop %v697
      %v702 = vtanh.pop %v698
      %v703 = vtanh.pop %v699
      %v704 = vtanh.pop %v700
      %v705 = vadd.f32 %v701, 1.0
      %v706 = vadd.f32 %v702, 1.0
      %v707 = vadd.f32 %v703, 1.0
      %v708 = vadd.f32 %v704, 1.0
      %v709 = vmul.f32 %v705, 0.5
      %v710 = vmul.f32 %v706, 0.5
      %v711 = vmul.f32 %v707, 0.5
      %v712 = vmul.f32 %v708, 0.5
      %v713 = vmul.f32 %v693, %v709
      %v714 = vmul.f32 %v694, %v710
      %v715 = vmul.f32 %v695, %v711
      %v716 = vmul.f32 %v696, %v712
      %v717 = vpack.c.bf16 %v714, %v713
      %v718 = vpack.c.bf16 %v716, %v715
      %v719 = vld [vmem:[%s6] sm:$0xf]
      %v720 = vld [vmem:[%s6 + $0x4] sm:$0xf]
      %v721 = vld [vmem:[%s6 + $0x8] sm:$0xf]
      %v722 = vld [vmem:[%s6 + $0xc] sm:$0xf]
      %v723 = vld [vmem:[%s6 + $0x10] sm:$0xf]
      %v724 = vld [vmem:[%s6 + $0x14] sm:$0xf]
      %v725 = vld [vmem:[%s6 + $0x18] sm:$0xf]
      %v726 = vld [vmem:[%s6 + $0x1c] sm:$0xf]
      %v727 = vld [vmem:[%s7] sm:$0xff]
      %v728 = vld [vmem:[%s7 + $0x8] sm:$0xff]
      %v729 = vld [vmem:[%s7 + $0x10] sm:$0xff]
      %v730 = vld [vmem:[%s7 + $0x18] sm:$0xff]
      %v731 = vld [vmem:[%s7 + $0x20] sm:$0xff]
      %v732 = vld [vmem:[%s7 + $0x28] sm:$0xff]
      %v733 = vld [vmem:[%s7 + $0x30] sm:$0xff]
      %v734 = vld [vmem:[%s7 + $0x38] sm:$0xff]
      %736 = vset.pattern.permute.xlu0 0
      %737 = vperm.xlu0 %736, %v727
      %v738 = vpop.permute.xlu0 %737
      %741 = vset.pattern.permute.xlu0 0
      %742 = vperm.xlu0 %741, %v728
      %v743 = vpop.permute.xlu0 %742
      %746 = vset.pattern.permute.xlu0 0
      %747 = vperm.xlu0 %746, %v729
      %v748 = vpop.permute.xlu0 %747
      %751 = vset.pattern.permute.xlu0 0
      %752 = vperm.xlu0 %751, %v730
      %v753 = vpop.permute.xlu0 %752
      %756 = vset.pattern.permute.xlu0 0
      %757 = vperm.xlu0 %756, %v731
      %v758 = vpop.permute.xlu0 %757
      %761 = vset.pattern.permute.xlu0 0
      %762 = vperm.xlu0 %761, %v732
      %v763 = vpop.permute.xlu0 %762
      %766 = vset.pattern.permute.xlu0 0
      %767 = vperm.xlu0 %766, %v733
      %v768 = vpop.permute.xlu0 %767
      %771 = vset.pattern.permute.xlu0 0
      %772 = vperm.xlu0 %771, %v734
      %v773 = vpop.permute.xlu0 %772
      %v783 = vunpack.c.l.b16 %v719
      %v784 = vunpack.c.l.b16 %v720
      %v785 = vunpack.c.l.b16 %v721
      %v786 = vunpack.c.l.b16 %v722
      %v787 = vunpack.c.l.b16 %v723
      %v788 = vunpack.c.l.b16 %v724
      %v789 = vunpack.c.l.b16 %v725
      %v790 = vunpack.c.l.b16 %v726
      %v791 = vpack.c.b16 %v784, %v783
      %v792 = vpack.c.b16 %v786, %v785
      %v793 = vpack.c.b16 %v788, %v787
      %v794 = vpack.c.b16 %v790, %v789
      %vm795 = vcmask 261120
      %v797 = vsel %vm795, %v791, 0
      %v800 = vsel %vm795, %v792, 0
      %v803 = vsel %vm795, %v793, 0
      %v806 = vsel %vm795, %v794, 0
      %808 = vmatprep.subr.bf16.mxu0 0
      %809 = vmatpush1.bf16.msra.mxu0 %v717
      %810 = vmatprep.subr.bf16.mxu0 0
      %811 = vmatpush1.bf16.msra.mxu0 %v718
      %812 = vmatprep.subr.bf16.mxu0 0
      %813 = vmatpush1.bf16.msra.mxu0 0
      %814 = vmatprep.subr.bf16.mxu0 0
      %815 = vmatpush1.bf16.msra.mxu0 0
      %816 = vmatprep.subr.bf16.mxu0 0
      %817 = vmatpush1.bf16.msra.mxu0 0
      %818 = vmatprep.subr.bf16.mxu0 0
      %819 = vmatpush1.bf16.msra.mxu0 0
      %820 = vmatprep.subr.bf16.mxu0 0
      %821 = vmatpush1.bf16.msra.mxu0 0
      %822 = vmatprep.subr.bf16.mxu0 0
      %823 = vmatpush1.bf16.msra.mxu0 0
      %824 = vmatprep.subr.bf16.mxu0 0
      %825 = vmatpush1.bf16.msra.mxu0 0
      %826 = vmatprep.subr.bf16.mxu0 0
      %827 = vmatpush1.bf16.msra.mxu0 0
      %828 = vmatprep.subr.bf16.mxu0 0
      %829 = vmatpush1.bf16.msra.mxu0 0
      %830 = vmatprep.subr.bf16.mxu0 0
      %831 = vmatpush1.bf16.msra.mxu0 0
      %832 = vmatprep.subr.bf16.mxu0 0
      %833 = vmatpush1.bf16.msra.mxu0 0
      %834 = vmatprep.subr.bf16.mxu0 0
      %835 = vmatpush1.bf16.msra.mxu0 0
      %836 = vmatprep.subr.bf16.mxu0 0
      %837 = vmatpush1.bf16.msra.mxu0 0
      %838 = vmatprep.subr.bf16.mxu0 0
      %839 = vmatpush1.bf16.msra.mxu0 0
      %840 = vmatprep.mubr.bf16.mxu0 0
      %841 = vmatmul.mubr.bf16.gmra.mrb[0].mxu0 %v797
      %v842 = vpop.f32.mrb[0].mxu0
      %v843 = vadd.f32 %v738, %v842
      %v844 = vpop.f32.mrb[0].mxu0
      %v845 = vpop.f32.mrb[0].mxu0
      %v846 = vadd.f32 %v743, %v845
      %v847 = vpop.f32.mrb[0].mxu0
      %848 = vmatprep.mubr.bf16.mxu0 0
      %849 = vmatmul.mubr.bf16.gmra.mrb[0].mxu0 %v800
      %v850 = vpop.f32.mrb[0].mxu0
      %v851 = vadd.f32 %v748, %v850
      %v852 = vpop.f32.mrb[0].mxu0
      %v853 = vpop.f32.mrb[0].mxu0
      %v854 = vadd.f32 %v753, %v853
      %v855 = vpop.f32.mrb[0].mxu0
      %856 = vmatprep.mubr.bf16.mxu0 0
      %857 = vmatmul.mubr.bf16.gmra.mrb[0].mxu0 %v803
      %v858 = vpop.f32.mrb[0].mxu0
      %v859 = vadd.f32 %v758, %v858
      %v860 = vpop.f32.mrb[0].mxu0
      %v861 = vpop.f32.mrb[0].mxu0
      %v862 = vadd.f32 %v763, %v861
      %v863 = vpop.f32.mrb[0].mxu0
      %864 = vmatprep.mubr.bf16.mxu0 0
      %865 = vmatmul.mubr.bf16.gmra.mrb[0].mxu0 %v806
      %v866 = vpop.f32.mrb[0].mxu0
      %v867 = vadd.f32 %v768, %v866
      %v868 = vpop.f32.mrb[0].mxu0
      %v869 = vpop.f32.mrb[0].mxu0
      %v870 = vadd.f32 %v773, %v869
      %v871 = vpop.f32.mrb[0].mxu0
      %872 = vdwg.mxu0
      %v873 = vadd.f32 %v497, %v843
      %v874 = vadd.f32 %v498, %v846
      %v875 = vadd.f32 %v499, %v851
      %v876 = vadd.f32 %v500, %v854
      %v877 = vmul.f32 %v873, %v495
      %v878 = vmul.f32 %v874, %v495
      %v879 = vmul.f32 %v875, %v495
      %v880 = vmul.f32 %v876, %v495
      %v881 = vadd.f32 %v859, 0.0
      %v882 = vadd.f32 %v862, 0.0
      %v883 = vadd.f32 %v867, 0.0
      %v884 = vadd.f32 %v870, 0.0
      %885 = vrot.lane.b32.xlu0 %v877, 2
      %v886 = vpop.permute.xlu0 %885
      %887 = vrot.lane.b32.xlu0 %v878, 2
      %v888 = vpop.permute.xlu0 %887
      %889 = vrot.lane.b32.xlu0 %v879, 2
      %v890 = vpop.permute.xlu0 %889
      %891 = vrot.lane.b32.xlu0 %v880, 2
      %v892 = vpop.permute.xlu0 %891
      %vm893 = vcmp.ge.s32.totalorder %v502, 2
      %vm894 = vmand %vm893, %vm512
      %v895 = vsel %vm894, %v886, 0.0
      %v896 = vsel %vm894, %v888, 0.0
      %v897 = vsel %vm894, %v890, 0.0
      %v898 = vsel %vm894, %v892, 0.0
      %899 = vrot.lane.b32.xlu0 %v877, 126
      %v900 = vpop.permute.xlu0 %899
      %901 = vrot.lane.b32.xlu0 %v878, 126
      %v902 = vpop.permute.xlu0 %901
      %903 = vrot.lane.b32.xlu0 %v879, 126
      %v904 = vpop.permute.xlu0 %903
      %905 = vrot.lane.b32.xlu0 %v880, 126
      %v906 = vpop.permute.xlu0 %905
      %vm907 = vcmp.lt.s32.totalorder %v502, 126
      %vm908 = vmand %vm526, %vm907
      %v909 = vsel %vm908, %v900, 0.0
      %v910 = vsel %vm908, %v902, 0.0
      %v911 = vsel %vm908, %v904, 0.0
      %v912 = vsel %vm908, %v906, 0.0
      %v913 = vpack.c.bf16 %v896, %v895
      %v914 = vpack.c.bf16 %v898, %v897
      %v915 = vpack.c.bf16 %v878, %v877
      %v916 = vpack.c.bf16 %v880, %v879
      %v917 = vpack.c.bf16 %v910, %v909
      %v918 = vpack.c.bf16 %v912, %v911
      %s919 = scalar_lea.vmem %s5, 32
      %v920 = vld [vmem:[%s919] sm:$0xf]
      %v921 = vld [vmem:[%s919 + $0x4] sm:$0xf]
      %v922 = vld [vmem:[%s919 + $0x8] sm:$0xf]
      %v923 = vld [vmem:[%s919 + $0xc] sm:$0xf]
      %v924 = vld [vmem:[%s919 + $0x10] sm:$0xf]
      %v925 = vld [vmem:[%s919 + $0x14] sm:$0xf]
      %v926 = vld [vmem:[%s919 + $0x18] sm:$0xf]
      %v927 = vld [vmem:[%s919 + $0x1c] sm:$0xf]
      %s928 = scalar_lea.vmem %s384, 64
      %v929 = vld [vmem:[%s928] sm:$0xff]
      %v930 = vld [vmem:[%s928 + $0x8] sm:$0xff]
      %v931 = vld [vmem:[%s928 + $0x10] sm:$0xff]
      %v932 = vld [vmem:[%s928 + $0x18] sm:$0xff]
      %v933 = vld [vmem:[%s928 + $0x20] sm:$0xff]
      %v934 = vld [vmem:[%s928 + $0x28] sm:$0xff]
      %v935 = vld [vmem:[%s928 + $0x30] sm:$0xff]
      %v936 = vld [vmem:[%s928 + $0x38] sm:$0xff]
      %938 = vset.pattern.permute.xlu0 0
      %939 = vperm.xlu0 %938, %v929
      %v940 = vpop.permute.xlu0 %939
      %943 = vset.pattern.permute.xlu0 0
      %944 = vperm.xlu0 %943, %v930
      %v945 = vpop.permute.xlu0 %944
      %948 = vset.pattern.permute.xlu0 0
      %949 = vperm.xlu0 %948, %v931
      %v950 = vpop.permute.xlu0 %949
      %953 = vset.pattern.permute.xlu0 0
      %954 = vperm.xlu0 %953, %v932
      %v955 = vpop.permute.xlu0 %954
      %958 = vset.pattern.permute.xlu0 0
      %959 = vperm.xlu0 %958, %v933
      %v960 = vpop.permute.xlu0 %959
      %963 = vset.pattern.permute.xlu0 0
      %964 = vperm.xlu0 %963, %v934
      %v965 = vpop.permute.xlu0 %964
      %968 = vset.pattern.permute.xlu0 0
      %969 = vperm.xlu0 %968, %v935
      %v970 = vpop.permute.xlu0 %969
      %973 = vset.pattern.permute.xlu0 0
      %974 = vperm.xlu0 %973, %v936
      %v975 = vpop.permute.xlu0 %974
      %v985 = vunpack.c.l.b16 %v920
      %v986 = vunpack.c.l.b16 %v921
      %v987 = vunpack.c.l.b16 %v922
      %v988 = vunpack.c.l.b16 %v923
      %v989 = vunpack.c.l.b16 %v924
      %v990 = vunpack.c.l.b16 %v925
      %v991 = vunpack.c.l.b16 %v926
      %v992 = vunpack.c.l.b16 %v927
      %v993 = vpack.c.b16 %v986, %v985
      %v994 = vpack.c.b16 %v988, %v987
      %v995 = vpack.c.b16 %v990, %v989
      %v996 = vpack.c.b16 %v992, %v991
      %v998 = vsel %vm615, %v993, 0
      %v1001 = vsel %vm615, %v994, 0
      %v1004 = vsel %vm615, %v995, 0
      %v1007 = vsel %vm615, %v996, 0
      %1009 = vmatprep.subr.bf16.mxu0 0
      %1010 = vmatpush1.bf16.msra.mxu0 %v913
      %1011 = vmatprep.subr.bf16.mxu0 0
      %1012 = vmatpush1.bf16.msra.mxu0 %v914
      %1013 = vmatprep.subr.bf16.mxu0 0
      %1014 = vmatpush1.bf16.msra.mxu0 %v915
      %1015 = vmatprep.subr.bf16.mxu0 0
      %1016 = vmatpush1.bf16.msra.mxu0 %v916
      %1017 = vmatprep.subr.bf16.mxu0 0
      %1018 = vmatpush1.bf16.msra.mxu0 %v917
      %1019 = vmatprep.subr.bf16.mxu0 0
      %1020 = vmatpush1.bf16.msra.mxu0 %v918
      %1021 = vmatprep.subr.bf16.mxu0 0
      %1022 = vmatpush1.bf16.msra.mxu0 0
      %1023 = vmatprep.subr.bf16.mxu0 0
      %1024 = vmatpush1.bf16.msra.mxu0 0
      %1025 = vmatprep.subr.bf16.mxu0 0
      %1026 = vmatpush1.bf16.msra.mxu0 0
      %1027 = vmatprep.subr.bf16.mxu0 0
      %1028 = vmatpush1.bf16.msra.mxu0 0
      %1029 = vmatprep.subr.bf16.mxu0 0
      %1030 = vmatpush1.bf16.msra.mxu0 0
      %1031 = vmatprep.subr.bf16.mxu0 0
      %1032 = vmatpush1.bf16.msra.mxu0 0
      %1033 = vmatprep.subr.bf16.mxu0 0
      %1034 = vmatpush1.bf16.msra.mxu0 0
      %1035 = vmatprep.subr.bf16.mxu0 0
      %1036 = vmatpush1.bf16.msra.mxu0 0
      %1037 = vmatprep.subr.bf16.mxu0 0
      %1038 = vmatpush1.bf16.msra.mxu0 0
      %1039 = vmatprep.subr.bf16.mxu0 0
      %1040 = vmatpush1.bf16.msra.mxu0 0
      %1041 = vmatprep.mubr.bf16.mxu0 0
      %1042 = vmatmul.mubr.bf16.gmra.mrb[0].mxu0 %v998
      %v1043 = vpop.f32.mrb[0].mxu0
      %v1044 = vadd.f32 %v940, %v1043
      %v1045 = vpop.f32.mrb[0].mxu0
      %v1046 = vpop.f32.mrb[0].mxu0
      %v1047 = vadd.f32 %v945, %v1046
      %v1048 = vpop.f32.mrb[0].mxu0
      %1049 = vmatprep.mubr.bf16.mxu0 0
      %1050 = vmatmul.mubr.bf16.gmra.mrb[0].mxu0 %v1001
      %v1051 = vpop.f32.mrb[0].mxu0
      %v1052 = vadd.f32 %v950, %v1051
      %v1053 = vpop.f32.mrb[0].mxu0
      %v1054 = vpop.f32.mrb[0].mxu0
      %v1055 = vadd.f32 %v955, %v1054
      %v1056 = vpop.f32.mrb[0].mxu0
      %1057 = vmatprep.mubr.bf16.mxu0 0
      %1058 = vmatmul.mubr.bf16.gmra.mrb[0].mxu0 %v1004
      %v1059 = vpop.f32.mrb[0].mxu0
      %v1060 = vadd.f32 %v960, %v1059
      %v1061 = vpop.f32.mrb[0].mxu0
      %v1062 = vpop.f32.mrb[0].mxu0
      %v1063 = vadd.f32 %v965, %v1062
      %v1064 = vpop.f32.mrb[0].mxu0
      %1065 = vmatprep.mubr.bf16.mxu0 0
      %1066 = vmatmul.mubr.bf16.gmra.mrb[0].mxu0 %v1007
      %v1067 = vpop.f32.mrb[0].mxu0
      %v1068 = vadd.f32 %v970, %v1067
      %v1069 = vpop.f32.mrb[0].mxu0
      %v1070 = vpop.f32.mrb[0].mxu0
      %v1071 = vadd.f32 %v975, %v1070
      %v1072 = vpop.f32.mrb[0].mxu0
      %1073 = vdwg.mxu0
      %v1074 = vtanh.pop %v1044
      %v1075 = vtanh.pop %v1047
      %v1076 = vtanh.pop %v1052
      %v1077 = vtanh.pop %v1055
      %v1078 = vmul.f32 %v1060, 0.5
      %v1079 = vmul.f32 %v1063, 0.5
      %v1080 = vmul.f32 %v1068, 0.5
      %v1081 = vmul.f32 %v1071, 0.5
      %v1082 = vtanh.pop %v1078
      %v1083 = vtanh.pop %v1079
      %v1084 = vtanh.pop %v1080
      %v1085 = vtanh.pop %v1081
      %v1086 = vadd.f32 %v1082, 1.0
      %v1087 = vadd.f32 %v1083, 1.0
      %v1088 = vadd.f32 %v1084, 1.0
      %v1089 = vadd.f32 %v1085, 1.0
      %v1090 = vmul.f32 %v1086, 0.5
      %v1091 = vmul.f32 %v1087, 0.5
      %v1092 = vmul.f32 %v1088, 0.5
      %v1093 = vmul.f32 %v1089, 0.5
      %v1094 = vmul.f32 %v1074, %v1090
      %v1095 = vmul.f32 %v1075, %v1091
      %v1096 = vmul.f32 %v1076, %v1092
      %v1097 = vmul.f32 %v1077, %v1093
      %v1098 = vpack.c.bf16 %v1095, %v1094
      %v1099 = vpack.c.bf16 %v1097, %v1096
      %s1100 = scalar_lea.vmem %s6, 32
      %v1101 = vld [vmem:[%s1100] sm:$0xf]
      %v1102 = vld [vmem:[%s1100 + $0x4] sm:$0xf]
      %v1103 = vld [vmem:[%s1100 + $0x8] sm:$0xf]
      %v1104 = vld [vmem:[%s1100 + $0xc] sm:$0xf]
      %v1105 = vld [vmem:[%s1100 + $0x10] sm:$0xf]
      %v1106 = vld [vmem:[%s1100 + $0x14] sm:$0xf]
      %v1107 = vld [vmem:[%s1100 + $0x18] sm:$0xf]
      %v1108 = vld [vmem:[%s1100 + $0x1c] sm:$0xf]
      %s1109 = scalar_lea.vmem %s7, 64
      %v1110 = vld [vmem:[%s1109] sm:$0xff]
      %v1111 = vld [vmem:[%s1109 + $0x8] sm:$0xff]
      %v1112 = vld [vmem:[%s1109 + $0x10] sm:$0xff]
      %v1113 = vld [vmem:[%s1109 + $0x18] sm:$0xff]
      %v1114 = vld [vmem:[%s1109 + $0x20] sm:$0xff]
      %v1115 = vld [vmem:[%s1109 + $0x28] sm:$0xff]
      %v1116 = vld [vmem:[%s1109 + $0x30] sm:$0xff]
      %v1117 = vld [vmem:[%s1109 + $0x38] sm:$0xff]
      %1119 = vset.pattern.permute.xlu0 0
      %1120 = vperm.xlu0 %1119, %v1110
      %v1121 = vpop.permute.xlu0 %1120
      %1124 = vset.pattern.permute.xlu0 0
      %1125 = vperm.xlu0 %1124, %v1111
      %v1126 = vpop.permute.xlu0 %1125
      %1129 = vset.pattern.permute.xlu0 0
      %1130 = vperm.xlu0 %1129, %v1112
      %v1131 = vpop.permute.xlu0 %1130
      %1134 = vset.pattern.permute.xlu0 0
      %1135 = vperm.xlu0 %1134, %v1113
      %v1136 = vpop.permute.xlu0 %1135
      %1139 = vset.pattern.permute.xlu0 0
      %1140 = vperm.xlu0 %1139, %v1114
      %v1141 = vpop.permute.xlu0 %1140
      %1144 = vset.pattern.permute.xlu0 0
      %1145 = vperm.xlu0 %1144, %v1115
      %v1146 = vpop.permute.xlu0 %1145
      %1149 = vset.pattern.permute.xlu0 0
      %1150 = vperm.xlu0 %1149, %v1116
      %v1151 = vpop.permute.xlu0 %1150
      %1154 = vset.pattern.permute.xlu0 0
      %1155 = vperm.xlu0 %1154, %v1117
      %v1156 = vpop.permute.xlu0 %1155
      %v1166 = vunpack.c.l.b16 %v1101
      %v1167 = vunpack.c.l.b16 %v1102
      %v1168 = vunpack.c.l.b16 %v1103
      %v1169 = vunpack.c.l.b16 %v1104
      %v1170 = vunpack.c.l.b16 %v1105
      %v1171 = vunpack.c.l.b16 %v1106
      %v1172 = vunpack.c.l.b16 %v1107
      %v1173 = vunpack.c.l.b16 %v1108
      %v1174 = vpack.c.b16 %v1167, %v1166
      %v1175 = vpack.c.b16 %v1169, %v1168
      %v1176 = vpack.c.b16 %v1171, %v1170
      %v1177 = vpack.c.b16 %v1173, %v1172
      %v1179 = vsel %vm795, %v1174, 0
      %v1182 = vsel %vm795, %v1175, 0
      %v1185 = vsel %vm795, %v1176, 0
      %v1188 = vsel %vm795, %v1177, 0
      %1190 = vmatprep.subr.bf16.mxu0 0
      %1191 = vmatpush1.bf16.msra.mxu0 %v1098
      %1192 = vmatprep.subr.bf16.mxu0 0
      %1193 = vmatpush1.bf16.msra.mxu0 %v1099
      %1194 = vmatprep.subr.bf16.mxu0 0
      %1195 = vmatpush1.bf16.msra.mxu0 0
      %1196 = vmatprep.subr.bf16.mxu0 0
      %1197 = vmatpush1.bf16.msra.mxu0 0
      %1198 = vmatprep.subr.bf16.mxu0 0
      %1199 = vmatpush1.bf16.msra.mxu0 0
      %1200 = vmatprep.subr.bf16.mxu0 0
      %1201 = vmatpush1.bf16.msra.mxu0 0
      %1202 = vmatprep.subr.bf16.mxu0 0
      %1203 = vmatpush1.bf16.msra.mxu0 0
      %1204 = vmatprep.subr.bf16.mxu0 0
      %1205 = vmatpush1.bf16.msra.mxu0 0
      %1206 = vmatprep.subr.bf16.mxu0 0
      %1207 = vmatpush1.bf16.msra.mxu0 0
      %1208 = vmatprep.subr.bf16.mxu0 0
      %1209 = vmatpush1.bf16.msra.mxu0 0
      %1210 = vmatprep.subr.bf16.mxu0 0
      %1211 = vmatpush1.bf16.msra.mxu0 0
      %1212 = vmatprep.subr.bf16.mxu0 0
      %1213 = vmatpush1.bf16.msra.mxu0 0
      %1214 = vmatprep.subr.bf16.mxu0 0
      %1215 = vmatpush1.bf16.msra.mxu0 0
      %1216 = vmatprep.subr.bf16.mxu0 0
      %1217 = vmatpush1.bf16.msra.mxu0 0
      %1218 = vmatprep.subr.bf16.mxu0 0
      %1219 = vmatpush1.bf16.msra.mxu0 0
      %1220 = vmatprep.subr.bf16.mxu0 0
      %1221 = vmatpush1.bf16.msra.mxu0 0
      %1222 = vmatprep.mubr.bf16.mxu0 0
      %1223 = vmatmul.mubr.bf16.gmra.mrb[0].mxu0 %v1179
      %v1224 = vpop.f32.mrb[0].mxu0
      %v1225 = vadd.f32 %v1121, %v1224
      %v1226 = vpop.f32.mrb[0].mxu0
      %v1227 = vpop.f32.mrb[0].mxu0
      %v1228 = vadd.f32 %v1126, %v1227
      %v1229 = vpop.f32.mrb[0].mxu0
      %1230 = vmatprep.mubr.bf16.mxu0 0
      %1231 = vmatmul.mubr.bf16.gmra.mrb[0].mxu0 %v1182
      %v1232 = vpop.f32.mrb[0].mxu0
      %v1233 = vadd.f32 %v1131, %v1232
      %v1234 = vpop.f32.mrb[0].mxu0
      %v1235 = vpop.f32.mrb[0].mxu0
      %v1236 = vadd.f32 %v1136, %v1235
      %v1237 = vpop.f32.mrb[0].mxu0
      %1238 = vmatprep.mubr.bf16.mxu0 0
      %1239 = vmatmul.mubr.bf16.gmra.mrb[0].mxu0 %v1185
      %v1240 = vpop.f32.mrb[0].mxu0
      %v1241 = vadd.f32 %v1141, %v1240
      %v1242 = vpop.f32.mrb[0].mxu0
      %v1243 = vpop.f32.mrb[0].mxu0
      %v1244 = vadd.f32 %v1146, %v1243
      %v1245 = vpop.f32.mrb[0].mxu0
      %1246 = vmatprep.mubr.bf16.mxu0 0
      %1247 = vmatmul.mubr.bf16.gmra.mrb[0].mxu0 %v1188
      %v1248 = vpop.f32.mrb[0].mxu0
      %v1249 = vadd.f32 %v1151, %v1248
      %v1250 = vpop.f32.mrb[0].mxu0
      %v1251 = vpop.f32.mrb[0].mxu0
      %v1252 = vadd.f32 %v1156, %v1251
      %v1253 = vpop.f32.mrb[0].mxu0
      %1254 = vdwg.mxu0
      %v1255 = vadd.f32 %v877, %v1225
      %v1256 = vadd.f32 %v878, %v1228
      %v1257 = vadd.f32 %v879, %v1233
      %v1258 = vadd.f32 %v880, %v1236
      %v1259 = vmul.f32 %v1255, %v495
      %v1260 = vmul.f32 %v1256, %v495
      %v1261 = vmul.f32 %v1257, %v495
      %v1262 = vmul.f32 %v1258, %v495
      %v1263 = vadd.f32 %v881, %v1241
      %v1264 = vadd.f32 %v882, %v1244
      %v1265 = vadd.f32 %v883, %v1249
      %v1266 = vadd.f32 %v884, %v1252
      %1267 = vrot.lane.b32.xlu0 %v1259, 4
      %v1268 = vpop.permute.xlu0 %1267
      %1269 = vrot.lane.b32.xlu0 %v1260, 4
      %v1270 = vpop.permute.xlu0 %1269
      %1271 = vrot.lane.b32.xlu0 %v1261, 4
      %v1272 = vpop.permute.xlu0 %1271
      %1273 = vrot.lane.b32.xlu0 %v1262, 4
      %v1274 = vpop.permute.xlu0 %1273
      %vm1275 = vcmp.ge.s32.totalorder %v502, 4
      %vm1276 = vmand %vm1275, %vm512
      %v1277 = vsel %vm1276, %v1268, 0.0
      %v1278 = vsel %vm1276, %v1270, 0.0
      %v1279 = vsel %vm1276, %v1272, 0.0
      %v1280 = vsel %vm1276, %v1274, 0.0
      %1281 = vrot.lane.b32.xlu0 %v1259, 124
      %v1282 = vpop.permute.xlu0 %1281
      %1283 = vrot.lane.b32.xlu0 %v1260, 124
      %v1284 = vpop.permute.xlu0 %1283
      %1285 = vrot.lane.b32.xlu0 %v1261, 124
      %v1286 = vpop.permute.xlu0 %1285
      %1287 = vrot.lane.b32.xlu0 %v1262, 124
      %v1288 = vpop.permute.xlu0 %1287
      %vm1289 = vcmp.lt.s32.totalorder %v502, 124
      %vm1290 = vmand %vm526, %vm1289
      %v1291 = vsel %vm1290, %v1282, 0.0
      %v1292 = vsel %vm1290, %v1284, 0.0
      %v1293 = vsel %vm1290, %v1286, 0.0
      %v1294 = vsel %vm1290, %v1288, 0.0
      %v1295 = vpack.c.bf16 %v1278, %v1277
      %v1296 = vpack.c.bf16 %v1280, %v1279
      %v1297 = vpack.c.bf16 %v1260, %v1259
      %v1298 = vpack.c.bf16 %v1262, %v1261
      %v1299 = vpack.c.bf16 %v1292, %v1291
      %v1300 = vpack.c.bf16 %v1294, %v1293
      %s1301 = scalar_lea.vmem %s5, 64
      %v1302 = vld [vmem:[%s1301] sm:$0xf]
      %v1303 = vld [vmem:[%s1301 + $0x4] sm:$0xf]
      %v1304 = vld [vmem:[%s1301 + $0x8] sm:$0xf]
      %v1305 = vld [vmem:[%s1301 + $0xc] sm:$0xf]
      %v1306 = vld [vmem:[%s1301 + $0x10] sm:$0xf]
      %v1307 = vld [vmem:[%s1301 + $0x14] sm:$0xf]
      %v1308 = vld [vmem:[%s1301 + $0x18] sm:$0xf]
      %v1309 = vld [vmem:[%s1301 + $0x1c] sm:$0xf]
      %s1310 = scalar_lea.vmem %s384, 128
      %v1311 = vld [vmem:[%s1310] sm:$0xff]
      %v1312 = vld [vmem:[%s1310 + $0x8] sm:$0xff]
      %v1313 = vld [vmem:[%s1310 + $0x10] sm:$0xff]
      %v1314 = vld [vmem:[%s1310 + $0x18] sm:$0xff]
      %v1315 = vld [vmem:[%s1310 + $0x20] sm:$0xff]
      %v1316 = vld [vmem:[%s1310 + $0x28] sm:$0xff]
      %v1317 = vld [vmem:[%s1310 + $0x30] sm:$0xff]
      %v1318 = vld [vmem:[%s1310 + $0x38] sm:$0xff]
      %1320 = vset.pattern.permute.xlu0 0
      %1321 = vperm.xlu0 %1320, %v1311
      %v1322 = vpop.permute.xlu0 %1321
      %1325 = vset.pattern.permute.xlu0 0
      %1326 = vperm.xlu0 %1325, %v1312
      %v1327 = vpop.permute.xlu0 %1326
      %1330 = vset.pattern.permute.xlu0 0
      %1331 = vperm.xlu0 %1330, %v1313
      %v1332 = vpop.permute.xlu0 %1331
      %1335 = vset.pattern.permute.xlu0 0
      %1336 = vperm.xlu0 %1335, %v1314
      %v1337 = vpop.permute.xlu0 %1336
      %1340 = vset.pattern.permute.xlu0 0
      %1341 = vperm.xlu0 %1340, %v1315
      %v1342 = vpop.permute.xlu0 %1341
      %1345 = vset.pattern.permute.xlu0 0
      %1346 = vperm.xlu0 %1345, %v1316
      %v1347 = vpop.permute.xlu0 %1346
      %1350 = vset.pattern.permute.xlu0 0
      %1351 = vperm.xlu0 %1350, %v1317
      %v1352 = vpop.permute.xlu0 %1351
      %1355 = vset.pattern.permute.xlu0 0
      %1356 = vperm.xlu0 %1355, %v1318
      %v1357 = vpop.permute.xlu0 %1356
      %v1367 = vunpack.c.l.b16 %v1302
      %v1368 = vunpack.c.l.b16 %v1303
      %v1369 = vunpack.c.l.b16 %v1304
      %v1370 = vunpack.c.l.b16 %v1305
      %v1371 = vunpack.c.l.b16 %v1306
      %v1372 = vunpack.c.l.b16 %v1307
      %v1373 = vunpack.c.l.b16 %v1308
      %v1374 = vunpack.c.l.b16 %v1309
      %v1375 = vpack.c.b16 %v1368, %v1367
      %v1376 = vpack.c.b16 %v1370, %v1369
      %v1377 = vpack.c.b16 %v1372, %v1371
      %v1378 = vpack.c.b16 %v1374, %v1373
      %v1380 = vsel %vm615, %v1375, 0
      %v1383 = vsel %vm615, %v1376, 0
      %v1386 = vsel %vm615, %v1377, 0
      %v1389 = vsel %vm615, %v1378, 0
      %1391 = vmatprep.subr.bf16.mxu0 0
      %1392 = vmatpush1.bf16.msra.mxu0 %v1295
      %1393 = vmatprep.subr.bf16.mxu0 0
      %1394 = vmatpush1.bf16.msra.mxu0 %v1296
      %1395 = vmatprep.subr.bf16.mxu0 0
      %1396 = vmatpush1.bf16.msra.mxu0 %v1297
      %1397 = vmatprep.subr.bf16.mxu0 0
      %1398 = vmatpush1.bf16.msra.mxu0 %v1298
      %1399 = vmatprep.subr.bf16.mxu0 0
      %1400 = vmatpush1.bf16.msra.mxu0 %v1299
      %1401 = vmatprep.subr.bf16.mxu0 0
      %1402 = vmatpush1.bf16.msra.mxu0 %v1300
      %1403 = vmatprep.subr.bf16.mxu0 0
      %1404 = vmatpush1.bf16.msra.mxu0 0
      %1405 = vmatprep.subr.bf16.mxu0 0
      %1406 = vmatpush1.bf16.msra.mxu0 0
      %1407 = vmatprep.subr.bf16.mxu0 0
      %1408 = vmatpush1.bf16.msra.mxu0 0
      %1409 = vmatprep.subr.bf16.mxu0 0
      %1410 = vmatpush1.bf16.msra.mxu0 0
      %1411 = vmatprep.subr.bf16.mxu0 0
      %1412 = vmatpush1.bf16.msra.mxu0 0
      %1413 = vmatprep.subr.bf16.mxu0 0
      %1414 = vmatpush1.bf16.msra.mxu0 0
      %1415 = vmatprep.subr.bf16.mxu0 0
      %1416 = vmatpush1.bf16.msra.mxu0 0
      %1417 = vmatprep.subr.bf16.mxu0 0
      %1418 = vmatpush1.bf16.msra.mxu0 0
      %1419 = vmatprep.subr.bf16.mxu0 0
      %1420 = vmatpush1.bf16.msra.mxu0 0
      %1421 = vmatprep.subr.bf16.mxu0 0
      %1422 = vmatpush1.bf16.msra.mxu0 0
      %1423 = vmatprep.mubr.bf16.mxu0 0
      %1424 = vmatmul.mubr.bf16.gmra.mrb[0].mxu0 %v1380
      %v1425 = vpop.f32.mrb[0].mxu0
      %v1426 = vadd.f32 %v1322, %v1425
      %v1427 = vpop.f32.mrb[0].mxu0
      %v1428 = vpop.f32.mrb[0].mxu0
      %v1429 = vadd.f32 %v1327, %v1428
      %v1430 = vpop.f32.mrb[0].mxu0
      %1431 = vmatprep.mubr.bf16.mxu0 0
      %1432 = vmatmul.mubr.bf16.gmra.mrb[0].mxu0 %v1383
      %v1433 = vpop.f32.mrb[0].mxu0
      %v1434 = vadd.f32 %v1332, %v1433
      %v1435 = vpop.f32.mrb[0].mxu0
      %v1436 = vpop.f32.mrb[0].mxu0
      %v1437 = vadd.f32 %v1337, %v1436
      %v1438 = vpop.f32.mrb[0].mxu0
      %1439 = vmatprep.mubr.bf16.mxu0 0
      %1440 = vmatmul.mubr.bf16.gmra.mrb[0].mxu0 %v1386
      %v1441 = vpop.f32.mrb[0].mxu0
      %v1442 = vadd.f32 %v1342, %v1441
      %v1443 = vpop.f32.mrb[0].mxu0
      %v1444 = vpop.f32.mrb[0].mxu0
      %v1445 = vadd.f32 %v1347, %v1444
      %v1446 = vpop.f32.mrb[0].mxu0
      %1447 = vmatprep.mubr.bf16.mxu0 0
      %1448 = vmatmul.mubr.bf16.gmra.mrb[0].mxu0 %v1389
      %v1449 = vpop.f32.mrb[0].mxu0
      %v1450 = vadd.f32 %v1352, %v1449
      %v1451 = vpop.f32.mrb[0].mxu0
      %v1452 = vpop.f32.mrb[0].mxu0
      %v1453 = vadd.f32 %v1357, %v1452
      %v1454 = vpop.f32.mrb[0].mxu0
      %1455 = vdwg.mxu0
      %v1456 = vtanh.pop %v1426
      %v1457 = vtanh.pop %v1429
      %v1458 = vtanh.pop %v1434
      %v1459 = vtanh.pop %v1437
      %v1460 = vmul.f32 %v1442, 0.5
      %v1461 = vmul.f32 %v1445, 0.5
      %v1462 = vmul.f32 %v1450, 0.5
      %v1463 = vmul.f32 %v1453, 0.5
      %v1464 = vtanh.pop %v1460
      %v1465 = vtanh.pop %v1461
      %v1466 = vtanh.pop %v1462
      %v1467 = vtanh.pop %v1463
      %v1468 = vadd.f32 %v1464, 1.0
      %v1469 = vadd.f32 %v1465, 1.0
      %v1470 = vadd.f32 %v1466, 1.0
      %v1471 = vadd.f32 %v1467, 1.0
      %v1472 = vmul.f32 %v1468, 0.5
      %v1473 = vmul.f32 %v1469, 0.5
      %v1474 = vmul.f32 %v1470, 0.5
      %v1475 = vmul.f32 %v1471, 0.5
      %v1476 = vmul.f32 %v1456, %v1472
      %v1477 = vmul.f32 %v1457, %v1473
      %v1478 = vmul.f32 %v1458, %v1474
      %v1479 = vmul.f32 %v1459, %v1475
      %v1480 = vpack.c.bf16 %v1477, %v1476
      %v1481 = vpack.c.bf16 %v1479, %v1478
      %s1482 = scalar_lea.vmem %s6, 64
      %v1483 = vld [vmem:[%s1482] sm:$0xf]
      %v1484 = vld [vmem:[%s1482 + $0x4] sm:$0xf]
      %v1485 = vld [vmem:[%s1482 + $0x8] sm:$0xf]
      %v1486 = vld [vmem:[%s1482 + $0xc] sm:$0xf]
      %v1487 = vld [vmem:[%s1482 + $0x10] sm:$0xf]
      %v1488 = vld [vmem:[%s1482 + $0x14] sm:$0xf]
      %v1489 = vld [vmem:[%s1482 + $0x18] sm:$0xf]
      %v1490 = vld [vmem:[%s1482 + $0x1c] sm:$0xf]
      %s1491 = scalar_lea.vmem %s7, 128
      %v1492 = vld [vmem:[%s1491] sm:$0xff]
      %v1493 = vld [vmem:[%s1491 + $0x8] sm:$0xff]
      %v1494 = vld [vmem:[%s1491 + $0x10] sm:$0xff]
      %v1495 = vld [vmem:[%s1491 + $0x18] sm:$0xff]
      %v1496 = vld [vmem:[%s1491 + $0x20] sm:$0xff]
      %v1497 = vld [vmem:[%s1491 + $0x28] sm:$0xff]
      %v1498 = vld [vmem:[%s1491 + $0x30] sm:$0xff]
      %v1499 = vld [vmem:[%s1491 + $0x38] sm:$0xff]
      %1501 = vset.pattern.permute.xlu0 0
      %1502 = vperm.xlu0 %1501, %v1492
      %v1503 = vpop.permute.xlu0 %1502
      %1505 = vset.pattern.permute.xlu0 0
      %1506 = vperm.xlu0 %1505, %v1493
      %v1507 = vpop.permute.xlu0 %1506
      %1509 = vset.pattern.permute.xlu0 0
      %1510 = vperm.xlu0 %1509, %v1494
      %v1511 = vpop.permute.xlu0 %1510
      %1513 = vset.pattern.permute.xlu0 0
      %1514 = vperm.xlu0 %1513, %v1495
      %v1515 = vpop.permute.xlu0 %1514
      %1517 = vset.pattern.permute.xlu0 0
      %1518 = vperm.xlu0 %1517, %v1496
      %v1519 = vpop.permute.xlu0 %1518
      %1522 = vset.pattern.permute.xlu0 0
      %1523 = vperm.xlu0 %1522, %v1497
      %v1524 = vpop.permute.xlu0 %1523
      %1527 = vset.pattern.permute.xlu0 0
      %1528 = vperm.xlu0 %1527, %v1498
      %v1529 = vpop.permute.xlu0 %1528
      %1532 = vset.pattern.permute.xlu0 0
      %1533 = vperm.xlu0 %1532, %v1499
      %v1534 = vpop.permute.xlu0 %1533
      %v1544 = vunpack.c.l.b16 %v1483
      %v1545 = vunpack.c.l.b16 %v1484
      %v1546 = vunpack.c.l.b16 %v1485
      %v1547 = vunpack.c.l.b16 %v1486
      %v1548 = vunpack.c.l.b16 %v1487
      %v1549 = vunpack.c.l.b16 %v1488
      %v1550 = vunpack.c.l.b16 %v1489
      %v1551 = vunpack.c.l.b16 %v1490
      %v1552 = vpack.c.b16 %v1545, %v1544
      %v1553 = vpack.c.b16 %v1547, %v1546
      %v1554 = vpack.c.b16 %v1549, %v1548
      %v1555 = vpack.c.b16 %v1551, %v1550
      %v1557 = vsel %vm795, %v1552, 0
      %v1560 = vsel %vm795, %v1553, 0
      %v1563 = vsel %vm795, %v1554, 0
      %v1566 = vsel %vm795, %v1555, 0
      %1568 = vmatprep.subr.bf16.mxu0 0
      %1569 = vmatpush1.bf16.msra.mxu0 %v1480
      %1570 = vmatprep.subr.bf16.mxu0 0
      %1571 = vmatpush1.bf16.msra.mxu0 %v1481
      %1572 = vmatprep.subr.bf16.mxu0 0
      %1573 = vmatpush1.bf16.msra.mxu0 0
      %1574 = vmatprep.subr.bf16.mxu0 0
      %1575 = vmatpush1.bf16.msra.mxu0 0
      %1576 = vmatprep.subr.bf16.mxu0 0
      %1577 = vmatpush1.bf16.msra.mxu0 0
      %1578 = vmatprep.subr.bf16.mxu0 0
      %1579 = vmatpush1.bf16.msra.mxu0 0
      %1580 = vmatprep.subr.bf16.mxu0 0
      %1581 = vmatpush1.bf16.msra.mxu0 0
      %1582 = vmatprep.subr.bf16.mxu0 0
      %1583 = vmatpush1.bf16.msra.mxu0 0
      %1584 = vmatprep.subr.bf16.mxu0 0
      %1585 = vmatpush1.bf16.msra.mxu0 0
      %1586 = vmatprep.subr.bf16.mxu0 0
      %1587 = vmatpush1.bf16.msra.mxu0 0
      %1588 = vmatprep.subr.bf16.mxu0 0
      %1589 = vmatpush1.bf16.msra.mxu0 0
      %1590 = vmatprep.subr.bf16.mxu0 0
      %1591 = vmatpush1.bf16.msra.mxu0 0
      %1592 = vmatprep.subr.bf16.mxu0 0
      %1593 = vmatpush1.bf16.msra.mxu0 0
      %1594 = vmatprep.subr.bf16.mxu0 0
      %1595 = vmatpush1.bf16.msra.mxu0 0
      %1596 = vmatprep.subr.bf16.mxu0 0
      %1597 = vmatpush1.bf16.msra.mxu0 0
      %1598 = vmatprep.subr.bf16.mxu0 0
      %1599 = vmatpush1.bf16.msra.mxu0 0
      %1600 = vmatprep.mubr.bf16.mxu0 0
      %1601 = vmatmul.mubr.bf16.gmra.mrb[0].mxu0 %v1557
      %v1602 = vpop.f32.mrb[0].mxu0
      %v1603 = vpop.f32.mrb[0].mxu0
      %v1604 = vpop.f32.mrb[0].mxu0
      %v1605 = vpop.f32.mrb[0].mxu0
      %1606 = vmatprep.mubr.bf16.mxu0 0
      %1607 = vmatmul.mubr.bf16.gmra.mrb[0].mxu0 %v1560
      %v1608 = vpop.f32.mrb[0].mxu0
      %v1609 = vpop.f32.mrb[0].mxu0
      %v1610 = vpop.f32.mrb[0].mxu0
      %v1611 = vpop.f32.mrb[0].mxu0
      %1612 = vmatprep.mubr.bf16.mxu0 0
      %1613 = vmatmul.mubr.bf16.gmra.mrb[0].mxu0 %v1563
      %v1614 = vpop.f32.mrb[0].mxu0
      %v1615 = vadd.f32 %v1519, %v1614
      %v1616 = vpop.f32.mrb[0].mxu0
      %v1617 = vpop.f32.mrb[0].mxu0
      %v1618 = vadd.f32 %v1524, %v1617
      %v1619 = vpop.f32.mrb[0].mxu0
      %1620 = vmatprep.mubr.bf16.mxu0 0
      %1621 = vmatmul.mubr.bf16.gmra.mrb[0].mxu0 %v1566
      %v1622 = vpop.f32.mrb[0].mxu0
      %v1623 = vadd.f32 %v1529, %v1622
      %v1624 = vpop.f32.mrb[0].mxu0
      %v1625 = vpop.f32.mrb[0].mxu0
      %v1626 = vadd.f32 %v1534, %v1625
      %v1627 = vpop.f32.mrb[0].mxu0
      %1628 = vdwg.mxu0
      %v1629 = vadd.f32 %v1263, %v1615
      %v1630 = vadd.f32 %v1264, %v1618
      %v1631 = vadd.f32 %v1265, %v1623
      %v1632 = vadd.f32 %v1266, %v1626
      %v1633 = vmul.f32 %v1629, %v495
      %v1634 = vmul.f32 %v1630, %v495
      %v1635 = vmul.f32 %v1631, %v495
      %v1636 = vmul.f32 %v1632, %v495
      %v1637 = vpack.c.bf16 %v1634, %v1633
      %v1638 = vpack.c.bf16 %v1636, %v1635
      %v1639 = vld [vmem:[%s8] sm:$0x1]
      %v1640 = vld [vmem:[%s9] sm:$0x3]
      %1642 = vset.pattern.permute.xlu0 0
      %1643 = vperm.xlu0 %1642, %v1640
      %v1644 = vpop.permute.xlu0 %1643
      %v1647 = vsel %vm795, %v1639, 0
      %1649 = vmatprep.subr.bf16.mxu0 0
      %1650 = vmatpush1.bf16.msra.mxu0 %v1637
      %1651 = vmatprep.subr.bf16.mxu0 0
      %1652 = vmatpush1.bf16.msra.mxu0 %v1638
      %1653 = vmatprep.subr.bf16.mxu0 0
      %1654 = vmatpush1.bf16.msra.mxu0 0
      %1655 = vmatprep.subr.bf16.mxu0 0
      %1656 = vmatpush1.bf16.msra.mxu0 0
      %1657 = vmatprep.subr.bf16.mxu0 0
      %1658 = vmatpush1.bf16.msra.mxu0 0
      %1659 = vmatprep.subr.bf16.mxu0 0
      %1660 = vmatpush1.bf16.msra.mxu0 0
      %1661 = vmatprep.subr.bf16.mxu0 0
      %1662 = vmatpush1.bf16.msra.mxu0 0
      %1663 = vmatprep.subr.bf16.mxu0 0
      %1664 = vmatpush1.bf16.msra.mxu0 0
      %1665 = vmatprep.subr.bf16.mxu0 0
      %1666 = vmatpush1.bf16.msra.mxu0 0
      %1667 = vmatprep.subr.bf16.mxu0 0
      %1668 = vmatpush1.bf16.msra.mxu0 0
      %1669 = vmatprep.subr.bf16.mxu0 0
      %1670 = vmatpush1.bf16.msra.mxu0 0
      %1671 = vmatprep.subr.bf16.mxu0 0
      %1672 = vmatpush1.bf16.msra.mxu0 0
      %1673 = vmatprep.subr.bf16.mxu0 0
      %1674 = vmatpush1.bf16.msra.mxu0 0
      %1675 = vmatprep.subr.bf16.mxu0 0
      %1676 = vmatpush1.bf16.msra.mxu0 0
      %1677 = vmatprep.subr.bf16.mxu0 0
      %1678 = vmatpush1.bf16.msra.mxu0 0
      %1679 = vmatprep.subr.bf16.mxu0 0
      %1680 = vmatpush1.bf16.msra.mxu0 0
      %1681 = vmatprep.mubr.bf16.mxu0 0
      %1682 = vmatmul.mubr.bf16.gmra.mrb[0].mxu0 %v1647
      %v1683 = vpop.f32.mrb[0].mxu0
      %v1684 = vadd.f32 %v1644, %v1683
      %v1685 = vpop.f32.mrb[0].mxu0
      %v1686 = vpop.f32.mrb[0].mxu0
      %v1687 = vpop.f32.mrb[0].mxu0
      %1688 = vdwg.mxu0
      %v1689 = vmul.f32 %v1684, %v495
      %1690 = vst [vmem:[%s388] sm:$0x3] %v390
      %v1691 = vmul.f32 %v390, %v495
      %v1693 = vrot.slane %v1691, 2
      %v1695 = vadd.f32 %v1689, %v1693
      %1696 = vst [vmem:[%s388 + $0x2] sm:$0x3] %v1695
      %p1697 = scmp.lt.s32.totalorder %s21, 1
      %s1698 = scalar_select %p1697, %s21, 1
      %s1699 = smul.addr %s1698, 4
      %s1700 = scalar_lea.vmem %s10, %s1699
      // Predicated region
      $region61: #{block_forward.5} parent=59 // pred_check
        %p1701 = pneg %p264
      $region62: #{block_forward.5} parent=59 // pred_check_branch
        %1703 = sbr.rel (%p1701) target = $region64
      $region63: #{block_forward.5} parent=59 // pred_region
        _
      $region64: #{block_forward.5} parent=59 // pred_fallthru
        _
    $region60: #{block_forward.5} parent=5 // pred_fallthru
      _
    %p1704 = scmp.le.s32.totalorder 2, %s16
    // Predicated region
    $region65: #{block_forward.5} parent=5 // pred_check
      %p1705 = pneg %p1704
    $region66: #{block_forward.5} parent=5 // pred_check_branch
      %1707 = sbr.rel (%p1705) target = $region68
    $region67: #{block_forward.5} parent=5 // pred_region
      %s1708 = ssub.s32 %s16, 2
      // Predicated region
      $region69: #{block_forward.5} parent=67 // pred_check
        %p1709 = pneg %p270
      $region70: #{block_forward.5} parent=67 // pred_check_branch
        %1711 = sbr.rel (%p1709) target = $region72
      $region71: #{block_forward.5} parent=67 // pred_region
        %p1712 = scmp.lt.s32.totalorder %s22, 1
        %s1713 = scalar_select %p1712, %s22, 1
        %s1714 = smul.addr %s1713, 4
        %s1715 = scalar_lea.vmem %s10, %s1714
      $region72: #{block_forward.5} parent=67 // pred_fallthru
        _
    $region68: #{block_forward.5} parent=5 // pred_fallthru
      _
  $region6: #{block_forward.5} parent=0 // loop_footer
    %s20 = sadd.s32 1, %s16
  $region7: #{block_forward.5} parent=0 // loop_footer_branch
    %15 = sbr.rel target = $region3
  $region8: #{block_forward.5} parent=0 // loop_exit
    _

</llo_original>
